<compile_context>
chip_gen: v7x
topology: tpu7x:2x2x1
jax: 0.10.0
libtpu: 0.0.40
codegen_flags: <defaults>
</compile_context>

<pallas_src>
import functools
import math

import jax
import jax.numpy as jnp
from jax.experimental import pallas as pl
from jax.experimental.pallas import tpu as pltpu


def _roberta_layer_kernel(
    # inputs
    x_ref, mask_ref,
    wq_ref, bq_ref, wk_ref, bk_ref, wv_ref, bv_ref,
    wo_ref, bo_ref, g1_ref, be1_ref,
    wi_ref, bi_ref, wd_ref, bd_ref, g2_ref, be2_ref,
    # outputs
    o_ref,
    # scratch
    k_sc, v_sc,
    *, num_heads, head_dim, block_q, layer_norm_eps, compute_dtype):
  qi = pl.program_id(1)
  f32 = jnp.float32
  scale = 1.0 / math.sqrt(head_dim)

  def matmul(a, w_ref):
    # a: [rows, in] (compute dtype); w_ref: [in, out] (compute dtype,
    # pre-transposed in the wrapper) -> f32 accumulation on the MXU.
    return jax.lax.dot_general(
        a, w_ref[...],
        dimension_numbers=(((1,), (0,)), ((), ())),
        preferred_element_type=f32)

  def split_heads(y):
    # y: [rows, H] -> [nh, rows, hd] via static lane slices + leading-axis
    # stack (avoids a minor-dim-splitting reshape inside the kernel).
    return jnp.stack(
        [y[:, h * head_dim:(h + 1) * head_dim] for h in range(num_heads)],
        axis=0)

  def layer_norm(y, g_ref, b_ref):              # y: f32 [rows, H]
    mu = jnp.mean(y, axis=-1, keepdims=True)
    d = y - mu
    var = jnp.mean(d * d, axis=-1, keepdims=True)
    return d * jax.lax.rsqrt(var + layer_norm_eps) * g_ref[...] + b_ref[...]

  # ---- K / V for the whole batch row, cached once per row (qi == 0) --------
  @pl.when(qi == 0)
  def _():
    xc = x_ref[0].astype(compute_dtype)                         # [S, H]
    k = matmul(xc, wk_ref) + bk_ref[...]                        # [S, H] f32
    v = matmul(xc, wv_ref) + bv_ref[...]
    k_sc[...] = split_heads(k.astype(compute_dtype))            # [nh, S, hd]
    v_sc[...] = split_heads(v.astype(compute_dtype))

  # ---- query tile -----------------------------------------------------------
  q0 = pl.multiple_of(qi * block_q, block_q)
  x_q = x_ref[0, pl.ds(q0, block_q), :]                         # [TQ, H]
  x_q_f32 = x_q.astype(f32)                                     # residual (f32)
  xq_c = x_q.astype(compute_dtype)

  q = (matmul(xq_c, wq_ref) + bq_ref[...]) * scale              # [TQ, H] f32
  q_heads = split_heads(q.astype(compute_dtype))                # [nh, TQ, hd]

  # scores: [nh, TQ, S]  (compute-dtype operands, f32 accumulation)
  scores = jax.lax.dot_general(
      q_heads, k_sc[...],
      dimension_numbers=(((2,), (2,)), ((0,), (0,))),
      preferred_element_type=f32)
  scores = scores + mask_ref[0].astype(f32)                     # [1,S] broadcast
  scores = scores - jnp.max(scores, axis=-1, keepdims=True)
  p = jnp.exp(scores)
  p = p * pl.reciprocal(jnp.sum(p, axis=-1, keepdims=True), approx=True)

  # per-head context: [nh, TQ, hd]
  ctx = jax.lax.dot_general(
      p.astype(compute_dtype), v_sc[...],
      dimension_numbers=(((2,), (1,)), ((0,), (0,))),
      preferred_element_type=f32)

  # output projection fused over heads: wo_ref is [nh, hd, H]
  attn_nh = jax.lax.dot_general(
      ctx.astype(compute_dtype), wo_ref[...],
      dimension_numbers=(((2,), (1,)), ((0,), (0,))),
      preferred_element_type=f32)                               # [nh, TQ, H]
  attn_dense = jnp.sum(attn_nh, axis=0) + bo_ref[...]           # [TQ, H] f32

  attn = layer_norm(attn_dense + x_q_f32, g1_ref, be1_ref)

  # ---- feed-forward: Linear -> GELU(tanh) -> Linear + residual + LayerNorm --
  inter = matmul(attn.astype(compute_dtype), wi_ref) + bi_ref[...]   # [TQ, I]
  c = 0.7978845608028654                                             # sqrt(2/pi)
  inter = 0.5 * inter * (1.0 + jnp.tanh(c * (inter + 0.044715 * inter * inter * inter)))
  ff = matmul(inter.astype(compute_dtype), wd_ref) + bd_ref[...]     # [TQ, H]
  out = layer_norm(ff + attn, g2_ref, be2_ref)

  o_ref[0] = out.astype(o_ref.dtype)


def _pick_block_q(seq):
  if seq <= 256:
    return seq
  for cand in (256, 128, 64, 32, 16, 8):
    if seq % cand == 0:
      return cand
  return seq


def roberta_layer(hidden_states, attention_mask, params, *, num_heads,
                  layer_norm_eps=1e-12, compute_dtype=jnp.bfloat16,
                  block_q=None, single_buffer_weights=True):
  """hidden_states: [B, S, H]; attention_mask: [B, S] additive (0 keep, -1e9 drop).

  params (PyTorch nn.Linear layout, weights are [out, in]):
    q_w,k_w,v_w,attn_out_w: [H,H]; q_b,k_b,v_b,attn_out_b: [H]
    inter_w: [I,H]; inter_b: [I]; ffn_out_w: [H,I]; ffn_out_b: [H]
    ln1_g, ln1_b, ln2_g, ln2_b: [H]
  """
  B, S, H = hidden_states.shape
  assert H % num_heads == 0
  hd = H // num_heads
  inter_size = params["inter_w"].shape[0]

  if block_q is None:
    block_q = _pick_block_q(S)
  assert S % block_q == 0
  nq = S // block_q

  f32 = jnp.float32
  cdt = compute_dtype
  mask3 = attention_mask.reshape(B, 1, S).astype(f32)

  def row(v):                                     # 1-D vector -> (1, N) f32
    return v.reshape(1, -1).astype(f32)

  # Pre-transpose matrix weights to [in, out] once in the wrapper (natural MXU
  # orientation) and cast them to the compute dtype; the attention output
  # projection is rearranged to [nh, hd, H] so it fuses with the per-head
  # context matmul. Biases / LayerNorm params stay f32.
  weights = [
      params["q_w"].T.astype(cdt), row(params["q_b"]),
      params["k_w"].T.astype(cdt), row(params["k_b"]),
      params["v_w"].T.astype(cdt), row(params["v_b"]),
      params["attn_out_w"].T.reshape(num_heads, hd, H).astype(cdt),
      row(params["attn_out_b"]),
      row(params["ln1_g"]), row(params["ln1_b"]),
      params["inter_w"].T.astype(cdt), row(params["inter_b"]),
      params["ffn_out_w"].T.astype(cdt), row(params["ffn_out_b"]),
      row(params["ln2_g"]), row(params["ln2_b"]),
  ]

  x_spec = pl.BlockSpec((1, S, H), lambda b, q: (b, 0, 0))
  m_spec = pl.BlockSpec((1, 1, S), lambda b, q: (b, 0, 0))
  o_spec = pl.BlockSpec((1, block_q, H), lambda b, q: (b, q, 0))

  def const_spec(arr):
    idx = lambda b, q, nd=arr.ndim: (0,) * nd
    if single_buffer_weights:
      return pl.BlockSpec(arr.shape, idx, pipeline_mode=pl.Buffered(1))
    return pl.BlockSpec(arr.shape, idx)

  w_specs = [const_spec(w) for w in weights]

  # VMEM budget: resident weights, pipelined I/O blocks, K/V scratch and the
  # f32 per-tile intermediates; clamped to the queried device VMEM capacity.
  itemsize = hidden_states.dtype.itemsize
  csize = jnp.dtype(cdt).itemsize
  w_bytes = sum(int(w.size) * w.dtype.itemsize for w in weights)
  if not single_buffer_weights:
    w_bytes *= 2                                   # double-buffered residents
  io_bytes = 2 * (S * H * itemsize) + 2 * (block_q * H * itemsize) + 2 * S * 4
  kv_scratch = 2 * num_heads * S * max(hd, 128) * csize          # lane padding
  interm = (4 * S * H * 4                                        # x/k/v at qi==0
            + 2 * num_heads * block_q * S * 4                    # scores + probs
            + num_heads * block_q * (hd + H) * 4                 # ctx + per-head proj
            + block_q * (inter_size + 4 * H) * 4)                # FFN + LN temps
  want = w_bytes + io_bytes + kv_scratch + interm + (8 << 20)

  try:
    phys = int(getattr(pltpu.get_tpu_info(), "vmem_capacity_bytes", 64 << 20))
  except Exception:
    phys = 64 << 20
  vmem_limit = int(min(max(want, 16 << 20), int(phys * 0.9)))

  kernel = functools.partial(
      _roberta_layer_kernel, num_heads=num_heads, head_dim=hd,
      block_q=block_q, layer_norm_eps=layer_norm_eps, compute_dtype=cdt)

  return pl.pallas_call(
      kernel,
      out_shape=jax.ShapeDtypeStruct((B, S, H), hidden_states.dtype),
      grid=(B, nq),
      in_specs=[x_spec, m_spec] + w_specs,
      out_specs=o_spec,
      scratch_shapes=[pltpu.VMEM((num_heads, S, hd), cdt),
                      pltpu.VMEM((num_heads, S, hd), cdt)],
      compiler_params=pltpu.CompilerParams(
          dimension_semantics=("parallel", "arbitrary"),
          vmem_limit_bytes=vmem_limit),
  )(hidden_states, mask3, *weights)


def _reference(hidden_states, attention_mask, params, *, num_heads,
               layer_norm_eps=1e-12):
  x = hidden_states.astype(jnp.float32)
  B, S, H = x.shape
  hd = H // num_heads
  hp = jax.lax.Precision.HIGHEST

  def lin(v, w, b):
    return jnp.matmul(v, w.astype(jnp.float32).T, precision=hp) + b.astype(jnp.float32)

  def ln(y, g, b):
    mu = y.mean(-1, keepdims=True)
    var = ((y - mu) ** 2).mean(-1, keepdims=True)
    return (y - mu) / jnp.sqrt(var + layer_norm_eps) * g + b

  def split(v):                                  # [B,S,H] -> [B,nh,S,hd]
    return v.reshape(B, S, num_heads, hd).transpose(0, 2, 1, 3)

  q = split(lin(x, params["q_w"], params["q_b"]))
  k = split(lin(x, params["k_w"], params["k_b"]))
  v = split(lin(x, params["v_w"], params["v_b"]))

  scores = jnp.matmul(q, k.transpose(0, 1, 3, 2), precision=hp) / math.sqrt(hd)
  scores = scores + attention_mask.astype(jnp.float32)[:, None, None, :]
  probs = jax.nn.softmax(scores, axis=-1)
  ctx = jnp.matmul(probs, v, precision=hp).transpose(0, 2, 1, 3).reshape(B, S, H)

  attn = ln(lin(ctx, params["attn_out_w"], params["attn_out_b"]) + x,
            params["ln1_g"], params["ln1_b"])
  inter = lin(attn, params["inter_w"], params["inter_b"])
  c = 0.7978845608028654
  inter = 0.5 * inter * (1.0 + jnp.tanh(c * (inter + 0.044715 * inter ** 3)))
  ff = lin(inter, params["ffn_out_w"], params["ffn_out_b"])
  out = ln(ff + attn, params["ln2_g"], params["ln2_b"])
  return out.astype(hidden_states.dtype)


if __name__ == "__main__":
  # config: hidden_size=32, num_attention_heads=4, intermediate_size=128,
  # batch=2, seq=8, eval mode, encoder (is_decoder=False), absolute pos-emb.
  B, S, H, NH, I = 2, 8, 32, 4, 128

  key = jax.random.PRNGKey(0)
  ks = jax.random.split(key, 20)

  def w(k, shape, scale=0.05):
    return jax.random.normal(k, shape, dtype=jnp.float32) * scale

  params = {
      "q_w": w(ks[0], (H, H)), "q_b": w(ks[1], (H,)),
      "k_w": w(ks[2], (H, H)), "k_b": w(ks[3], (H,)),
      "v_w": w(ks[4], (H, H)), "v_b": w(ks[5], (H,)),
      "attn_out_w": w(ks[6], (H, H)), "attn_out_b": w(ks[7], (H,)),
      "ln1_g": 1.0 + w(ks[8], (H,)), "ln1_b": w(ks[9], (H,)),
      "inter_w": w(ks[10], (I, H)), "inter_b": w(ks[11], (I,)),
      "ffn_out_w": w(ks[12], (H, I)), "ffn_out_b": w(ks[13], (H,)),
      "ln2_g": 1.0 + w(ks[14], (H,)), "ln2_b": w(ks[15], (H,)),
  }
  hidden_states = jax.random.normal(ks[16], (B, S, H), dtype=jnp.float32)
  # Additive attention mask (HF convention): 0 = keep, -1e9 = masked.
  attention_mask = jnp.zeros((B, S), dtype=jnp.float32)
  attention_mask = attention_mask.at[1, S - 2:].set(-1e9)

  def run(single_buffer):
    o_f32 = roberta_layer(hidden_states, attention_mask, params, num_heads=NH,
                          compute_dtype=jnp.float32,
                          single_buffer_weights=single_buffer)
    o_bf16 = roberta_layer(hidden_states, attention_mask, params, num_heads=NH,
                           compute_dtype=jnp.bfloat16,
                           single_buffer_weights=single_buffer)
    return jax.block_until_ready(o_f32), jax.block_until_ready(o_bf16)

  try:
    out_f32, out_bf16 = run(True)
  except Exception:
    # Fallback if this JAX build rejects pipeline_mode=pl.Buffered(1) on
    # pallas_call BlockSpecs; weights then use default double buffering.
    out_f32, out_bf16 = run(False)

  ref = _reference(hidden_states, attention_mask, params, num_heads=NH)
  assert out_f32.shape == (B, S, H) and out_bf16.shape == (B, S, H)
  err_f32 = float(jnp.max(jnp.abs(out_f32 - ref)))
  err_bf16 = float(jnp.max(jnp.abs(out_bf16 - ref)))
  assert err_f32 < 5e-3, err_f32     # f32 compute path vs f32 reference
  assert err_bf16 < 5e-2, err_bf16   # bf16 (production) compute path
  print("KERNEL_OK")
</pallas_src>

<mosaic_0001>
module attributes {stable_mosaic.version = 11 : i64} {
  func.func @_roberta_layer_kernel(%arg0: i32, %arg1: i32, %arg2: memref<1x8x32xf32, #tpu.memory_space<vmem>>, %arg3: memref<1x1x8xf32, #tpu.memory_space<vmem>>, %arg4: memref<32x32xf32, #tpu.memory_space<vmem>>, %arg5: memref<1x32xf32, #tpu.memory_space<vmem>>, %arg6: memref<32x32xf32, #tpu.memory_space<vmem>>, %arg7: memref<1x32xf32, #tpu.memory_space<vmem>>, %arg8: memref<32x32xf32, #tpu.memory_space<vmem>>, %arg9: memref<1x32xf32, #tpu.memory_space<vmem>>, %arg10: memref<4x8x32xf32, #tpu.memory_space<vmem>>, %arg11: memref<1x32xf32, #tpu.memory_space<vmem>>, %arg12: memref<1x32xf32, #tpu.memory_space<vmem>>, %arg13: memref<1x32xf32, #tpu.memory_space<vmem>>, %arg14: memref<32x128xf32, #tpu.memory_space<vmem>>, %arg15: memref<1x128xf32, #tpu.memory_space<vmem>>, %arg16: memref<128x32xf32, #tpu.memory_space<vmem>>, %arg17: memref<1x32xf32, #tpu.memory_space<vmem>>, %arg18: memref<1x32xf32, #tpu.memory_space<vmem>>, %arg19: memref<1x32xf32, #tpu.memory_space<vmem>>, %arg20: memref<1x8x32xf32, #tpu.memory_space<vmem>>, %arg21: memref<4x8x8xf32, #tpu.memory_space<vmem>>, %arg22: memref<4x8x8xf32, #tpu.memory_space<vmem>>) attributes {dimension_semantics = [#tpu.dimension_semantics<parallel>, #tpu.dimension_semantics<arbitrary>], iteration_bounds = array<i64: 2, 1>, scalar_prefetch = 0 : i64, scratch_operands = 2 : i64, tpu.core_type = #tpu.core_type<tc>, window_params = [{transform_indices = @transform_0, window_bounds = array<i64: 1, 8, 32>}, {transform_indices = @transform_1, window_bounds = array<i64: 1, 1, 8>}, {pipeline_mode = #tpu.pipeline_mode<synchronous>, transform_indices = @transform_2, window_bounds = array<i64: 32, 32>}, {pipeline_mode = #tpu.pipeline_mode<synchronous>, transform_indices = @transform_3, window_bounds = array<i64: 1, 32>}, {pipeline_mode = #tpu.pipeline_mode<synchronous>, transform_indices = @transform_4, window_bounds = array<i64: 32, 32>}, {pipeline_mode = #tpu.pipeline_mode<synchronous>, transform_indices = @transform_5, window_bounds = array<i64: 1, 32>}, {pipeline_mode = #tpu.pipeline_mode<synchronous>, transform_indices = @transform_6, window_bounds = array<i64: 32, 32>}, {pipeline_mode = #tpu.pipeline_mode<synchronous>, transform_indices = @transform_7, window_bounds = array<i64: 1, 32>}, {pipeline_mode = #tpu.pipeline_mode<synchronous>, transform_indices = @transform_8, window_bounds = array<i64: 4, 8, 32>}, {pipeline_mode = #tpu.pipeline_mode<synchronous>, transform_indices = @transform_9, window_bounds = array<i64: 1, 32>}, {pipeline_mode = #tpu.pipeline_mode<synchronous>, transform_indices = @transform_10, window_bounds = array<i64: 1, 32>}, {pipeline_mode = #tpu.pipeline_mode<synchronous>, transform_indices = @transform_11, window_bounds = array<i64: 1, 32>}, {pipeline_mode = #tpu.pipeline_mode<synchronous>, transform_indices = @transform_12, window_bounds = array<i64: 32, 128>}, {pipeline_mode = #tpu.pipeline_mode<synchronous>, transform_indices = @transform_13, window_bounds = array<i64: 1, 128>}, {pipeline_mode = #tpu.pipeline_mode<synchronous>, transform_indices = @transform_14, window_bounds = array<i64: 128, 32>}, {pipeline_mode = #tpu.pipeline_mode<synchronous>, transform_indices = @transform_15, window_bounds = array<i64: 1, 32>}, {pipeline_mode = #tpu.pipeline_mode<synchronous>, transform_indices = @transform_16, window_bounds = array<i64: 1, 32>}, {pipeline_mode = #tpu.pipeline_mode<synchronous>, transform_indices = @transform_17, window_bounds = array<i64: 1, 32>}, {transform_indices = @transform_18, window_bounds = array<i64: 1, 8, 32>}]} {
    %c0_i32 = arith.constant 0 : i32
    %0 = arith.cmpi eq, %arg1, %c0_i32 : i32
    %1 = arith.extui %0 : i1 to i32
    %c0_i32_0 = arith.constant 0 : i32
    %2 = arith.cmpi ne, %1, %c0_i32_0 : i32
    scf.if %2 {
      %c0_62 = arith.constant 0 : index
      %c0_63 = arith.constant 0 : index
      %c0_64 = arith.constant 0 : index
      %121 = vector.load %arg2[%c0_62, %c0_63, %c0_64] : memref<1x8x32xf32, #tpu.memory_space<vmem>>, vector<1x8x32xf32>
      %122 = vector.shape_cast %121 : vector<1x8x32xf32> to vector<8x32xf32>
      %c0_65 = arith.constant 0 : index
      %c0_66 = arith.constant 0 : index
      %123 = vector.load %arg6[%c0_65, %c0_66] : memref<32x32xf32, #tpu.memory_space<vmem>>, vector<32x32xf32>
      %cst_67 = arith.constant dense<0.000000e+00> : vector<8x32xf32>
      %124 = tpu.matmul %122, %123, %cst_67 {dimension_numbers = #tpu.dot_dimension_numbers<[1], [0], [0], [1], [0, 0, 1, 1], [], []>} : vector<8x32xf32>, vector<32x32xf32>, vector<8x32xf32> -> vector<8x32xf32>
      %c0_68 = arith.constant 0 : index
      %c0_69 = arith.constant 0 : index
      %125 = vector.load %arg7[%c0_68, %c0_69] : memref<1x32xf32, #tpu.memory_space<vmem>>, vector<1x32xf32>
      %126 = vector.broadcast %125 : vector<1x32xf32> to vector<8x32xf32>
      %127 = arith.addf %124, %126 : vector<8x32xf32>
      %c0_70 = arith.constant 0 : index
      %c0_71 = arith.constant 0 : index
      %128 = vector.load %arg8[%c0_70, %c0_71] : memref<32x32xf32, #tpu.memory_space<vmem>>, vector<32x32xf32>
      %cst_72 = arith.constant dense<0.000000e+00> : vector<8x32xf32>
      %129 = tpu.matmul %122, %128, %cst_72 {dimension_numbers = #tpu.dot_dimension_numbers<[1], [0], [0], [1], [0, 0, 1, 1], [], []>} : vector<8x32xf32>, vector<32x32xf32>, vector<8x32xf32> -> vector<8x32xf32>
      %c0_73 = arith.constant 0 : index
      %c0_74 = arith.constant 0 : index
      %130 = vector.load %arg9[%c0_73, %c0_74] : memref<1x32xf32, #tpu.memory_space<vmem>>, vector<1x32xf32>
      %131 = vector.broadcast %130 : vector<1x32xf32> to vector<8x32xf32>
      %132 = arith.addf %129, %131 : vector<8x32xf32>
      %133 = vector.extract_strided_slice %127 {offsets = [0, 0], sizes = [8, 8], strides = [1, 1]} : vector<8x32xf32> to vector<8x8xf32>
      %134 = vector.extract_strided_slice %127 {offsets = [0, 8], sizes = [8, 8], strides = [1, 1]} : vector<8x32xf32> to vector<8x8xf32>
      %135 = vector.extract_strided_slice %127 {offsets = [0, 16], sizes = [8, 8], strides = [1, 1]} : vector<8x32xf32> to vector<8x8xf32>
      %136 = vector.extract_strided_slice %127 {offsets = [0, 24], sizes = [8, 8], strides = [1, 1]} : vector<8x32xf32> to vector<8x8xf32>
      %137 = vector.shape_cast %133 : vector<8x8xf32> to vector<1x8x8xf32>
      %138 = vector.shape_cast %134 : vector<8x8xf32> to vector<1x8x8xf32>
      %139 = vector.shape_cast %135 : vector<8x8xf32> to vector<1x8x8xf32>
      %140 = vector.shape_cast %136 : vector<8x8xf32> to vector<1x8x8xf32>
      %141 = tpu.concatenate %137, %138, %139, %140 in 0 : vector<1x8x8xf32>, vector<1x8x8xf32>, vector<1x8x8xf32>, vector<1x8x8xf32> -> vector<4x8x8xf32>
      %c0_75 = arith.constant 0 : index
      %c0_76 = arith.constant 0 : index
      %c0_77 = arith.constant 0 : index
      %142 = vector.load %arg21[%c0_75, %c0_76, %c0_77] : memref<4x8x8xf32, #tpu.memory_space<vmem>>, vector<4x8x8xf32>
      tpu.vector_store %arg21[%c0_75, %c0_76, %c0_77], %141 {strides = array<i32>} : memref<4x8x8xf32, #tpu.memory_space<vmem>>, vector<4x8x8xf32>,
      %143 = vector.extract_strided_slice %132 {offsets = [0, 0], sizes = [8, 8], strides = [1, 1]} : vector<8x32xf32> to vector<8x8xf32>
      %144 = vector.extract_strided_slice %132 {offsets = [0, 8], sizes = [8, 8], strides = [1, 1]} : vector<8x32xf32> to vector<8x8xf32>
      %145 = vector.extract_strided_slice %132 {offsets = [0, 16], sizes = [8, 8], strides = [1, 1]} : vector<8x32xf32> to vector<8x8xf32>
      %146 = vector.extract_strided_slice %132 {offsets = [0, 24], sizes = [8, 8], strides = [1, 1]} : vector<8x32xf32> to vector<8x8xf32>
      %147 = vector.shape_cast %143 : vector<8x8xf32> to vector<1x8x8xf32>
      %148 = vector.shape_cast %144 : vector<8x8xf32> to vector<1x8x8xf32>
      %149 = vector.shape_cast %145 : vector<8x8xf32> to vector<1x8x8xf32>
      %150 = vector.shape_cast %146 : vector<8x8xf32> to vector<1x8x8xf32>
      %151 = tpu.concatenate %147, %148, %149, %150 in 0 : vector<1x8x8xf32>, vector<1x8x8xf32>, vector<1x8x8xf32>, vector<1x8x8xf32> -> vector<4x8x8xf32>
      %c0_78 = arith.constant 0 : index
      %c0_79 = arith.constant 0 : index
      %c0_80 = arith.constant 0 : index
      %152 = vector.load %arg22[%c0_78, %c0_79, %c0_80] : memref<4x8x8xf32, #tpu.memory_space<vmem>>, vector<4x8x8xf32>
      tpu.vector_store %arg22[%c0_78, %c0_79, %c0_80], %151 {strides = array<i32>} : memref<4x8x8xf32, #tpu.memory_space<vmem>>, vector<4x8x8xf32>,
    } else {
    }
    %c8_i32 = arith.constant 8 : i32
    %3 = arith.muli %arg1, %c8_i32 : i32
    %4 = tpu.assume_multiple %3, 8 : i32
    %c0 = arith.constant 0 : index
    %5 = arith.index_cast %4 : i32 to index
    %c0_1 = arith.constant 0 : index
    %6 = vector.load %arg2[%c0, %5, %c0_1] : memref<1x8x32xf32, #tpu.memory_space<vmem>>, vector<1x8x32xf32>
    %7 = vector.shape_cast %6 : vector<1x8x32xf32> to vector<8x32xf32>
    %c0_2 = arith.constant 0 : index
    %c0_3 = arith.constant 0 : index
    %8 = vector.load %arg4[%c0_2, %c0_3] : memref<32x32xf32, #tpu.memory_space<vmem>>, vector<32x32xf32>
    %cst = arith.constant dense<0.000000e+00> : vector<8x32xf32>
    %9 = tpu.matmul %7, %8, %cst {dimension_numbers = #tpu.dot_dimension_numbers<[1], [0], [0], [1], [0, 0, 1, 1], [], []>} : vector<8x32xf32>, vector<32x32xf32>, vector<8x32xf32> -> vector<8x32xf32>
    %c0_4 = arith.constant 0 : index
    %c0_5 = arith.constant 0 : index
    %10 = vector.load %arg5[%c0_4, %c0_5] : memref<1x32xf32, #tpu.memory_space<vmem>>, vector<1x32xf32>
    %11 = vector.broadcast %10 : vector<1x32xf32> to vector<8x32xf32>
    %12 = arith.addf %9, %11 : vector<8x32xf32>
    %cst_6 = arith.constant 0.353553385 : f32
    %13 = vector.broadcast %cst_6 : f32 to vector<8x32xf32>
    %14 = arith.mulf %12, %13 : vector<8x32xf32>
    %15 = vector.extract_strided_slice %14 {offsets = [0, 0], sizes = [8, 8], strides = [1, 1]} : vector<8x32xf32> to vector<8x8xf32>
    %16 = vector.extract_strided_slice %14 {offsets = [0, 8], sizes = [8, 8], strides = [1, 1]} : vector<8x32xf32> to vector<8x8xf32>
    %17 = vector.extract_strided_slice %14 {offsets = [0, 16], sizes = [8, 8], strides = [1, 1]} : vector<8x32xf32> to vector<8x8xf32>
    %18 = vector.extract_strided_slice %14 {offsets = [0, 24], sizes = [8, 8], strides = [1, 1]} : vector<8x32xf32> to vector<8x8xf32>
    %19 = vector.shape_cast %15 : vector<8x8xf32> to vector<1x8x8xf32>
    %20 = vector.shape_cast %16 : vector<8x8xf32> to vector<1x8x8xf32>
    %21 = vector.shape_cast %17 : vector<8x8xf32> to vector<1x8x8xf32>
    %22 = vector.shape_cast %18 : vector<8x8xf32> to vector<1x8x8xf32>
    %23 = tpu.concatenate %19, %20, %21, %22 in 0 : vector<1x8x8xf32>, vector<1x8x8xf32>, vector<1x8x8xf32>, vector<1x8x8xf32> -> vector<4x8x8xf32>
    %c0_7 = arith.constant 0 : index
    %c0_8 = arith.constant 0 : index
    %c0_9 = arith.constant 0 : index
    %24 = vector.load %arg21[%c0_7, %c0_8, %c0_9] : memref<4x8x8xf32, #tpu.memory_space<vmem>>, vector<4x8x8xf32>
    %cst_10 = arith.constant dense<0.000000e+00> : vector<4x8x8xf32>
    %25 = tpu.matmul %23, %24, %cst_10 {dimension_numbers = #tpu.dot_dimension_numbers<[2], [2], [1], [1], [0, 0, 0, 1, 1, 1], [0], [0]>} : vector<4x8x8xf32>, vector<4x8x8xf32>, vector<4x8x8xf32> -> vector<4x8x8xf32>
    %c0_11 = arith.constant 0 : index
    %c0_12 = arith.constant 0 : index
    %c0_13 = arith.constant 0 : index
    %26 = vector.load %arg3[%c0_11, %c0_12, %c0_13] : memref<1x1x8xf32, #tpu.memory_space<vmem>>, vector<1x1x8xf32>
    %27 = vector.shape_cast %26 : vector<1x1x8xf32> to vector<1x8xf32>
    %28 = vector.shape_cast %27 : vector<1x8xf32> to vector<1x1x8xf32>
    %29 = vector.broadcast %28 : vector<1x1x8xf32> to vector<4x8x8xf32>
    %30 = arith.addf %25, %29 : vector<4x8x8xf32>
    %cst_14 = arith.constant dense<0xFF800000> : vector<4x8xf32>
    %31 = vector.multi_reduction <maximumf>, %30, %cst_14 [2] : vector<4x8x8xf32> to vector<4x8xf32>
    %32 = vector.shape_cast %31 : vector<4x8xf32> to vector<4x8x1xf32>
    %33 = vector.broadcast %32 : vector<4x8x1xf32> to vector<4x8x8xf32>
    %34 = arith.subf %30, %33 : vector<4x8x8xf32>
    %35 = math.exp %34 : vector<4x8x8xf32>
    %cst_15 = arith.constant dense<0.000000e+00> : vector<4x8xf32>
    %36 = vector.multi_reduction <add>, %35, %cst_15 [2] : vector<4x8x8xf32> to vector<4x8xf32>
    %37 = vector.shape_cast %36 : vector<4x8xf32> to vector<4x8x1xf32>
    %38 = tpu.reciprocal %37 {approx = true} : vector<4x8x1xf32> -> vector<4x8x1xf32>
    %39 = vector.broadcast %38 : vector<4x8x1xf32> to vector<4x8x8xf32>
    %40 = arith.mulf %35, %39 : vector<4x8x8xf32>
    %c0_16 = arith.constant 0 : index
    %c0_17 = arith.constant 0 : index
    %c0_18 = arith.constant 0 : index
    %41 = vector.load %arg22[%c0_16, %c0_17, %c0_18] : memref<4x8x8xf32, #tpu.memory_space<vmem>>, vector<4x8x8xf32>
    %cst_19 = arith.constant dense<0.000000e+00> : vector<4x8x8xf32>
    %42 = tpu.matmul %40, %41, %cst_19 {dimension_numbers = #tpu.dot_dimension_numbers<[2], [1], [1], [2], [0, 0, 0, 1, 1, 2], [0], [0]>} : vector<4x8x8xf32>, vector<4x8x8xf32>, vector<4x8x8xf32> -> vector<4x8x8xf32>
    %c0_20 = arith.constant 0 : index
    %c0_21 = arith.constant 0 : index
    %c0_22 = arith.constant 0 : index
    %43 = vector.load %arg10[%c0_20, %c0_21, %c0_22] : memref<4x8x32xf32, #tpu.memory_space<vmem>>, vector<4x8x32xf32>
    %cst_23 = arith.constant dense<0.000000e+00> : vector<4x8x32xf32>
    %44 = tpu.matmul %42, %43, %cst_23 {dimension_numbers = #tpu.dot_dimension_numbers<[2], [1], [1], [2], [0, 0, 0, 1, 1, 2], [0], [0]>} : vector<4x8x8xf32>, vector<4x8x32xf32>, vector<4x8x32xf32> -> vector<4x8x32xf32>
    %cst_24 = arith.constant dense<0.000000e+00> : vector<8x32xf32>
    %45 = vector.multi_reduction <add>, %44, %cst_24 [0] : vector<4x8x32xf32> to vector<8x32xf32>
    %c0_25 = arith.constant 0 : index
    %c0_26 = arith.constant 0 : index
    %46 = vector.load %arg11[%c0_25, %c0_26] : memref<1x32xf32, #tpu.memory_space<vmem>>, vector<1x32xf32>
    %47 = vector.broadcast %46 : vector<1x32xf32> to vector<8x32xf32>
    %48 = arith.addf %45, %47 : vector<8x32xf32>
    %49 = arith.addf %48, %7 : vector<8x32xf32>
    %cst_27 = arith.constant dense<0.000000e+00> : vector<8xf32>
    %50 = vector.multi_reduction <add>, %49, %cst_27 [1] : vector<8x32xf32> to vector<8xf32>
    %51 = vector.shape_cast %50 : vector<8xf32> to vector<8x1xf32>
    %cst_28 = arith.constant 3.200000e+01 : f32
    %52 = vector.broadcast %cst_28 : f32 to vector<8x1xf32>
    %53 = arith.divf %51, %52 : vector<8x1xf32>
    %54 = vector.broadcast %53 : vector<8x1xf32> to vector<8x32xf32>
    %55 = arith.subf %49, %54 : vector<8x32xf32>
    %56 = arith.mulf %55, %55 : vector<8x32xf32>
    %cst_29 = arith.constant dense<0.000000e+00> : vector<8xf32>
    %57 = vector.multi_reduction <add>, %56, %cst_29 [1] : vector<8x32xf32> to vector<8xf32>
    %58 = vector.shape_cast %57 : vector<8xf32> to vector<8x1xf32>
    %cst_30 = arith.constant 3.200000e+01 : f32
    %59 = vector.broadcast %cst_30 : f32 to vector<8x1xf32>
    %60 = arith.divf %58, %59 : vector<8x1xf32>
    %cst_31 = arith.constant 9.99999996E-13 : f32
    %61 = vector.broadcast %cst_31 : f32 to vector<8x1xf32>
    %62 = arith.addf %60, %61 : vector<8x1xf32>
    %63 = math.rsqrt %62 : vector<8x1xf32>
    %64 = vector.broadcast %63 : vector<8x1xf32> to vector<8x32xf32>
    %65 = arith.mulf %55, %64 : vector<8x32xf32>
    %c0_32 = arith.constant 0 : index
    %c0_33 = arith.constant 0 : index
    %66 = vector.load %arg12[%c0_32, %c0_33] : memref<1x32xf32, #tpu.memory_space<vmem>>, vector<1x32xf32>
    %67 = vector.broadcast %66 : vector<1x32xf32> to vector<8x32xf32>
    %68 = arith.mulf %65, %67 : vector<8x32xf32>
    %c0_34 = arith.constant 0 : index
    %c0_35 = arith.constant 0 : index
    %69 = vector.load %arg13[%c0_34, %c0_35] : memref<1x32xf32, #tpu.memory_space<vmem>>, vector<1x32xf32>
    %70 = vector.broadcast %69 : vector<1x32xf32> to vector<8x32xf32>
    %71 = arith.addf %68, %70 : vector<8x32xf32>
    %c0_36 = arith.constant 0 : index
    %c0_37 = arith.constant 0 : index
    %72 = vector.load %arg14[%c0_36, %c0_37] : memref<32x128xf32, #tpu.memory_space<vmem>>, vector<32x128xf32>
    %cst_38 = arith.constant dense<0.000000e+00> : vector<8x128xf32>
    %73 = tpu.matmul %71, %72, %cst_38 {dimension_numbers = #tpu.dot_dimension_numbers<[1], [0], [0], [1], [0, 0, 1, 1], [], []>} : vector<8x32xf32>, vector<32x128xf32>, vector<8x128xf32> -> vector<8x128xf32>
    %c0_39 = arith.constant 0 : index
    %c0_40 = arith.constant 0 : index
    %74 = vector.load %arg15[%c0_39, %c0_40] : memref<1x128xf32, #tpu.memory_space<vmem>>, vector<1x128xf32>
    %75 = vector.broadcast %74 : vector<1x128xf32> to vector<8x128xf32>
    %76 = arith.addf %73, %75 : vector<8x128xf32>
    %cst_41 = arith.constant 5.000000e-01 : f32
    %77 = vector.broadcast %cst_41 : f32 to vector<8x128xf32>
    %78 = arith.mulf %77, %76 : vector<8x128xf32>
    %cst_42 = arith.constant 4.471500e-02 : f32
    %79 = vector.broadcast %cst_42 : f32 to vector<8x128xf32>
    %80 = arith.mulf %79, %76 : vector<8x128xf32>
    %81 = arith.mulf %80, %76 : vector<8x128xf32>
    %82 = arith.mulf %81, %76 : vector<8x128xf32>
    %83 = arith.addf %76, %82 : vector<8x128xf32>
    %cst_43 = arith.constant 0.797884583 : f32
    %84 = vector.broadcast %cst_43 : f32 to vector<8x128xf32>
    %85 = arith.mulf %84, %83 : vector<8x128xf32>
    %86 = math.tanh %85 : vector<8x128xf32>
    %cst_44 = arith.constant 1.000000e+00 : f32
    %87 = vector.broadcast %cst_44 : f32 to vector<8x128xf32>
    %88 = arith.addf %87, %86 : vector<8x128xf32>
    %89 = arith.mulf %78, %88 : vector<8x128xf32>
    %c0_45 = arith.constant 0 : index
    %c0_46 = arith.constant 0 : index
    %90 = vector.load %arg16[%c0_45, %c0_46] : memref<128x32xf32, #tpu.memory_space<vmem>>, vector<128x32xf32>
    %cst_47 = arith.constant dense<0.000000e+00> : vector<8x32xf32>
    %91 = tpu.matmul %89, %90, %cst_47 {dimension_numbers = #tpu.dot_dimension_numbers<[1], [0], [0], [1], [0, 0, 1, 1], [], []>} : vector<8x128xf32>, vector<128x32xf32>, vector<8x32xf32> -> vector<8x32xf32>
    %c0_48 = arith.constant 0 : index
    %c0_49 = arith.constant 0 : index
    %92 = vector.load %arg17[%c0_48, %c0_49] : memref<1x32xf32, #tpu.memory_space<vmem>>, vector<1x32xf32>
    %93 = vector.broadcast %92 : vector<1x32xf32> to vector<8x32xf32>
    %94 = arith.addf %91, %93 : vector<8x32xf32>
    %95 = arith.addf %94, %71 : vector<8x32xf32>
    %cst_50 = arith.constant dense<0.000000e+00> : vector<8xf32>
    %96 = vector.multi_reduction <add>, %95, %cst_50 [1] : vector<8x32xf32> to vector<8xf32>
    %97 = vector.shape_cast %96 : vector<8xf32> to vector<8x1xf32>
    %cst_51 = arith.constant 3.200000e+01 : f32
    %98 = vector.broadcast %cst_51 : f32 to vector<8x1xf32>
    %99 = arith.divf %97, %98 : vector<8x1xf32>
    %100 = vector.broadcast %99 : vector<8x1xf32> to vector<8x32xf32>
    %101 = arith.subf %95, %100 : vector<8x32xf32>
    %102 = arith.mulf %101, %101 : vector<8x32xf32>
    %cst_52 = arith.constant dense<0.000000e+00> : vector<8xf32>
    %103 = vector.multi_reduction <add>, %102, %cst_52 [1] : vector<8x32xf32> to vector<8xf32>
    %104 = vector.shape_cast %103 : vector<8xf32> to vector<8x1xf32>
    %cst_53 = arith.constant 3.200000e+01 : f32
    %105 = vector.broadcast %cst_53 : f32 to vector<8x1xf32>
    %106 = arith.divf %104, %105 : vector<8x1xf32>
    %cst_54 = arith.constant 9.99999996E-13 : f32
    %107 = vector.broadcast %cst_54 : f32 to vector<8x1xf32>
    %108 = arith.addf %106, %107 : vector<8x1xf32>
    %109 = math.rsqrt %108 : vector<8x1xf32>
    %110 = vector.broadcast %109 : vector<8x1xf32> to vector<8x32xf32>
    %111 = arith.mulf %101, %110 : vector<8x32xf32>
    %c0_55 = arith.constant 0 : index
    %c0_56 = arith.constant 0 : index
    %112 = vector.load %arg18[%c0_55, %c0_56] : memref<1x32xf32, #tpu.memory_space<vmem>>, vector<1x32xf32>
    %113 = vector.broadcast %112 : vector<1x32xf32> to vector<8x32xf32>
    %114 = arith.mulf %111, %113 : vector<8x32xf32>
    %c0_57 = arith.constant 0 : index
    %c0_58 = arith.constant 0 : index
    %115 = vector.load %arg19[%c0_57, %c0_58] : memref<1x32xf32, #tpu.memory_space<vmem>>, vector<1x32xf32>
    %116 = vector.broadcast %115 : vector<1x32xf32> to vector<8x32xf32>
    %117 = arith.addf %114, %116 : vector<8x32xf32>
    %c0_59 = arith.constant 0 : index
    %c0_60 = arith.constant 0 : index
    %c0_61 = arith.constant 0 : index
    %118 = vector.load %arg20[%c0_59, %c0_60, %c0_61] : memref<1x8x32xf32, #tpu.memory_space<vmem>>, vector<1x8x32xf32>
    %119 = vector.shape_cast %118 : vector<1x8x32xf32> to vector<8x32xf32>
    %120 = vector.shape_cast %117 : vector<8x32xf32> to vector<1x8x32xf32>
    tpu.vector_store %arg20[%c0_59, %c0_60, %c0_61], %120 {strides = array<i32>} : memref<1x8x32xf32, #tpu.memory_space<vmem>>, vector<1x8x32xf32>,
    return
  }
  func.func @transform_0(%arg0: i32, %arg1: i32) -> (i32, i32, i32) {
    %c0_i32 = arith.constant 0 : i32
    %c0_i32_0 = arith.constant 0 : i32
    %c0_i32_1 = arith.constant 0 : i32
    return %arg0, %c0_i32, %c0_i32_0 : i32, i32, i32
  }
  func.func @transform_1(%arg0: i32, %arg1: i32) -> (i32, i32, i32) {
    %c0_i32 = arith.constant 0 : i32
    %c0_i32_0 = arith.constant 0 : i32
    %c0_i32_1 = arith.constant 0 : i32
    return %arg0, %c0_i32, %c0_i32_0 : i32, i32, i32
  }
  func.func @transform_2(%arg0: i32, %arg1: i32) -> (i32, i32) {
    %c0_i32 = arith.constant 0 : i32
    %c0_i32_0 = arith.constant 0 : i32
    %c0_i32_1 = arith.constant 0 : i32
    return %c0_i32, %c0_i32_0 : i32, i32
  }
  func.func @transform_3(%arg0: i32, %arg1: i32) -> (i32, i32) {
    %c0_i32 = arith.constant 0 : i32
    %c0_i32_0 = arith.constant 0 : i32
    %c0_i32_1 = arith.constant 0 : i32
    return %c0_i32, %c0_i32_0 : i32, i32
  }
  func.func @transform_4(%arg0: i32, %arg1: i32) -> (i32, i32) {
    %c0_i32 = arith.constant 0 : i32
    %c0_i32_0 = arith.constant 0 : i32
    %c0_i32_1 = arith.constant 0 : i32
    return %c0_i32, %c0_i32_0 : i32, i32
  }
  func.func @transform_5(%arg0: i32, %arg1: i32) -> (i32, i32) {
    %c0_i32 = arith.constant 0 : i32
    %c0_i32_0 = arith.constant 0 : i32
    %c0_i32_1 = arith.constant 0 : i32
    return %c0_i32, %c0_i32_0 : i32, i32
  }
  func.func @transform_6(%arg0: i32, %arg1: i32) -> (i32, i32) {
    %c0_i32 = arith.constant 0 : i32
    %c0_i32_0 = arith.constant 0 : i32
    %c0_i32_1 = arith.constant 0 : i32
    return %c0_i32, %c0_i32_0 : i32, i32
  }
  func.func @transform_7(%arg0: i32, %arg1: i32) -> (i32, i32) {
    %c0_i32 = arith.constant 0 : i32
    %c0_i32_0 = arith.constant 0 : i32
    %c0_i32_1 = arith.constant 0 : i32
    return %c0_i32, %c0_i32_0 : i32, i32
  }
  func.func @transform_8(%arg0: i32, %arg1: i32) -> (i32, i32, i32) {
    %c0_i32 = arith.constant 0 : i32
    %c0_i32_0 = arith.constant 0 : i32
    %c0_i32_1 = arith.constant 0 : i32
    %c0_i32_2 = arith.constant 0 : i32
    return %c0_i32, %c0_i32_0, %c0_i32_1 : i32, i32, i32
  }
  func.func @transform_9(%arg0: i32, %arg1: i32) -> (i32, i32) {
    %c0_i32 = arith.constant 0 : i32
    %c0_i32_0 = arith.constant 0 : i32
    %c0_i32_1 = arith.constant 0 : i32
    return %c0_i32, %c0_i32_0 : i32, i32
  }
  func.func @transform_10(%arg0: i32, %arg1: i32) -> (i32, i32) {
    %c0_i32 = arith.constant 0 : i32
    %c0_i32_0 = arith.constant 0 : i32
    %c0_i32_1 = arith.constant 0 : i32
    return %c0_i32, %c0_i32_0 : i32, i32
  }
  func.func @transform_11(%arg0: i32, %arg1: i32) -> (i32, i32) {
    %c0_i32 = arith.constant 0 : i32
    %c0_i32_0 = arith.constant 0 : i32
    %c0_i32_1 = arith.constant 0 : i32
    return %c0_i32, %c0_i32_0 : i32, i32
  }
  func.func @transform_12(%arg0: i32, %arg1: i32) -> (i32, i32) {
    %c0_i32 = arith.constant 0 : i32
    %c0_i32_0 = arith.constant 0 : i32
    %c0_i32_1 = arith.constant 0 : i32
    return %c0_i32, %c0_i32_0 : i32, i32
  }
  func.func @transform_13(%arg0: i32, %arg1: i32) -> (i32, i32) {
    %c0_i32 = arith.constant 0 : i32
    %c0_i32_0 = arith.constant 0 : i32
    %c0_i32_1 = arith.constant 0 : i32
    return %c0_i32, %c0_i32_0 : i32, i32
  }
  func.func @transform_14(%arg0: i32, %arg1: i32) -> (i32, i32) {
    %c0_i32 = arith.constant 0 : i32
    %c0_i32_0 = arith.constant 0 : i32
    %c0_i32_1 = arith.constant 0 : i32
    return %c0_i32, %c0_i32_0 : i32, i32
  }
  func.func @transform_15(%arg0: i32, %arg1: i32) -> (i32, i32) {
    %c0_i32 = arith.constant 0 : i32
    %c0_i32_0 = arith.constant 0 : i32
    %c0_i32_1 = arith.constant 0 : i32
    return %c0_i32, %c0_i32_0 : i32, i32
  }
  func.func @transform_16(%arg0: i32, %arg1: i32) -> (i32, i32) {
    %c0_i32 = arith.constant 0 : i32
    %c0_i32_0 = arith.constant 0 : i32
    %c0_i32_1 = arith.constant 0 : i32
    return %c0_i32, %c0_i32_0 : i32, i32
  }
  func.func @transform_17(%arg0: i32, %arg1: i32) -> (i32, i32) {
    %c0_i32 = arith.constant 0 : i32
    %c0_i32_0 = arith.constant 0 : i32
    %c0_i32_1 = arith.constant 0 : i32
    return %c0_i32, %c0_i32_0 : i32, i32
  }
  func.func @transform_18(%arg0: i32, %arg1: i32) -> (i32, i32, i32) {
    %c0_i32 = arith.constant 0 : i32
    %c0_i32_0 = arith.constant 0 : i32
    return %arg0, %arg1, %c0_i32 : i32, i32, i32
  }
}

module attributes {stable_mosaic.version = 11 : i64} {
  func.func @_roberta_layer_kernel(%arg0: i32, %arg1: i32, %arg2: memref<1x8x32xf32, #tpu.memory_space<vmem>>, %arg3: memref<1x1x8xf32, #tpu.memory_space<vmem>>, %arg4: memref<32x32xf32, #tpu.memory_space<vmem>>, %arg5: memref<1x32xf32, #tpu.memory_space<vmem>>, %arg6: memref<32x32xf32, #tpu.memory_space<vmem>>, %arg7: memref<1x32xf32, #tpu.memory_space<vmem>>, %arg8: memref<32x32xf32, #tpu.memory_space<vmem>>, %arg9: memref<1x32xf32, #tpu.memory_space<vmem>>, %arg10: memref<4x8x32xf32, #tpu.memory_space<vmem>>, %arg11: memref<1x32xf32, #tpu.memory_space<vmem>>, %arg12: memref<1x32xf32, #tpu.memory_space<vmem>>, %arg13: memref<1x32xf32, #tpu.memory_space<vmem>>, %arg14: memref<32x128xf32, #tpu.memory_space<vmem>>, %arg15: memref<1x128xf32, #tpu.memory_space<vmem>>, %arg16: memref<128x32xf32, #tpu.memory_space<vmem>>, %arg17: memref<1x32xf32, #tpu.memory_space<vmem>>, %arg18: memref<1x32xf32, #tpu.memory_space<vmem>>, %arg19: memref<1x32xf32, #tpu.memory_space<vmem>>, %arg20: memref<1x8x32xf32, #tpu.memory_space<vmem>>, %arg21: memref<4x8x8xf32, #tpu.memory_space<vmem>>, %arg22: memref<4x8x8xf32, #tpu.memory_space<vmem>>) attributes {dimension_semantics = [#tpu.dimension_semantics<parallel>, #tpu.dimension_semantics<arbitrary>], iteration_bounds = array<i64: 2, 1>, scalar_prefetch = 0 : i64, scratch_operands = 2 : i64, tpu.core_type = #tpu.core_type<tc>, window_params = [{transform_indices = @transform_0, window_bounds = array<i64: 1, 8, 32>}, {transform_indices = @transform_1, window_bounds = array<i64: 1, 1, 8>}, {pipeline_mode = #tpu.pipeline_mode<synchronous>, transform_indices = @transform_2, window_bounds = array<i64: 32, 32>}, {pipeline_mode = #tpu.pipeline_mode<synchronous>, transform_indices = @transform_3, window_bounds = array<i64: 1, 32>}, {pipeline_mode = #tpu.pipeline_mode<synchronous>, transform_indices = @transform_4, window_bounds = array<i64: 32, 32>}, {pipeline_mode = #tpu.pipeline_mode<synchronous>, transform_indices = @transform_5, window_bounds = array<i64: 1, 32>}, {pipeline_mode = #tpu.pipeline_mode<synchronous>, transform_indices = @transform_6, window_bounds = array<i64: 32, 32>}, {pipeline_mode = #tpu.pipeline_mode<synchronous>, transform_indices = @transform_7, window_bounds = array<i64: 1, 32>}, {pipeline_mode = #tpu.pipeline_mode<synchronous>, transform_indices = @transform_8, window_bounds = array<i64: 4, 8, 32>}, {pipeline_mode = #tpu.pipeline_mode<synchronous>, transform_indices = @transform_9, window_bounds = array<i64: 1, 32>}, {pipeline_mode = #tpu.pipeline_mode<synchronous>, transform_indices = @transform_10, window_bounds = array<i64: 1, 32>}, {pipeline_mode = #tpu.pipeline_mode<synchronous>, transform_indices = @transform_11, window_bounds = array<i64: 1, 32>}, {pipeline_mode = #tpu.pipeline_mode<synchronous>, transform_indices = @transform_12, window_bounds = array<i64: 32, 128>}, {pipeline_mode = #tpu.pipeline_mode<synchronous>, transform_indices = @transform_13, window_bounds = array<i64: 1, 128>}, {pipeline_mode = #tpu.pipeline_mode<synchronous>, transform_indices = @transform_14, window_bounds = array<i64: 128, 32>}, {pipeline_mode = #tpu.pipeline_mode<synchronous>, transform_indices = @transform_15, window_bounds = array<i64: 1, 32>}, {pipeline_mode = #tpu.pipeline_mode<synchronous>, transform_indices = @transform_16, window_bounds = array<i64: 1, 32>}, {pipeline_mode = #tpu.pipeline_mode<synchronous>, transform_indices = @transform_17, window_bounds = array<i64: 1, 32>}, {transform_indices = @transform_18, window_bounds = array<i64: 1, 8, 32>}]} {
    %c0_i32 = arith.constant 0 : i32
    %0 = arith.cmpi eq, %arg1, %c0_i32 : i32
    %1 = arith.extui %0 : i1 to i32
    %c0_i32_0 = arith.constant 0 : i32
    %2 = arith.cmpi ne, %1, %c0_i32_0 : i32
    scf.if %2 {
      %c0_62 = arith.constant 0 : index
      %c0_63 = arith.constant 0 : index
      %c0_64 = arith.constant 0 : index
      %121 = vector.load %arg2[%c0_62, %c0_63, %c0_64] : memref<1x8x32xf32, #tpu.memory_space<vmem>>, vector<1x8x32xf32>
      %122 = vector.shape_cast %121 : vector<1x8x32xf32> to vector<8x32xf32>
      %c0_65 = arith.constant 0 : index
      %c0_66 = arith.constant 0 : index
      %123 = vector.load %arg6[%c0_65, %c0_66] : memref<32x32xf32, #tpu.memory_space<vmem>>, vector<32x32xf32>
      %cst_67 = arith.constant dense<0.000000e+00> : vector<8x32xf32>
      %124 = tpu.matmul %122, %123, %cst_67 {dimension_numbers = #tpu.dot_dimension_numbers<[1], [0], [0], [1], [0, 0, 1, 1], [], []>} : vector<8x32xf32>, vector<32x32xf32>, vector<8x32xf32> -> vector<8x32xf32>
      %c0_68 = arith.constant 0 : index
      %c0_69 = arith.constant 0 : index
      %125 = vector.load %arg7[%c0_68, %c0_69] : memref<1x32xf32, #tpu.memory_space<vmem>>, vector<1x32xf32>
      %126 = vector.broadcast %125 : vector<1x32xf32> to vector<8x32xf32>
      %127 = arith.addf %124, %126 : vector<8x32xf32>
      %c0_70 = arith.constant 0 : index
      %c0_71 = arith.constant 0 : index
      %128 = vector.load %arg8[%c0_70, %c0_71] : memref<32x32xf32, #tpu.memory_space<vmem>>, vector<32x32xf32>
      %cst_72 = arith.constant dense<0.000000e+00> : vector<8x32xf32>
      %129 = tpu.matmul %122, %128, %cst_72 {dimension_numbers = #tpu.dot_dimension_numbers<[1], [0], [0], [1], [0, 0, 1, 1], [], []>} : vector<8x32xf32>, vector<32x32xf32>, vector<8x32xf32> -> vector<8x32xf32>
      %c0_73 = arith.constant 0 : index
      %c0_74 = arith.constant 0 : index
      %130 = vector.load %arg9[%c0_73, %c0_74] : memref<1x32xf32, #tpu.memory_space<vmem>>, vector<1x32xf32>
      %131 = vector.broadcast %130 : vector<1x32xf32> to vector<8x32xf32>
      %132 = arith.addf %129, %131 : vector<8x32xf32>
      %133 = vector.extract_strided_slice %127 {offsets = [0, 0], sizes = [8, 8], strides = [1, 1]} : vector<8x32xf32> to vector<8x8xf32>
      %134 = vector.extract_strided_slice %127 {offsets = [0, 8], sizes = [8, 8], strides = [1, 1]} : vector<8x32xf32> to vector<8x8xf32>
      %135 = vector.extract_strided_slice %127 {offsets = [0, 16], sizes = [8, 8], strides = [1, 1]} : vector<8x32xf32> to vector<8x8xf32>
      %136 = vector.extract_strided_slice %127 {offsets = [0, 24], sizes = [8, 8], strides = [1, 1]} : vector<8x32xf32> to vector<8x8xf32>
      %137 = vector.shape_cast %133 : vector<8x8xf32> to vector<1x8x8xf32>
      %138 = vector.shape_cast %134 : vector<8x8xf32> to vector<1x8x8xf32>
      %139 = vector.shape_cast %135 : vector<8x8xf32> to vector<1x8x8xf32>
      %140 = vector.shape_cast %136 : vector<8x8xf32> to vector<1x8x8xf32>
      %141 = tpu.concatenate %137, %138, %139, %140 in 0 : vector<1x8x8xf32>, vector<1x8x8xf32>, vector<1x8x8xf32>, vector<1x8x8xf32> -> vector<4x8x8xf32>
      %c0_75 = arith.constant 0 : index
      %c0_76 = arith.constant 0 : index
      %c0_77 = arith.constant 0 : index
      %142 = vector.load %arg21[%c0_75, %c0_76, %c0_77] : memref<4x8x8xf32, #tpu.memory_space<vmem>>, vector<4x8x8xf32>
      tpu.vector_store %arg21[%c0_75, %c0_76, %c0_77], %141 {strides = array<i32>} : memref<4x8x8xf32, #tpu.memory_space<vmem>>, vector<4x8x8xf32>,
      %143 = vector.extract_strided_slice %132 {offsets = [0, 0], sizes = [8, 8], strides = [1, 1]} : vector<8x32xf32> to vector<8x8xf32>
      %144 = vector.extract_strided_slice %132 {offsets = [0, 8], sizes = [8, 8], strides = [1, 1]} : vector<8x32xf32> to vector<8x8xf32>
      %145 = vector.extract_strided_slice %132 {offsets = [0, 16], sizes = [8, 8], strides = [1, 1]} : vector<8x32xf32> to vector<8x8xf32>
      %146 = vector.extract_strided_slice %132 {offsets = [0, 24], sizes = [8, 8], strides = [1, 1]} : vector<8x32xf32> to vector<8x8xf32>
      %147 = vector.shape_cast %143 : vector<8x8xf32> to vector<1x8x8xf32>
      %148 = vector.shape_cast %144 : vector<8x8xf32> to vector<1x8x8xf32>
      %149 = vector.shape_cast %145 : vector<8x8xf32> to vector<1x8x8xf32>
      %150 = vector.shape_cast %146 : vector<8x8xf32> to vector<1x8x8xf32>
      %151 = tpu.concatenate %147, %148, %149, %150 in 0 : vector<1x8x8xf32>, vector<1x8x8xf32>, vector<1x8x8xf32>, vector<1x8x8xf32> -> vector<4x8x8xf32>
      %c0_78 = arith.constant 0 : index
      %c0_79 = arith.constant 0 : index
      %c0_80 = arith.constant 0 : index
      %152 = vector.load %arg22[%c0_78, %c0_79, %c0_80] : memref<4x8x8xf32, #tpu.memory_space<vmem>>, vector<4x8x8xf32>
      tpu.vector_store %arg22[%c0_78, %c0_79, %c0_80], %151 {strides = array<i32>} : memref<4x8x8xf32, #tpu.memory_space<vmem>>, vector<4x8x8xf32>,
    } else {
    }
    %c8_i32 = arith.constant 8 : i32
    %3 = arith.muli %arg1, %c8_i32 : i32
    %4 = tpu.assume_multiple %3, 8 : i32
    %c0 = arith.constant 0 : index
    %5 = arith.index_cast %4 : i32 to index
    %c0_1 = arith.constant 0 : index
    %6 = vector.load %arg2[%c0, %5, %c0_1] : memref<1x8x32xf32, #tpu.memory_space<vmem>>, vector<1x8x32xf32>
    %7 = vector.shape_cast %6 : vector<1x8x32xf32> to vector<8x32xf32>
    %c0_2 = arith.constant 0 : index
    %c0_3 = arith.constant 0 : index
    %8 = vector.load %arg4[%c0_2, %c0_3] : memref<32x32xf32, #tpu.memory_space<vmem>>, vector<32x32xf32>
    %cst = arith.constant dense<0.000000e+00> : vector<8x32xf32>
    %9 = tpu.matmul %7, %8, %cst {dimension_numbers = #tpu.dot_dimension_numbers<[1], [0], [0], [1], [0, 0, 1, 1], [], []>} : vector<8x32xf32>, vector<32x32xf32>, vector<8x32xf32> -> vector<8x32xf32>
    %c0_4 = arith.constant 0 : index
    %c0_5 = arith.constant 0 : index
    %10 = vector.load %arg5[%c0_4, %c0_5] : memref<1x32xf32, #tpu.memory_space<vmem>>, vector<1x32xf32>
    %11 = vector.broadcast %10 : vector<1x32xf32> to vector<8x32xf32>
    %12 = arith.addf %9, %11 : vector<8x32xf32>
    %cst_6 = arith.constant 0.353553385 : f32
    %13 = vector.broadcast %cst_6 : f32 to vector<8x32xf32>
    %14 = arith.mulf %12, %13 : vector<8x32xf32>
    %15 = vector.extract_strided_slice %14 {offsets = [0, 0], sizes = [8, 8], strides = [1, 1]} : vector<8x32xf32> to vector<8x8xf32>
    %16 = vector.extract_strided_slice %14 {offsets = [0, 8], sizes = [8, 8], strides = [1, 1]} : vector<8x32xf32> to vector<8x8xf32>
    %17 = vector.extract_strided_slice %14 {offsets = [0, 16], sizes = [8, 8], strides = [1, 1]} : vector<8x32xf32> to vector<8x8xf32>
    %18 = vector.extract_strided_slice %14 {offsets = [0, 24], sizes = [8, 8], strides = [1, 1]} : vector<8x32xf32> to vector<8x8xf32>
    %19 = vector.shape_cast %15 : vector<8x8xf32> to vector<1x8x8xf32>
    %20 = vector.shape_cast %16 : vector<8x8xf32> to vector<1x8x8xf32>
    %21 = vector.shape_cast %17 : vector<8x8xf32> to vector<1x8x8xf32>
    %22 = vector.shape_cast %18 : vector<8x8xf32> to vector<1x8x8xf32>
    %23 = tpu.concatenate %19, %20, %21, %22 in 0 : vector<1x8x8xf32>, vector<1x8x8xf32>, vector<1x8x8xf32>, vector<1x8x8xf32> -> vector<4x8x8xf32>
    %c0_7 = arith.constant 0 : index
    %c0_8 = arith.constant 0 : index
    %c0_9 = arith.constant 0 : index
    %24 = vector.load %arg21[%c0_7, %c0_8, %c0_9] : memref<4x8x8xf32, #tpu.memory_space<vmem>>, vector<4x8x8xf32>
    %cst_10 = arith.constant dense<0.000000e+00> : vector<4x8x8xf32>
    %25 = tpu.matmul %23, %24, %cst_10 {dimension_numbers = #tpu.dot_dimension_numbers<[2], [2], [1], [1], [0, 0, 0, 1, 1, 1], [0], [0]>} : vector<4x8x8xf32>, vector<4x8x8xf32>, vector<4x8x8xf32> -> vector<4x8x8xf32>
    %c0_11 = arith.constant 0 : index
    %c0_12 = arith.constant 0 : index
    %c0_13 = arith.constant 0 : index
    %26 = vector.load %arg3[%c0_11, %c0_12, %c0_13] : memref<1x1x8xf32, #tpu.memory_space<vmem>>, vector<1x1x8xf32>
    %27 = vector.shape_cast %26 : vector<1x1x8xf32> to vector<1x8xf32>
    %28 = vector.shape_cast %27 : vector<1x8xf32> to vector<1x1x8xf32>
    %29 = vector.broadcast %28 : vector<1x1x8xf32> to vector<4x8x8xf32>
    %30 = arith.addf %25, %29 : vector<4x8x8xf32>
    %cst_14 = arith.constant dense<0xFF800000> : vector<4x8xf32>
    %31 = vector.multi_reduction <maximumf>, %30, %cst_14 [2] : vector<4x8x8xf32> to vector<4x8xf32>
    %32 = vector.shape_cast %31 : vector<4x8xf32> to vector<4x8x1xf32>
    %33 = vector.broadcast %32 : vector<4x8x1xf32> to vector<4x8x8xf32>
    %34 = arith.subf %30, %33 : vector<4x8x8xf32>
    %35 = math.exp %34 : vector<4x8x8xf32>
    %cst_15 = arith.constant dense<0.000000e+00> : vector<4x8xf32>
    %36 = vector.multi_reduction <add>, %35, %cst_15 [2] : vector<4x8x8xf32> to vector<4x8xf32>
    %37 = vector.shape_cast %36 : vector<4x8xf32> to vector<4x8x1xf32>
    %38 = tpu.reciprocal %37 {approx = true} : vector<4x8x1xf32> -> vector<4x8x1xf32>
    %39 = vector.broadcast %38 : vector<4x8x1xf32> to vector<4x8x8xf32>
    %40 = arith.mulf %35, %39 : vector<4x8x8xf32>
    %c0_16 = arith.constant 0 : index
    %c0_17 = arith.constant 0 : index
    %c0_18 = arith.constant 0 : index
    %41 = vector.load %arg22[%c0_16, %c0_17, %c0_18] : memref<4x8x8xf32, #tpu.memory_space<vmem>>, vector<4x8x8xf32>
    %cst_19 = arith.constant dense<0.000000e+00> : vector<4x8x8xf32>
    %42 = tpu.matmul %40, %41, %cst_19 {dimension_numbers = #tpu.dot_dimension_numbers<[2], [1], [1], [2], [0, 0, 0, 1, 1, 2], [0], [0]>} : vector<4x8x8xf32>, vector<4x8x8xf32>, vector<4x8x8xf32> -> vector<4x8x8xf32>
    %c0_20 = arith.constant 0 : index
    %c0_21 = arith.constant 0 : index
    %c0_22 = arith.constant 0 : index
    %43 = vector.load %arg10[%c0_20, %c0_21, %c0_22] : memref<4x8x32xf32, #tpu.memory_space<vmem>>, vector<4x8x32xf32>
    %cst_23 = arith.constant dense<0.000000e+00> : vector<4x8x32xf32>
    %44 = tpu.matmul %42, %43, %cst_23 {dimension_numbers = #tpu.dot_dimension_numbers<[2], [1], [1], [2], [0, 0, 0, 1, 1, 2], [0], [0]>} : vector<4x8x8xf32>, vector<4x8x32xf32>, vector<4x8x32xf32> -> vector<4x8x32xf32>
    %cst_24 = arith.constant dense<0.000000e+00> : vector<8x32xf32>
    %45 = vector.multi_reduction <add>, %44, %cst_24 [0] : vector<4x8x32xf32> to vector<8x32xf32>
    %c0_25 = arith.constant 0 : index
    %c0_26 = arith.constant 0 : index
    %46 = vector.load %arg11[%c0_25, %c0_26] : memref<1x32xf32, #tpu.memory_space<vmem>>, vector<1x32xf32>
    %47 = vector.broadcast %46 : vector<1x32xf32> to vector<8x32xf32>
    %48 = arith.addf %45, %47 : vector<8x32xf32>
    %49 = arith.addf %48, %7 : vector<8x32xf32>
    %cst_27 = arith.constant dense<0.000000e+00> : vector<8xf32>
    %50 = vector.multi_reduction <add>, %49, %cst_27 [1] : vector<8x32xf32> to vector<8xf32>
    %51 = vector.shape_cast %50 : vector<8xf32> to vector<8x1xf32>
    %cst_28 = arith.constant 3.200000e+01 : f32
    %52 = vector.broadcast %cst_28 : f32 to vector<8x1xf32>
    %53 = arith.divf %51, %52 : vector<8x1xf32>
    %54 = vector.broadcast %53 : vector<8x1xf32> to vector<8x32xf32>
    %55 = arith.subf %49, %54 : vector<8x32xf32>
    %56 = arith.mulf %55, %55 : vector<8x32xf32>
    %cst_29 = arith.constant dense<0.000000e+00> : vector<8xf32>
    %57 = vector.multi_reduction <add>, %56, %cst_29 [1] : vector<8x32xf32> to vector<8xf32>
    %58 = vector.shape_cast %57 : vector<8xf32> to vector<8x1xf32>
    %cst_30 = arith.constant 3.200000e+01 : f32
    %59 = vector.broadcast %cst_30 : f32 to vector<8x1xf32>
    %60 = arith.divf %58, %59 : vector<8x1xf32>
    %cst_31 = arith.constant 9.99999996E-13 : f32
    %61 = vector.broadcast %cst_31 : f32 to vector<8x1xf32>
    %62 = arith.addf %60, %61 : vector<8x1xf32>
    %63 = math.rsqrt %62 : vector<8x1xf32>
    %64 = vector.broadcast %63 : vector<8x1xf32> to vector<8x32xf32>
    %65 = arith.mulf %55, %64 : vector<8x32xf32>
    %c0_32 = arith.constant 0 : index
    %c0_33 = arith.constant 0 : index
    %66 = vector.load %arg12[%c0_32, %c0_33] : memref<1x32xf32, #tpu.memory_space<vmem>>, vector<1x32xf32>
    %67 = vector.broadcast %66 : vector<1x32xf32> to vector<8x32xf32>
    %68 = arith.mulf %65, %67 : vector<8x32xf32>
    %c0_34 = arith.constant 0 : index
    %c0_35 = arith.constant 0 : index
    %69 = vector.load %arg13[%c0_34, %c0_35] : memref<1x32xf32, #tpu.memory_space<vmem>>, vector<1x32xf32>
    %70 = vector.broadcast %69 : vector<1x32xf32> to vector<8x32xf32>
    %71 = arith.addf %68, %70 : vector<8x32xf32>
    %c0_36 = arith.constant 0 : index
    %c0_37 = arith.constant 0 : index
    %72 = vector.load %arg14[%c0_36, %c0_37] : memref<32x128xf32, #tpu.memory_space<vmem>>, vector<32x128xf32>
    %cst_38 = arith.constant dense<0.000000e+00> : vector<8x128xf32>
    %73 = tpu.matmul %71, %72, %cst_38 {dimension_numbers = #tpu.dot_dimension_numbers<[1], [0], [0], [1], [0, 0, 1, 1], [], []>} : vector<8x32xf32>, vector<32x128xf32>, vector<8x128xf32> -> vector<8x128xf32>
    %c0_39 = arith.constant 0 : index
    %c0_40 = arith.constant 0 : index
    %74 = vector.load %arg15[%c0_39, %c0_40] : memref<1x128xf32, #tpu.memory_space<vmem>>, vector<1x128xf32>
    %75 = vector.broadcast %74 : vector<1x128xf32> to vector<8x128xf32>
    %76 = arith.addf %73, %75 : vector<8x128xf32>
    %cst_41 = arith.constant 5.000000e-01 : f32
    %77 = vector.broadcast %cst_41 : f32 to vector<8x128xf32>
    %78 = arith.mulf %77, %76 : vector<8x128xf32>
    %cst_42 = arith.constant 4.471500e-02 : f32
    %79 = vector.broadcast %cst_42 : f32 to vector<8x128xf32>
    %80 = arith.mulf %79, %76 : vector<8x128xf32>
    %81 = arith.mulf %80, %76 : vector<8x128xf32>
    %82 = arith.mulf %81, %76 : vector<8x128xf32>
    %83 = arith.addf %76, %82 : vector<8x128xf32>
    %cst_43 = arith.constant 0.797884583 : f32
    %84 = vector.broadcast %cst_43 : f32 to vector<8x128xf32>
    %85 = arith.mulf %84, %83 : vector<8x128xf32>
    %86 = math.tanh %85 : vector<8x128xf32>
    %cst_44 = arith.constant 1.000000e+00 : f32
    %87 = vector.broadcast %cst_44 : f32 to vector<8x128xf32>
    %88 = arith.addf %87, %86 : vector<8x128xf32>
    %89 = arith.mulf %78, %88 : vector<8x128xf32>
    %c0_45 = arith.constant 0 : index
    %c0_46 = arith.constant 0 : index
    %90 = vector.load %arg16[%c0_45, %c0_46] : memref<128x32xf32, #tpu.memory_space<vmem>>, vector<128x32xf32>
    %cst_47 = arith.constant dense<0.000000e+00> : vector<8x32xf32>
    %91 = tpu.matmul %89, %90, %cst_47 {dimension_numbers = #tpu.dot_dimension_numbers<[1], [0], [0], [1], [0, 0, 1, 1], [], []>} : vector<8x128xf32>, vector<128x32xf32>, vector<8x32xf32> -> vector<8x32xf32>
    %c0_48 = arith.constant 0 : index
    %c0_49 = arith.constant 0 : index
    %92 = vector.load %arg17[%c0_48, %c0_49] : memref<1x32xf32, #tpu.memory_space<vmem>>, vector<1x32xf32>
    %93 = vector.broadcast %92 : vector<1x32xf32> to vector<8x32xf32>
    %94 = arith.addf %91, %93 : vector<8x32xf32>
    %95 = arith.addf %94, %71 : vector<8x32xf32>
    %cst_50 = arith.constant dense<0.000000e+00> : vector<8xf32>
    %96 = vector.multi_reduction <add>, %95, %cst_50 [1] : vector<8x32xf32> to vector<8xf32>
    %97 = vector.shape_cast %96 : vector<8xf32> to vector<8x1xf32>
    %cst_51 = arith.constant 3.200000e+01 : f32
    %98 = vector.broadcast %cst_51 : f32 to vector<8x1xf32>
    %99 = arith.divf %97, %98 : vector<8x1xf32>
    %100 = vector.broadcast %99 : vector<8x1xf32> to vector<8x32xf32>
    %101 = arith.subf %95, %100 : vector<8x32xf32>
    %102 = arith.mulf %101, %101 : vector<8x32xf32>
    %cst_52 = arith.constant dense<0.000000e+00> : vector<8xf32>
    %103 = vector.multi_reduction <add>, %102, %cst_52 [1] : vector<8x32xf32> to vector<8xf32>
    %104 = vector.shape_cast %103 : vector<8xf32> to vector<8x1xf32>
    %cst_53 = arith.constant 3.200000e+01 : f32
    %105 = vector.broadcast %cst_53 : f32 to vector<8x1xf32>
    %106 = arith.divf %104, %105 : vector<8x1xf32>
    %cst_54 = arith.constant 9.99999996E-13 : f32
    %107 = vector.broadcast %cst_54 : f32 to vector<8x1xf32>
    %108 = arith.addf %106, %107 : vector<8x1xf32>
    %109 = math.rsqrt %108 : vector<8x1xf32>
    %110 = vector.broadcast %109 : vector<8x1xf32> to vector<8x32xf32>
    %111 = arith.mulf %101, %110 : vector<8x32xf32>
    %c0_55 = arith.constant 0 : index
    %c0_56 = arith.constant 0 : index
    %112 = vector.load %arg18[%c0_55, %c0_56] : memref<1x32xf32, #tpu.memory_space<vmem>>, vector<1x32xf32>
    %113 = vector.broadcast %112 : vector<1x32xf32> to vector<8x32xf32>
    %114 = arith.mulf %111, %113 : vector<8x32xf32>
    %c0_57 = arith.constant 0 : index
    %c0_58 = arith.constant 0 : index
    %115 = vector.load %arg19[%c0_57, %c0_58] : memref<1x32xf32, #tpu.memory_space<vmem>>, vector<1x32xf32>
    %116 = vector.broadcast %115 : vector<1x32xf32> to vector<8x32xf32>
    %117 = arith.addf %114, %116 : vector<8x32xf32>
    %c0_59 = arith.constant 0 : index
    %c0_60 = arith.constant 0 : index
    %c0_61 = arith.constant 0 : index
    %118 = vector.load %arg20[%c0_59, %c0_60, %c0_61] : memref<1x8x32xf32, #tpu.memory_space<vmem>>, vector<1x8x32xf32>
    %119 = vector.shape_cast %118 : vector<1x8x32xf32> to vector<8x32xf32>
    %120 = vector.shape_cast %117 : vector<8x32xf32> to vector<1x8x32xf32>
    tpu.vector_store %arg20[%c0_59, %c0_60, %c0_61], %120 {strides = array<i32>} : memref<1x8x32xf32, #tpu.memory_space<vmem>>, vector<1x8x32xf32>,
    return
  }
  func.func @transform_0(%arg0: i32, %arg1: i32) -> (i32, i32, i32) {
    %c0_i32 = arith.constant 0 : i32
    %c0_i32_0 = arith.constant 0 : i32
    %c0_i32_1 = arith.constant 0 : i32
    return %arg0, %c0_i32, %c0_i32_0 : i32, i32, i32
  }
  func.func @transform_1(%arg0: i32, %arg1: i32) -> (i32, i32, i32) {
    %c0_i32 = arith.constant 0 : i32
    %c0_i32_0 = arith.constant 0 : i32
    %c0_i32_1 = arith.constant 0 : i32
    return %arg0, %c0_i32, %c0_i32_0 : i32, i32, i32
  }
  func.func @transform_2(%arg0: i32, %arg1: i32) -> (i32, i32) {
    %c0_i32 = arith.constant 0 : i32
    %c0_i32_0 = arith.constant 0 : i32
    %c0_i32_1 = arith.constant 0 : i32
    return %c0_i32, %c0_i32_0 : i32, i32
  }
  func.func @transform_3(%arg0: i32, %arg1: i32) -> (i32, i32) {
    %c0_i32 = arith.constant 0 : i32
    %c0_i32_0 = arith.constant 0 : i32
    %c0_i32_1 = arith.constant 0 : i32
    return %c0_i32, %c0_i32_0 : i32, i32
  }
  func.func @transform_4(%arg0: i32, %arg1: i32) -> (i32, i32) {
    %c0_i32 = arith.constant 0 : i32
    %c0_i32_0 = arith.constant 0 : i32
    %c0_i32_1 = arith.constant 0 : i32
    return %c0_i32, %c0_i32_0 : i32, i32
  }
  func.func @transform_5(%arg0: i32, %arg1: i32) -> (i32, i32) {
    %c0_i32 = arith.constant 0 : i32
    %c0_i32_0 = arith.constant 0 : i32
    %c0_i32_1 = arith.constant 0 : i32
    return %c0_i32, %c0_i32_0 : i32, i32
  }
  func.func @transform_6(%arg0: i32, %arg1: i32) -> (i32, i32) {
    %c0_i32 = arith.constant 0 : i32
    %c0_i32_0 = arith.constant 0 : i32
    %c0_i32_1 = arith.constant 0 : i32
    return %c0_i32, %c0_i32_0 : i32, i32
  }
  func.func @transform_7(%arg0: i32, %arg1: i32) -> (i32, i32) {
    %c0_i32 = arith.constant 0 : i32
    %c0_i32_0 = arith.constant 0 : i32
    %c0_i32_1 = arith.constant 0 : i32
    return %c0_i32, %c0_i32_0 : i32, i32
  }
  func.func @transform_8(%arg0: i32, %arg1: i32) -> (i32, i32, i32) {
    %c0_i32 = arith.constant 0 : i32
    %c0_i32_0 = arith.constant 0 : i32
    %c0_i32_1 = arith.constant 0 : i32
    %c0_i32_2 = arith.constant 0 : i32
    return %c0_i32, %c0_i32_0, %c0_i32_1 : i32, i32, i32
  }
  func.func @transform_9(%arg0: i32, %arg1: i32) -> (i32, i32) {
    %c0_i32 = arith.constant 0 : i32
    %c0_i32_0 = arith.constant 0 : i32
    %c0_i32_1 = arith.constant 0 : i32
    return %c0_i32, %c0_i32_0 : i32, i32
  }
  func.func @transform_10(%arg0: i32, %arg1: i32) -> (i32, i32) {
    %c0_i32 = arith.constant 0 : i32
    %c0_i32_0 = arith.constant 0 : i32
    %c0_i32_1 = arith.constant 0 : i32
    return %c0_i32, %c0_i32_0 : i32, i32
  }
  func.func @transform_11(%arg0: i32, %arg1: i32) -> (i32, i32) {
    %c0_i32 = arith.constant 0 : i32
    %c0_i32_0 = arith.constant 0 : i32
    %c0_i32_1 = arith.constant 0 : i32
    return %c0_i32, %c0_i32_0 : i32, i32
  }
  func.func @transform_12(%arg0: i32, %arg1: i32) -> (i32, i32) {
    %c0_i32 = arith.constant 0 : i32
    %c0_i32_0 = arith.constant 0 : i32
    %c0_i32_1 = arith.constant 0 : i32
    return %c0_i32, %c0_i32_0 : i32, i32
  }
  func.func @transform_13(%arg0: i32, %arg1: i32) -> (i32, i32) {
    %c0_i32 = arith.constant 0 : i32
    %c0_i32_0 = arith.constant 0 : i32
    %c0_i32_1 = arith.constant 0 : i32
    return %c0_i32, %c0_i32_0 : i32, i32
  }
  func.func @transform_14(%arg0: i32, %arg1: i32) -> (i32, i32) {
    %c0_i32 = arith.constant 0 : i32
    %c0_i32_0 = arith.constant 0 : i32
    %c0_i32_1 = arith.constant 0 : i32
    return %c0_i32, %c0_i32_0 : i32, i32
  }
  func.func @transform_15(%arg0: i32, %arg1: i32) -> (i32, i32) {
    %c0_i32 = arith.constant 0 : i32
    %c0_i32_0 = arith.constant 0 : i32
    %c0_i32_1 = arith.constant 0 : i32
    return %c0_i32, %c0_i32_0 : i32, i32
  }
  func.func @transform_16(%arg0: i32, %arg1: i32) -> (i32, i32) {
    %c0_i32 = arith.constant 0 : i32
    %c0_i32_0 = arith.constant 0 : i32
    %c0_i32_1 = arith.constant 0 : i32
    return %c0_i32, %c0_i32_0 : i32, i32
  }
  func.func @transform_17(%arg0: i32, %arg1: i32) -> (i32, i32) {
    %c0_i32 = arith.constant 0 : i32
    %c0_i32_0 = arith.constant 0 : i32
    %c0_i32_1 = arith.constant 0 : i32
    return %c0_i32, %c0_i32_0 : i32, i32
  }
  func.func @transform_18(%arg0: i32, %arg1: i32) -> (i32, i32, i32) {
    %c0_i32 = arith.constant 0 : i32
    %c0_i32_0 = arith.constant 0 : i32
    return %arg0, %arg1, %c0_i32 : i32, i32, i32
  }
}

</mosaic_0001>

<llo_original>
// kernel: tpu_custom_call.1
$region0: #{tpu_custom_call.1}
  #allocation0 [shape = 'u32[]', space=smem, size = 0x4, offset = 0x4, fixed_abs, tag = 'smem constant byte address 0x4 - core index']
  #allocation1 [shape = 'u32[144,128]{1,0:T(1,128)}', space=vmem, size = 0x12000, scoped, tag = 'internal scratch']
  #allocation2 [shape = 'f32[4,8,8]{2,1,0:T(8,128)}', space=vmem, size = 0x4000, scoped, tag = 'scratch operand']
  #allocation3 [shape = 'f32[4,8,8]{2,1,0:T(8,128)}', space=vmem, size = 0x4000, scoped, tag = 'scratch operand']
  %s0 = inlined_call_operand.hbm [shape: f32[2,8,32], index: 0, kind: input, shape index: {}]
  %s1 = inlined_call_operand.vmem [shape: f32[2,1,8], index: 1, kind: input, shape index: {}]
  %s2 = inlined_call_operand.vmem [shape: f32[32,32], index: 2, kind: input, shape index: {}]
  %s3 = inlined_call_operand.vmem [shape: f32[1,32], index: 3, kind: input, shape index: {}]
  %s4 = inlined_call_operand.vmem [shape: f32[32,32], index: 4, kind: input, shape index: {}]
  %s5 = inlined_call_operand.vmem [shape: f32[1,32], index: 5, kind: input, shape index: {}]
  %s6 = inlined_call_operand.vmem [shape: f32[32,32], index: 6, kind: input, shape index: {}]
  %s7 = inlined_call_operand.vmem [shape: f32[1,32], index: 7, kind: input, shape index: {}]
  %s8 = inlined_call_operand.vmem [shape: f32[4,8,32], index: 8, kind: input, shape index: {}]
  %s9 = inlined_call_operand.vmem [shape: f32[1,32], index: 9, kind: input, shape index: {}]
  %s10 = inlined_call_operand.vmem [shape: f32[1,32], index: 10, kind: input, shape index: {}]
  %s11 = inlined_call_operand.vmem [shape: f32[1,32], index: 11, kind: input, shape index: {}]
  %s12 = inlined_call_operand.vmem [shape: f32[32,128], index: 12, kind: input, shape index: {}]
  %s13 = inlined_call_operand.vmem [shape: f32[1,128], index: 13, kind: input, shape index: {}]
  %s14 = inlined_call_operand.vmem [shape: f32[128,32], index: 14, kind: input, shape index: {}]
  %s15 = inlined_call_operand.vmem [shape: f32[1,32], index: 15, kind: input, shape index: {}]
  %s16 = inlined_call_operand.vmem [shape: f32[1,32], index: 16, kind: input, shape index: {}]
  %s17 = inlined_call_operand.vmem [shape: f32[1,32], index: 17, kind: input, shape index: {}]
  %s18 = inlined_call_operand.hbm [shape: f32[2,8,32], index: 18, kind: output, shape index: {}]
  %s19 = sld [smem:[#allocation0]]
  $region113: #{tpu_custom_call.1} parent=0
    _
  %s21 = ssub.s32 1, %s19
  %s22 = scalar_select 0, %s21, %s19
  $region1: #{tpu_custom_call.1} parent=0
    #allocation4 [shape = 'u8[8192]{0}', space=vmem, size = 0x2000, scoped, tag = 'input window, operand 0']
    #allocation5 [shape = 's32[2]{0}', space=sflag, size = 0x8, scoped, tag = 'scoped memory for tpu_custom_call.1']
    #allocation6 [shape = 's32[2]{0}', space=sflag, size = 0x8, scoped, tag = 'scoped memory for tpu_custom_call.1']
    #allocation7 [shape = 'u8[8192]{0}', space=vmem, size = 0x2000, scoped, tag = 'output window, operand 0']
    %23 = vsyncpa [#allocation5], 0
    %s24 = scalar_lea.sflag [#allocation5], 1
    %25 = vsyncpa %s24, 0
    %26 = vsyncpa [#allocation6], 0
    %s27 = scalar_lea.sflag [#allocation6], 1
    %28 = vsyncpa %s27, 0
    loop: start=0, step=1, limit=4
    $region2: #{tpu_custom_call.1} parent=1 // loop_pre_header
      _
    $region3: #{tpu_custom_call.1} parent=1 // loop_header
      %s30 = sphi 0, %s34
      %p31 = scmp.ge.s32.totalorder %s30, 4
      %s37 = sphi 0, %s49
      %s38 = sphi 0, %s45
      %s39 = sphi 0, %s37
      %s40 = sphi 0, %s38
      %s41 = sphi 0, %s39
      %s42 = sphi 0, %s40
      %s52 = sphi 0, %s54
      %s55 = sphi 0, %s52
      %s56 = sphi 0, %s55
      %s72 = sphi 0, %s56
      %s78 = sphi 0, %s80
      %s81 = sphi 0, %s78
      %s82 = sphi 0, %s81
      %s98 = sphi 0, %s82
      %s102 = sphi 0, %s102
      %s104 = sphi 0, %s102
      %s105 = sphi 0, %s104
      %s119 = sphi 0, %s105
      %s123 = sphi 0, %s123
      %s125 = sphi 0, %s123
      %s126 = sphi 0, %s125
      %s140 = sphi 0, %s126
      %s144 = sphi 0, %s144
      %s146 = sphi 0, %s144
      %s147 = sphi 0, %s146
      %s161 = sphi 0, %s147
      %s165 = sphi 0, %s165
      %s167 = sphi 0, %s165
      %s168 = sphi 0, %s167
      %s182 = sphi 0, %s168
      %s186 = sphi 0, %s186
      %s188 = sphi 0, %s186
      %s189 = sphi 0, %s188
      %s203 = sphi 0, %s189
      %s207 = sphi 0, %s207
      %s209 = sphi 0, %s207
      %s210 = sphi 0, %s209
      %s224 = sphi 0, %s210
      %s228 = sphi 0, %s228
      %s230 = sphi 0, %s228
      %s231 = sphi 0, %s230
      %s245 = sphi 0, %s231
      %s249 = sphi 0, %s249
      %s251 = sphi 0, %s249
      %s252 = sphi 0, %s251
      %s266 = sphi 0, %s252
      %s270 = sphi 0, %s270
      %s272 = sphi 0, %s270
      %s273 = sphi 0, %s272
      %s287 = sphi 0, %s273
      %s291 = sphi 0, %s291
      %s293 = sphi 0, %s291
      %s294 = sphi 0, %s293
      %s308 = sphi 0, %s294
      %s312 = sphi 0, %s312
      %s314 = sphi 0, %s312
      %s315 = sphi 0, %s314
      %s329 = sphi 0, %s315
      %s333 = sphi 0, %s333
      %s335 = sphi 0, %s333
      %s336 = sphi 0, %s335
      %s350 = sphi 0, %s336
      %s354 = sphi 0, %s354
      %s356 = sphi 0, %s354
      %s357 = sphi 0, %s356
      %s371 = sphi 0, %s357
      %s375 = sphi 0, %s375
      %s377 = sphi 0, %s375
      %s378 = sphi 0, %s377
      %s392 = sphi 0, %s378
      %s396 = sphi 0, %s396
      %s398 = sphi 0, %s396
      %s399 = sphi 0, %s398
      %s413 = sphi 0, %s399
      %s417 = sphi 0, %s417
      %s419 = sphi 0, %s417
      %s420 = sphi 0, %s419
      %s434 = sphi 0, %s420
      %s442 = sphi 0, %s444
      %s445 = sphi 0, %s442
      %s446 = sphi 0, %s445
      %s462 = sphi 0, %s446
    $region4: #{tpu_custom_call.1} parent=1 // loop_header_branch
      %33 = sbr.rel (%p31) target = $region8
    $region5: #{tpu_custom_call.1} parent=1 // loop_body
      %s35 = ssub.s32 %s30, 1
      %s36 = ssub.s32 %s30, 2
      %s43 = sadd.s32 1, %s38
      %p44 = scmp.ge.s32.totalorder %s43, 1
      %s45 = scalar_select %p44, 0, %s43
      %s46 = sadd.s32 1, %s37
      %s47 = scalar_select %p44, %s46, %s37
      %p48 = scmp.ge.s32.totalorder %s47, 2
      %s49 = scalar_select %p48, 0, %s47
      %s50 = ssub.s32 %s37, %s49
      %p51 = scmp.eq.s32.totalorder %s50, 0
      %s53 = sadd.s32 %s52, 1
      %s54 = scalar_select %p51, %s52, %s53
      %p57 = pneg %p51
      %p58 = scmp.eq.s32.totalorder %s30, 1
      %p59 = por %p57, %p58
      %p60 = scmp.ne.s32.totalorder %s52, %s55
      %p61 = scmp.eq.s32.totalorder %s30, 0
      %p62 = por %p60, %p61
      %p63 = scmp.ne.s32.totalorder %s52, %s55
      %p64 = scmp.eq.s32.totalorder %s35, 1
      %p65 = por %p63, %p64
      %p66 = scmp.ne.s32.totalorder %s55, %s56
      %p67 = scmp.eq.s32.totalorder %s35, 0
      %p68 = por %p66, %p67
      %p69 = scmp.ne.s32.totalorder %s55, %s56
      %p70 = scmp.eq.s32.totalorder %s36, 1
      %p71 = por %p69, %p70
      %p73 = scmp.ne.s32.totalorder %s56, %s72
      %p74 = scmp.eq.s32.totalorder %s36, 0
      %p75 = por %p73, %p74
      %s76 = ssub.s32 %s37, %s49
      %p77 = scmp.eq.s32.totalorder %s76, 0
      %s79 = sadd.s32 %s78, 1
      %s80 = scalar_select %p77, %s78, %s79
      %p83 = pneg %p77
      %p84 = scmp.eq.s32.totalorder %s30, 1
      %p85 = por %p83, %p84
      %p86 = scmp.ne.s32.totalorder %s78, %s81
      %p87 = scmp.eq.s32.totalorder %s30, 0
      %p88 = por %p86, %p87
      %p89 = scmp.ne.s32.totalorder %s78, %s81
      %p90 = scmp.eq.s32.totalorder %s35, 1
      %p91 = por %p89, %p90
      %p92 = scmp.ne.s32.totalorder %s81, %s82
      %p93 = scmp.eq.s32.totalorder %s35, 0
      %p94 = por %p92, %p93
      %p95 = scmp.ne.s32.totalorder %s81, %s82
      %p96 = scmp.eq.s32.totalorder %s36, 1
      %p97 = por %p95, %p96
      %p99 = scmp.ne.s32.totalorder %s82, %s98
      %p100 = scmp.eq.s32.totalorder %s36, 0
      %p101 = por %p99, %p100
      %s103 = sadd.s32 %s102, 1
      %p106 = scmp.eq.s32.totalorder %s30, 1
      %p107 = scmp.ne.s32.totalorder %s102, %s104
      %p108 = scmp.eq.s32.totalorder %s30, 0
      %p109 = por %p107, %p108
      %p110 = scmp.ne.s32.totalorder %s102, %s104
      %p111 = scmp.eq.s32.totalorder %s35, 1
      %p112 = por %p110, %p111
      %p113 = scmp.ne.s32.totalorder %s104, %s105
      %p114 = scmp.eq.s32.totalorder %s35, 0
      %p115 = por %p113, %p114
      %p116 = scmp.ne.s32.totalorder %s104, %s105
      %p117 = scmp.eq.s32.totalorder %s36, 1
      %p118 = por %p116, %p117
      %p120 = scmp.ne.s32.totalorder %s105, %s119
      %p121 = scmp.eq.s32.totalorder %s36, 0
      %p122 = por %p120, %p121
      %s124 = sadd.s32 %s123, 1
      %p127 = scmp.eq.s32.totalorder %s30, 1
      %p128 = scmp.ne.s32.totalorder %s123, %s125
      %p129 = scmp.eq.s32.totalorder %s30, 0
      %p130 = por %p128, %p129
      %p131 = scmp.ne.s32.totalorder %s123, %s125
      %p132 = scmp.eq.s32.totalorder %s35, 1
      %p133 = por %p131, %p132
      %p134 = scmp.ne.s32.totalorder %s125, %s126
      %p135 = scmp.eq.s32.totalorder %s35, 0
      %p136 = por %p134, %p135
      %p137 = scmp.ne.s32.totalorder %s125, %s126
      %p138 = scmp.eq.s32.totalorder %s36, 1
      %p139 = por %p137, %p138
      %p141 = scmp.ne.s32.totalorder %s126, %s140
      %p142 = scmp.eq.s32.totalorder %s36, 0
      %p143 = por %p141, %p142
      %s145 = sadd.s32 %s144, 1
      %p148 = scmp.eq.s32.totalorder %s30, 1
      %p149 = scmp.ne.s32.totalorder %s144, %s146
      %p150 = scmp.eq.s32.totalorder %s30, 0
      %p151 = por %p149, %p150
      %p152 = scmp.ne.s32.totalorder %s144, %s146
      %p153 = scmp.eq.s32.totalorder %s35, 1
      %p154 = por %p152, %p153
      %p155 = scmp.ne.s32.totalorder %s146, %s147
      %p156 = scmp.eq.s32.totalorder %s35, 0
      %p157 = por %p155, %p156
      %p158 = scmp.ne.s32.totalorder %s146, %s147
      %p159 = scmp.eq.s32.totalorder %s36, 1
      %p160 = por %p158, %p159
      %p162 = scmp.ne.s32.totalorder %s147, %s161
      %p163 = scmp.eq.s32.totalorder %s36, 0
      %p164 = por %p162, %p163
      %s166 = sadd.s32 %s165, 1
      %p169 = scmp.eq.s32.totalorder %s30, 1
      %p170 = scmp.ne.s32.totalorder %s165, %s167
      %p171 = scmp.eq.s32.totalorder %s30, 0
      %p172 = por %p170, %p171
      %p173 = scmp.ne.s32.totalorder %s165, %s167
      %p174 = scmp.eq.s32.totalorder %s35, 1
      %p175 = por %p173, %p174
      %p176 = scmp.ne.s32.totalorder %s167, %s168
      %p177 = scmp.eq.s32.totalorder %s35, 0
      %p178 = por %p176, %p177
      %p179 = scmp.ne.s32.totalorder %s167, %s168
      %p180 = scmp.eq.s32.totalorder %s36, 1
      %p181 = por %p179, %p180
      %p183 = scmp.ne.s32.totalorder %s168, %s182
      %p184 = scmp.eq.s32.totalorder %s36, 0
      %p185 = por %p183, %p184
      %s187 = sadd.s32 %s186, 1
      %p190 = scmp.eq.s32.totalorder %s30, 1
      %p191 = scmp.ne.s32.totalorder %s186, %s188
      %p192 = scmp.eq.s32.totalorder %s30, 0
      %p193 = por %p191, %p192
      %p194 = scmp.ne.s32.totalorder %s186, %s188
      %p195 = scmp.eq.s32.totalorder %s35, 1
      %p196 = por %p194, %p195
      %p197 = scmp.ne.s32.totalorder %s188, %s189
      %p198 = scmp.eq.s32.totalorder %s35, 0
      %p199 = por %p197, %p198
      %p200 = scmp.ne.s32.totalorder %s188, %s189
      %p201 = scmp.eq.s32.totalorder %s36, 1
      %p202 = por %p200, %p201
      %p204 = scmp.ne.s32.totalorder %s189, %s203
      %p205 = scmp.eq.s32.totalorder %s36, 0
      %p206 = por %p204, %p205
      %s208 = sadd.s32 %s207, 1
      %p211 = scmp.eq.s32.totalorder %s30, 1
      %p212 = scmp.ne.s32.totalorder %s207, %s209
      %p213 = scmp.eq.s32.totalorder %s30, 0
      %p214 = por %p212, %p213
      %p215 = scmp.ne.s32.totalorder %s207, %s209
      %p216 = scmp.eq.s32.totalorder %s35, 1
      %p217 = por %p215, %p216
      %p218 = scmp.ne.s32.totalorder %s209, %s210
      %p219 = scmp.eq.s32.totalorder %s35, 0
      %p220 = por %p218, %p219
      %p221 = scmp.ne.s32.totalorder %s209, %s210
      %p222 = scmp.eq.s32.totalorder %s36, 1
      %p223 = por %p221, %p222
      %p225 = scmp.ne.s32.totalorder %s210, %s224
      %p226 = scmp.eq.s32.totalorder %s36, 0
      %p227 = por %p225, %p226
      %s229 = sadd.s32 %s228, 1
      %p232 = scmp.eq.s32.totalorder %s30, 1
      %p233 = scmp.ne.s32.totalorder %s228, %s230
      %p234 = scmp.eq.s32.totalorder %s30, 0
      %p235 = por %p233, %p234
      %p236 = scmp.ne.s32.totalorder %s228, %s230
      %p237 = scmp.eq.s32.totalorder %s35, 1
      %p238 = por %p236, %p237
      %p239 = scmp.ne.s32.totalorder %s230, %s231
      %p240 = scmp.eq.s32.totalorder %s35, 0
      %p241 = por %p239, %p240
      %p242 = scmp.ne.s32.totalorder %s230, %s231
      %p243 = scmp.eq.s32.totalorder %s36, 1
      %p244 = por %p242, %p243
      %p246 = scmp.ne.s32.totalorder %s231, %s245
      %p247 = scmp.eq.s32.totalorder %s36, 0
      %p248 = por %p246, %p247
      %s250 = sadd.s32 %s249, 1
      %p253 = scmp.eq.s32.totalorder %s30, 1
      %p254 = scmp.ne.s32.totalorder %s249, %s251
      %p255 = scmp.eq.s32.totalorder %s30, 0
      %p256 = por %p254, %p255
      %p257 = scmp.ne.s32.totalorder %s249, %s251
      %p258 = scmp.eq.s32.totalorder %s35, 1
      %p259 = por %p257, %p258
      %p260 = scmp.ne.s32.totalorder %s251, %s252
      %p261 = scmp.eq.s32.totalorder %s35, 0
      %p262 = por %p260, %p261
      %p263 = scmp.ne.s32.totalorder %s251, %s252
      %p264 = scmp.eq.s32.totalorder %s36, 1
      %p265 = por %p263, %p264
      %p267 = scmp.ne.s32.totalorder %s252, %s266
      %p268 = scmp.eq.s32.totalorder %s36, 0
      %p269 = por %p267, %p268
      %s271 = sadd.s32 %s270, 1
      %p274 = scmp.eq.s32.totalorder %s30, 1
      %p275 = scmp.ne.s32.totalorder %s270, %s272
      %p276 = scmp.eq.s32.totalorder %s30, 0
      %p277 = por %p275, %p276
      %p278 = scmp.ne.s32.totalorder %s270, %s272
      %p279 = scmp.eq.s32.totalorder %s35, 1
      %p280 = por %p278, %p279
      %p281 = scmp.ne.s32.totalorder %s272, %s273
      %p282 = scmp.eq.s32.totalorder %s35, 0
      %p283 = por %p281, %p282
      %p284 = scmp.ne.s32.totalorder %s272, %s273
      %p285 = scmp.eq.s32.totalorder %s36, 1
      %p286 = por %p284, %p285
      %p288 = scmp.ne.s32.totalorder %s273, %s287
      %p289 = scmp.eq.s32.totalorder %s36, 0
      %p290 = por %p288, %p289
      %s292 = sadd.s32 %s291, 1
      %p295 = scmp.eq.s32.totalorder %s30, 1
      %p296 = scmp.ne.s32.totalorder %s291, %s293
      %p297 = scmp.eq.s32.totalorder %s30, 0
      %p298 = por %p296, %p297
      %p299 = scmp.ne.s32.totalorder %s291, %s293
      %p300 = scmp.eq.s32.totalorder %s35, 1
      %p301 = por %p299, %p300
      %p302 = scmp.ne.s32.totalorder %s293, %s294
      %p303 = scmp.eq.s32.totalorder %s35, 0
      %p304 = por %p302, %p303
      %p305 = scmp.ne.s32.totalorder %s293, %s294
      %p306 = scmp.eq.s32.totalorder %s36, 1
      %p307 = por %p305, %p306
      %p309 = scmp.ne.s32.totalorder %s294, %s308
      %p310 = scmp.eq.s32.totalorder %s36, 0
      %p311 = por %p309, %p310
      %s313 = sadd.s32 %s312, 1
      %p316 = scmp.eq.s32.totalorder %s30, 1
      %p317 = scmp.ne.s32.totalorder %s312, %s314
      %p318 = scmp.eq.s32.totalorder %s30, 0
      %p319 = por %p317, %p318
      %p320 = scmp.ne.s32.totalorder %s312, %s314
      %p321 = scmp.eq.s32.totalorder %s35, 1
      %p322 = por %p320, %p321
      %p323 = scmp.ne.s32.totalorder %s314, %s315
      %p324 = scmp.eq.s32.totalorder %s35, 0
      %p325 = por %p323, %p324
      %p326 = scmp.ne.s32.totalorder %s314, %s315
      %p327 = scmp.eq.s32.totalorder %s36, 1
      %p328 = por %p326, %p327
      %p330 = scmp.ne.s32.totalorder %s315, %s329
      %p331 = scmp.eq.s32.totalorder %s36, 0
      %p332 = por %p330, %p331
      %s334 = sadd.s32 %s333, 1
      %p337 = scmp.eq.s32.totalorder %s30, 1
      %p338 = scmp.ne.s32.totalorder %s333, %s335
      %p339 = scmp.eq.s32.totalorder %s30, 0
      %p340 = por %p338, %p339
      %p341 = scmp.ne.s32.totalorder %s333, %s335
      %p342 = scmp.eq.s32.totalorder %s35, 1
      %p343 = por %p341, %p342
      %p344 = scmp.ne.s32.totalorder %s335, %s336
      %p345 = scmp.eq.s32.totalorder %s35, 0
      %p346 = por %p344, %p345
      %p347 = scmp.ne.s32.totalorder %s335, %s336
      %p348 = scmp.eq.s32.totalorder %s36, 1
      %p349 = por %p347, %p348
      %p351 = scmp.ne.s32.totalorder %s336, %s350
      %p352 = scmp.eq.s32.totalorder %s36, 0
      %p353 = por %p351, %p352
      %s355 = sadd.s32 %s354, 1
      %p358 = scmp.eq.s32.totalorder %s30, 1
      %p359 = scmp.ne.s32.totalorder %s354, %s356
      %p360 = scmp.eq.s32.totalorder %s30, 0
      %p361 = por %p359, %p360
      %p362 = scmp.ne.s32.totalorder %s354, %s356
      %p363 = scmp.eq.s32.totalorder %s35, 1
      %p364 = por %p362, %p363
      %p365 = scmp.ne.s32.totalorder %s356, %s357
      %p366 = scmp.eq.s32.totalorder %s35, 0
      %p367 = por %p365, %p366
      %p368 = scmp.ne.s32.totalorder %s356, %s357
      %p369 = scmp.eq.s32.totalorder %s36, 1
      %p370 = por %p368, %p369
      %p372 = scmp.ne.s32.totalorder %s357, %s371
      %p373 = scmp.eq.s32.totalorder %s36, 0
      %p374 = por %p372, %p373
      %s376 = sadd.s32 %s375, 1
      %p379 = scmp.eq.s32.totalorder %s30, 1
      %p380 = scmp.ne.s32.totalorder %s375, %s377
      %p381 = scmp.eq.s32.totalorder %s30, 0
      %p382 = por %p380, %p381
      %p383 = scmp.ne.s32.totalorder %s375, %s377
      %p384 = scmp.eq.s32.totalorder %s35, 1
      %p385 = por %p383, %p384
      %p386 = scmp.ne.s32.totalorder %s377, %s378
      %p387 = scmp.eq.s32.totalorder %s35, 0
      %p388 = por %p386, %p387
      %p389 = scmp.ne.s32.totalorder %s377, %s378
      %p390 = scmp.eq.s32.totalorder %s36, 1
      %p391 = por %p389, %p390
      %p393 = scmp.ne.s32.totalorder %s378, %s392
      %p394 = scmp.eq.s32.totalorder %s36, 0
      %p395 = por %p393, %p394
      %s397 = sadd.s32 %s396, 1
      %p400 = scmp.eq.s32.totalorder %s30, 1
      %p401 = scmp.ne.s32.totalorder %s396, %s398
      %p402 = scmp.eq.s32.totalorder %s30, 0
      %p403 = por %p401, %p402
      %p404 = scmp.ne.s32.totalorder %s396, %s398
      %p405 = scmp.eq.s32.totalorder %s35, 1
      %p406 = por %p404, %p405
      %p407 = scmp.ne.s32.totalorder %s398, %s399
      %p408 = scmp.eq.s32.totalorder %s35, 0
      %p409 = por %p407, %p408
      %p410 = scmp.ne.s32.totalorder %s398, %s399
      %p411 = scmp.eq.s32.totalorder %s36, 1
      %p412 = por %p410, %p411
      %p414 = scmp.ne.s32.totalorder %s399, %s413
      %p415 = scmp.eq.s32.totalorder %s36, 0
      %p416 = por %p414, %p415
      %s418 = sadd.s32 %s417, 1
      %p421 = scmp.eq.s32.totalorder %s30, 1
      %p422 = scmp.ne.s32.totalorder %s417, %s419
      %p423 = scmp.eq.s32.totalorder %s30, 0
      %p424 = por %p422, %p423
      %p425 = scmp.ne.s32.totalorder %s417, %s419
      %p426 = scmp.eq.s32.totalorder %s35, 1
      %p427 = por %p425, %p426
      %p428 = scmp.ne.s32.totalorder %s419, %s420
      %p429 = scmp.eq.s32.totalorder %s35, 0
      %p430 = por %p428, %p429
      %p431 = scmp.ne.s32.totalorder %s419, %s420
      %p432 = scmp.eq.s32.totalorder %s36, 1
      %p433 = por %p431, %p432
      %p435 = scmp.ne.s32.totalorder %s420, %s434
      %p436 = scmp.eq.s32.totalorder %s36, 0
      %p437 = por %p435, %p436
      %s438 = ssub.s32 %s37, %s49
      %s439 = ssub.s32 %s38, %s45
      %s440 = sor.u32 %s438, %s439
      %p441 = scmp.eq.s32.totalorder %s440, 0
      %s443 = sadd.s32 %s442, 1
      %s444 = scalar_select %p441, %s442, %s443
      %p447 = pneg %p441
      %p448 = scmp.eq.s32.totalorder %s30, 1
      %p449 = por %p447, %p448
      %p450 = scmp.ne.s32.totalorder %s442, %s445
      %p451 = scmp.eq.s32.totalorder %s30, 0
      %p452 = por %p450, %p451
      %p453 = scmp.ne.s32.totalorder %s442, %s445
      %p454 = scmp.eq.s32.totalorder %s35, 1
      %p455 = por %p453, %p454
      %p456 = scmp.ne.s32.totalorder %s445, %s446
      %p457 = scmp.eq.s32.totalorder %s35, 0
      %p458 = por %p456, %p457
      %p459 = scmp.ne.s32.totalorder %s445, %s446
      %p460 = scmp.eq.s32.totalorder %s36, 1
      %p461 = por %p459, %p460
      %p463 = scmp.ne.s32.totalorder %s446, %s462
      %p464 = scmp.eq.s32.totalorder %s36, 0
      %p465 = por %p463, %p464
      %p466 = scmp.le.s32.totalorder 1, %s30
      %p467 = scmp.lt.s32.totalorder %s30, 3
      %p468 = pnand %p466, %p467
      %p469 = pneg %p468
      // Predicated region
      $region9: #{tpu_custom_call.1} parent=5 // pred_check
        _
      $region10: #{tpu_custom_call.1} parent=5 // pred_check_branch
        %471 = sbr.rel (%p468) target = $region12
      $region11: #{tpu_custom_call.1} parent=5 // pred_region
        %s472 = ssub.s32 %s30, 1
        // Predicated region
        $region13: #{tpu_custom_call.1} parent=11 // pred_check
          %p473 = pneg %p115
        $region14: #{tpu_custom_call.1} parent=11 // pred_check_branch
          %475 = sbr.rel (%p473) target = $region16
        $region15: #{tpu_custom_call.1} parent=11 // pred_region
          _
        $region16: #{tpu_custom_call.1} parent=11 // pred_fallthru
          _
        // Predicated region
        $region17: #{tpu_custom_call.1} parent=11 // pred_check
          %p476 = pneg %p136
        $region18: #{tpu_custom_call.1} parent=11 // pred_check_branch
          %478 = sbr.rel (%p476) target = $region20
        $region19: #{tpu_custom_call.1} parent=11 // pred_region
          _
        $region20: #{tpu_custom_call.1} parent=11 // pred_fallthru
          _
        // Predicated region
        $region21: #{tpu_custom_call.1} parent=11 // pred_check
          %p479 = pneg %p157
        $region22: #{tpu_custom_call.1} parent=11 // pred_check_branch
          %481 = sbr.rel (%p479) target = $region24
        $region23: #{tpu_custom_call.1} parent=11 // pred_region
          _
        $region24: #{tpu_custom_call.1} parent=11 // pred_fallthru
          _
        // Predicated region
        $region25: #{tpu_custom_call.1} parent=11 // pred_check
          %p482 = pneg %p178
        $region26: #{tpu_custom_call.1} parent=11 // pred_check_branch
          %484 = sbr.rel (%p482) target = $region28
        $region27: #{tpu_custom_call.1} parent=11 // pred_region
          _
        $region28: #{tpu_custom_call.1} parent=11 // pred_fallthru
          _
        // Predicated region
        $region29: #{tpu_custom_call.1} parent=11 // pred_check
          %p485 = pneg %p199
        $region30: #{tpu_custom_call.1} parent=11 // pred_check_branch
          %487 = sbr.rel (%p485) target = $region32
        $region31: #{tpu_custom_call.1} parent=11 // pred_region
          _
        $region32: #{tpu_custom_call.1} parent=11 // pred_fallthru
          _
        // Predicated region
        $region33: #{tpu_custom_call.1} parent=11 // pred_check
          %p488 = pneg %p220
        $region34: #{tpu_custom_call.1} parent=11 // pred_check_branch
          %490 = sbr.rel (%p488) target = $region36
        $region35: #{tpu_custom_call.1} parent=11 // pred_region
          _
        $region36: #{tpu_custom_call.1} parent=11 // pred_fallthru
          _
        // Predicated region
        $region37: #{tpu_custom_call.1} parent=11 // pred_check
          %p491 = pneg %p241
        $region38: #{tpu_custom_call.1} parent=11 // pred_check_branch
          %493 = sbr.rel (%p491) target = $region40
        $region39: #{tpu_custom_call.1} parent=11 // pred_region
          _
        $region40: #{tpu_custom_call.1} parent=11 // pred_fallthru
          _
        // Predicated region
        $region41: #{tpu_custom_call.1} parent=11 // pred_check
          %p494 = pneg %p262
        $region42: #{tpu_custom_call.1} parent=11 // pred_check_branch
          %496 = sbr.rel (%p494) target = $region44
        $region43: #{tpu_custom_call.1} parent=11 // pred_region
          _
        $region44: #{tpu_custom_call.1} parent=11 // pred_fallthru
          _
        // Predicated region
        $region45: #{tpu_custom_call.1} parent=11 // pred_check
          %p497 = pneg %p283
        $region46: #{tpu_custom_call.1} parent=11 // pred_check_branch
          %499 = sbr.rel (%p497) target = $region48
        $region47: #{tpu_custom_call.1} parent=11 // pred_region
          _
        $region48: #{tpu_custom_call.1} parent=11 // pred_fallthru
          _
        // Predicated region
        $region49: #{tpu_custom_call.1} parent=11 // pred_check
          %p500 = pneg %p304
        $region50: #{tpu_custom_call.1} parent=11 // pred_check_branch
          %502 = sbr.rel (%p500) target = $region52
        $region51: #{tpu_custom_call.1} parent=11 // pred_region
          _
        $region52: #{tpu_custom_call.1} parent=11 // pred_fallthru
          _
        // Predicated region
        $region53: #{tpu_custom_call.1} parent=11 // pred_check
          %p503 = pneg %p325
        $region54: #{tpu_custom_call.1} parent=11 // pred_check_branch
          %505 = sbr.rel (%p503) target = $region56
        $region55: #{tpu_custom_call.1} parent=11 // pred_region
          _
        $region56: #{tpu_custom_call.1} parent=11 // pred_fallthru
          _
        // Predicated region
        $region57: #{tpu_custom_call.1} parent=11 // pred_check
          %p506 = pneg %p346
        $region58: #{tpu_custom_call.1} parent=11 // pred_check_branch
          %508 = sbr.rel (%p506) target = $region60
        $region59: #{tpu_custom_call.1} parent=11 // pred_region
          _
        $region60: #{tpu_custom_call.1} parent=11 // pred_fallthru
          _
        // Predicated region
        $region61: #{tpu_custom_call.1} parent=11 // pred_check
          %p509 = pneg %p367
        $region62: #{tpu_custom_call.1} parent=11 // pred_check_branch
          %511 = sbr.rel (%p509) target = $region64
        $region63: #{tpu_custom_call.1} parent=11 // pred_region
          _
        $region64: #{tpu_custom_call.1} parent=11 // pred_fallthru
          _
        // Predicated region
        $region65: #{tpu_custom_call.1} parent=11 // pred_check
          %p512 = pneg %p388
        $region66: #{tpu_custom_call.1} parent=11 // pred_check_branch
          %514 = sbr.rel (%p512) target = $region68
        $region67: #{tpu_custom_call.1} parent=11 // pred_region
          _
        $region68: #{tpu_custom_call.1} parent=11 // pred_fallthru
          _
        // Predicated region
        $region69: #{tpu_custom_call.1} parent=11 // pred_check
          %p515 = pneg %p409
        $region70: #{tpu_custom_call.1} parent=11 // pred_check_branch
          %517 = sbr.rel (%p515) target = $region72
        $region71: #{tpu_custom_call.1} parent=11 // pred_region
          _
        $region72: #{tpu_custom_call.1} parent=11 // pred_fallthru
          _
        // Predicated region
        $region73: #{tpu_custom_call.1} parent=11 // pred_check
          %p518 = pneg %p430
        $region74: #{tpu_custom_call.1} parent=11 // pred_check_branch
          %520 = sbr.rel (%p518) target = $region76
        $region75: #{tpu_custom_call.1} parent=11 // pred_region
          _
        $region76: #{tpu_custom_call.1} parent=11 // pred_fallthru
          _
      $region12: #{tpu_custom_call.1} parent=5 // pred_fallthru
        _
      %p521 = scmp.lt.s32.totalorder %s30, 2
      // Predicated region
      $region77: #{tpu_custom_call.1} parent=5 // pred_check
        %p522 = pneg %p521
      $region78: #{tpu_custom_call.1} parent=5 // pred_check_branch
        %524 = sbr.rel (%p522) target = $region80
      $region79: #{tpu_custom_call.1} parent=5 // pred_region
        // Predicated region
        $region81: #{tpu_custom_call.1} parent=79 // pred_check
          %p525 = pneg %p62
        $region82: #{tpu_custom_call.1} parent=79 // pred_check_branch
          %527 = sbr.rel (%p525) target = $region84
        $region83: #{tpu_custom_call.1} parent=79 // pred_region
          %s528 = sand.u32 %s52, 1
          %s529 = scalar_lea.sflag [#allocation5], %s528
          %s530 = sand.u32 %s52, 1
          %s531 = smul.addr %s530, 8
          %s532 = scalar_lea.vmem [#allocation4], %s531
          %s534 = ssub.s32 128, 128
          %535 = vsyncadd %s529, %s534
          %s536 = smul.addr %s37, 128
          %s537 = scalar_lea.hbm %s0, %s536
          %s539 = sshll.u32 %s532, 4
          %s540 = int_to_ptr.vmem [resolvable:$true] %s539
          %542 = dma.hbm_to_vmem [thread:$0]  %s537, 128, %s540, %s529
        $region84: #{tpu_custom_call.1} parent=79 // pred_fallthru
          _
        // Predicated region
        $region85: #{tpu_custom_call.1} parent=79 // pred_check
          %p543 = pneg %p88
        $region86: #{tpu_custom_call.1} parent=79 // pred_check_branch
          %545 = sbr.rel (%p543) target = $region88
        $region87: #{tpu_custom_call.1} parent=79 // pred_region
          %p546 = scmp.lt.s32.totalorder %s37, 1
          %s547 = scalar_select %p546, %s37, 1
          %s548 = scalar_lea.vmem %s1, %s547
        $region88: #{tpu_custom_call.1} parent=79 // pred_fallthru
          _
      $region80: #{tpu_custom_call.1} parent=5 // pred_fallthru
        _
      %p549 = scmp.le.s32.totalorder 1, %s30
      %p550 = scmp.lt.s32.totalorder %s30, 3
      %p551 = pnand %p549, %p550
      %p552 = pneg %p551
      // Predicated region
      $region89: #{tpu_custom_call.1} parent=5 // pred_check
        _
      $region90: #{tpu_custom_call.1} parent=5 // pred_check_branch
        %554 = sbr.rel (%p551) target = $region92
      $region91: #{tpu_custom_call.1} parent=5 // pred_region
        %s555 = ssub.s32 %s30, 1
        %s556 = sand.u32 %s55, 1
        %s557 = scalar_lea.sflag [#allocation5], %s556
        %s558 = sand.u32 %s55, 1
        %s559 = smul.addr %s558, 8
        %s560 = scalar_lea.vmem [#allocation4], %s559
        // Predicated region
        $region93: #{tpu_custom_call.1} parent=91 // pred_check
          %p561 = pneg %p68
        $region94: #{tpu_custom_call.1} parent=91 // pred_check_branch
          %563 = sbr.rel (%p561) target = $region96
        $region95: #{tpu_custom_call.1} parent=91 // pred_region
          %564 = dma.done %s557, 128
        $region96: #{tpu_custom_call.1} parent=91 // pred_fallthru
          _
        %s565 = sand.u32 %s55, 1
        %s566 = scalar_lea.sflag [#allocation5], %s565
        %s567 = sand.u32 %s55, 1
        %s568 = smul.addr %s567, 8
        %s569 = scalar_lea.vmem [#allocation4], %s568
        %p570 = pneg %p68
        %p571 = pneg %p65
        %p572 = scmp.lt.s32.totalorder %s39, 1
        %s573 = scalar_select %p572, %s39, 1
        %s574 = scalar_lea.vmem %s1, %s573
        %p575 = pneg %p94
        %p576 = pneg %p91
        %p577 = pneg %p115
        %p578 = pneg %p112
        %p579 = pneg %p136
        %p580 = pneg %p133
        %p581 = pneg %p157
        %p582 = pneg %p154
        %p583 = pneg %p178
        %p584 = pneg %p175
        %p585 = pneg %p199
        %p586 = pneg %p196
        %p587 = pneg %p220
        %p588 = pneg %p217
        %p589 = pneg %p241
        %p590 = pneg %p238
        %p591 = pneg %p262
        %p592 = pneg %p259
        %p593 = pneg %p283
        %p594 = pneg %p280
        %p595 = pneg %p304
        %p596 = pneg %p301
        %p597 = pneg %p325
        %p598 = pneg %p322
        %p599 = pneg %p346
        %p600 = pneg %p343
        %p601 = pneg %p367
        %p602 = pneg %p364
        %p603 = pneg %p388
        %p604 = pneg %p385
        %p605 = pneg %p409
        %p606 = pneg %p406
        %p607 = pneg %p430
        %p608 = pneg %p427
        %p609 = pneg %p458
        %p610 = pneg %p455
        %s611 = sand.u32 %s445, 1
        %s612 = scalar_lea.sflag [#allocation6], %s611
        %s613 = sand.u32 %s445, 1
        %s614 = smul.addr %s613, 8
        %s615 = scalar_lea.vmem [#allocation7], %s614
        %p616 = scmp.lt.s32.totalorder %s39, 1
        %s617 = scalar_select %p616, %s39, 1
        %s618 = scalar_lea.vmem %s1, %s617
        %p619 = scmp.eq.s32.totalorder %s40, 0
        // Predicated region
        $region97: #{tpu_custom_call.1} parent=91 // pred_check
          %p620 = pneg %p619
        $region98: #{tpu_custom_call.1} parent=91 // pred_check_branch
          %622 = sbr.rel (%p620) target = $region100
        $region99: #{tpu_custom_call.1} parent=91 // pred_region
          %v623 = vld [vmem:[%s560] sm:$0xff]
          %v624 = vld [vmem:[%s4] sm:$0xff]
          %v625 = vld [vmem:[%s4 + $0x8] sm:$0xff]
          %v626 = vld [vmem:[%s4 + $0x10] sm:$0xff]
          %v627 = vld [vmem:[%s4 + $0x18] sm:$0xff]
          %v628 = vld [vmem:[%s5] sm:$0x1]
          %v630 = vlaneseq
          %v631 = vshrl.u32 %v630, 7
          %v632 = vsub.s32 0, %v631
          %v633 = vrot.slane %v628, %v632
          %vm635 = vcmask 261120
          %v637 = vsel %vm635, %v623, 0
          %639 = vmatprep.subr.mxu0 0.0
          %640 = vmatpush1.msra.mxu0 %v624
          %641 = vmatprep.subr.mxu0 0.0
          %642 = vmatpush1.msra.mxu0 %v625
          %643 = vmatprep.subr.mxu0 0.0
          %644 = vmatpush1.msra.mxu0 %v626
          %645 = vmatprep.subr.mxu0 0.0
          %646 = vmatpush1.msra.mxu0 %v627
          %647 = vmatprep.subr.mxu0 0.0
          %648 = vmatpush1.msra.mxu0 0.0
          %649 = vmatprep.subr.mxu0 0.0
          %650 = vmatpush1.msra.mxu0 0.0
          %651 = vmatprep.subr.mxu0 0.0
          %652 = vmatpush1.msra.mxu0 0.0
          %653 = vmatprep.subr.mxu0 0.0
          %654 = vmatpush1.msra.mxu0 0.0
          %655 = vmatprep.subr.mxu0 0.0
          %656 = vmatpush1.msra.mxu0 0.0
          %657 = vmatprep.subr.mxu0 0.0
          %658 = vmatpush1.msra.mxu0 0.0
          %659 = vmatprep.subr.mxu0 0.0
          %660 = vmatpush1.msra.mxu0 0.0
          %661 = vmatprep.subr.mxu0 0.0
          %662 = vmatpush1.msra.mxu0 0.0
          %663 = vmatprep.subr.mxu0 0.0
          %664 = vmatpush1.msra.mxu0 0.0
          %665 = vmatprep.subr.mxu0 0.0
          %666 = vmatpush1.msra.mxu0 0.0
          %667 = vmatprep.subr.mxu0 0.0
          %668 = vmatpush1.msra.mxu0 0.0
          %669 = vmatprep.subr.mxu0 0.0
          %670 = vmatpush1.msra.mxu0 0.0
          %671 = vmatprep.subr.mxu0 0.0
          %672 = vmatpush1.msra.mxu0 0.0
          %673 = vmatprep.subr.mxu0 0.0
          %674 = vmatpush1.msra.mxu0 0.0
          %675 = vmatprep.subr.mxu0 0.0
          %676 = vmatpush1.msra.mxu0 0.0
          %677 = vmatprep.subr.mxu0 0.0
          %678 = vmatpush1.msra.mxu0 0.0
          %679 = vmatprep.subr.mxu0 0.0
          %680 = vmatpush1.msra.mxu0 0.0
          %681 = vmatprep.subr.mxu0 0.0
          %682 = vmatpush1.msra.mxu0 0.0
          %683 = vmatprep.subr.mxu0 0.0
          %684 = vmatpush1.msra.mxu0 0.0
          %685 = vmatprep.subr.mxu0 0.0
          %686 = vmatpush1.msra.mxu0 0.0
          %687 = vmatprep.subr.mxu0 0.0
          %688 = vmatpush1.msra.mxu0 0.0
          %689 = vmatprep.subr.mxu0 0.0
          %690 = vmatpush1.msra.mxu0 0.0
          %691 = vmatprep.subr.mxu0 0.0
          %692 = vmatpush1.msra.mxu0 0.0
          %693 = vmatprep.subr.mxu0 0.0
          %694 = vmatpush1.msra.mxu0 0.0
          %695 = vmatprep.subr.mxu0 0.0
          %696 = vmatpush1.msra.mxu0 0.0
          %697 = vmatprep.subr.mxu0 0.0
          %698 = vmatpush1.msra.mxu0 0.0
          %699 = vmatprep.subr.mxu0 0.0
          %700 = vmatpush1.msra.mxu0 0.0
          %701 = vmatprep.subr.mxu0 0.0
          %702 = vmatpush1.msra.mxu0 0.0
          %703 = vmatprep.mubr.f32.mxu0 0.0
          %704 = vmatmul.mubr.f32.gmra.mrb[0].mxu0 %v637
          %v705 = vpop.f32.mrb[0].mxu0
          %v706 = vadd.f32 %v633, %v705
          %v707 = vpop.f32.mrb[0].mxu0
          %708 = vdwg.mxu0
          %v709 = vld [vmem:[%s6] sm:$0xff]
          %v710 = vld [vmem:[%s6 + $0x8] sm:$0xff]
          %v711 = vld [vmem:[%s6 + $0x10] sm:$0xff]
          %v712 = vld [vmem:[%s6 + $0x18] sm:$0xff]
          %v713 = vld [vmem:[%s7] sm:$0x1]
          %v715 = vlaneseq
          %v716 = vshrl.u32 %v715, 7
          %v717 = vsub.s32 0, %v716
          %v718 = vrot.slane %v713, %v717
          %720 = vmatprep.subr.mxu0 0.0
          %721 = vmatpush1.msra.mxu0 %v709
          %722 = vmatprep.subr.mxu0 0.0
          %723 = vmatpush1.msra.mxu0 %v710
          %724 = vmatprep.subr.mxu0 0.0
          %725 = vmatpush1.msra.mxu0 %v711
          %726 = vmatprep.subr.mxu0 0.0
          %727 = vmatpush1.msra.mxu0 %v712
          %728 = vmatprep.subr.mxu0 0.0
          %729 = vmatpush1.msra.mxu0 0.0
          %730 = vmatprep.subr.mxu0 0.0
          %731 = vmatpush1.msra.mxu0 0.0
          %732 = vmatprep.subr.mxu0 0.0
          %733 = vmatpush1.msra.mxu0 0.0
          %734 = vmatprep.subr.mxu0 0.0
          %735 = vmatpush1.msra.mxu0 0.0
          %736 = vmatprep.subr.mxu0 0.0
          %737 = vmatpush1.msra.mxu0 0.0
          %738 = vmatprep.subr.mxu0 0.0
          %739 = vmatpush1.msra.mxu0 0.0
          %740 = vmatprep.subr.mxu0 0.0
          %741 = vmatpush1.msra.mxu0 0.0
          %742 = vmatprep.subr.mxu0 0.0
          %743 = vmatpush1.msra.mxu0 0.0
          %744 = vmatprep.subr.mxu0 0.0
          %745 = vmatpush1.msra.mxu0 0.0
          %746 = vmatprep.subr.mxu0 0.0
          %747 = vmatpush1.msra.mxu0 0.0
          %748 = vmatprep.subr.mxu0 0.0
          %749 = vmatpush1.msra.mxu0 0.0
          %750 = vmatprep.subr.mxu0 0.0
          %751 = vmatpush1.msra.mxu0 0.0
          %752 = vmatprep.subr.mxu0 0.0
          %753 = vmatpush1.msra.mxu0 0.0
          %754 = vmatprep.subr.mxu0 0.0
          %755 = vmatpush1.msra.mxu0 0.0
          %756 = vmatprep.subr.mxu0 0.0
          %757 = vmatpush1.msra.mxu0 0.0
          %758 = vmatprep.subr.mxu0 0.0
          %759 = vmatpush1.msra.mxu0 0.0
          %760 = vmatprep.subr.mxu0 0.0
          %761 = vmatpush1.msra.mxu0 0.0
          %762 = vmatprep.subr.mxu0 0.0
          %763 = vmatpush1.msra.mxu0 0.0
          %764 = vmatprep.subr.mxu0 0.0
          %765 = vmatpush1.msra.mxu0 0.0
          %766 = vmatprep.subr.mxu0 0.0
          %767 = vmatpush1.msra.mxu0 0.0
          %768 = vmatprep.subr.mxu0 0.0
          %769 = vmatpush1.msra.mxu0 0.0
          %770 = vmatprep.subr.mxu0 0.0
          %771 = vmatpush1.msra.mxu0 0.0
          %772 = vmatprep.subr.mxu0 0.0
          %773 = vmatpush1.msra.mxu0 0.0
          %774 = vmatprep.subr.mxu0 0.0
          %775 = vmatpush1.msra.mxu0 0.0
          %776 = vmatprep.subr.mxu0 0.0
          %777 = vmatpush1.msra.mxu0 0.0
          %778 = vmatprep.subr.mxu0 0.0
          %779 = vmatpush1.msra.mxu0 0.0
          %780 = vmatprep.subr.mxu0 0.0
          %781 = vmatpush1.msra.mxu0 0.0
          %782 = vmatprep.subr.mxu0 0.0
          %783 = vmatpush1.msra.mxu0 0.0
          %784 = vmatprep.mubr.f32.mxu0 0.0
          %785 = vmatmul.mubr.f32.gmra.mrb[0].mxu0 %v637
          %v786 = vpop.f32.mrb[0].mxu0
          %v787 = vadd.f32 %v718, %v786
          %v788 = vpop.f32.mrb[0].mxu0
          %789 = vdwg.mxu0
          %791 = vrot.lane.b32.xlu0 %v706, 120
          %v792 = vpop.permute.xlu0 %791
          %794 = vrot.lane.b32.xlu0 %v706, 112
          %v795 = vpop.permute.xlu0 %794
          %797 = vrot.lane.b32.xlu0 %v706, 104
          %v798 = vpop.permute.xlu0 %797
          %vm800 = vcmask 64512
          %801 = vst.msk [vmem:[#allocation2] sm:$0xff] %vm800, %v706
          %802 = vst.msk [vmem:[#allocation2 + $0x8] sm:$0xff] %vm800, %v792
          %803 = vst.msk [vmem:[#allocation2 + $0x10] sm:$0xff] %vm800, %v795
          %804 = vst.msk [vmem:[#allocation2 + $0x18] sm:$0xff] %vm800, %v798
          %806 = vrot.lane.b32.xlu0 %v787, 120
          %v807 = vpop.permute.xlu0 %806
          %809 = vrot.lane.b32.xlu0 %v787, 112
          %v810 = vpop.permute.xlu0 %809
          %812 = vrot.lane.b32.xlu0 %v787, 104
          %v813 = vpop.permute.xlu0 %812
          %815 = vst.msk [vmem:[#allocation3] sm:$0xff] %vm800, %v787
          %816 = vst.msk [vmem:[#allocation3 + $0x8] sm:$0xff] %vm800, %v807
          %817 = vst.msk [vmem:[#allocation3 + $0x10] sm:$0xff] %vm800, %v810
          %818 = vst.msk [vmem:[#allocation3 + $0x18] sm:$0xff] %vm800, %v813
        $region100: #{tpu_custom_call.1} parent=91 // pred_fallthru
          _
        %s819 = smul.u32 %s40, 8
        %s820 = scalar_lea.vmem %s560, %s819 [#allocation4]
        %v821 = vld [vmem:[%s820] sm:$0xff]
        %v822 = vld [vmem:[%s2] sm:$0xff]
        %v823 = vld [vmem:[%s2 + $0x8] sm:$0xff]
        %v824 = vld [vmem:[%s2 + $0x10] sm:$0xff]
        %v825 = vld [vmem:[%s2 + $0x18] sm:$0xff]
        %v826 = vld [vmem:[%s3] sm:$0x1]
        %v828 = vlaneseq
        %v829 = vshrl.u32 %v828, 7
        %v830 = vsub.s32 0, %v829
        %v831 = vrot.slane %v826, %v830
        %vm833 = vcmask 261120
        %v835 = vsel %vm833, %v821, 0
        %837 = vmatprep.subr.mxu0 0.0
        %838 = vmatpush1.msra.mxu0 %v822
        %839 = vmatprep.subr.mxu0 0.0
        %840 = vmatpush1.msra.mxu0 %v823
        %841 = vmatprep.subr.mxu0 0.0
        %842 = vmatpush1.msra.mxu0 %v824
        %843 = vmatprep.subr.mxu0 0.0
        %844 = vmatpush1.msra.mxu0 %v825
        %845 = vmatprep.subr.mxu0 0.0
        %846 = vmatpush1.msra.mxu0 0.0
        %847 = vmatprep.subr.mxu0 0.0
        %848 = vmatpush1.msra.mxu0 0.0
        %849 = vmatprep.subr.mxu0 0.0
        %850 = vmatpush1.msra.mxu0 0.0
        %851 = vmatprep.subr.mxu0 0.0
        %852 = vmatpush1.msra.mxu0 0.0
        %853 = vmatprep.subr.mxu0 0.0
        %854 = vmatpush1.msra.mxu0 0.0
        %855 = vmatprep.subr.mxu0 0.0
        %856 = vmatpush1.msra.mxu0 0.0
        %857 = vmatprep.subr.mxu0 0.0
        %858 = vmatpush1.msra.mxu0 0.0
        %859 = vmatprep.subr.mxu0 0.0
        %860 = vmatpush1.msra.mxu0 0.0
        %861 = vmatprep.subr.mxu0 0.0
        %862 = vmatpush1.msra.mxu0 0.0
        %863 = vmatprep.subr.mxu0 0.0
        %864 = vmatpush1.msra.mxu0 0.0
        %865 = vmatprep.subr.mxu0 0.0
        %866 = vmatpush1.msra.mxu0 0.0
        %867 = vmatprep.subr.mxu0 0.0
        %868 = vmatpush1.msra.mxu0 0.0
        %869 = vmatprep.subr.mxu0 0.0
        %870 = vmatpush1.msra.mxu0 0.0
        %871 = vmatprep.subr.mxu0 0.0
        %872 = vmatpush1.msra.mxu0 0.0
        %873 = vmatprep.subr.mxu0 0.0
        %874 = vmatpush1.msra.mxu0 0.0
        %875 = vmatprep.subr.mxu0 0.0
        %876 = vmatpush1.msra.mxu0 0.0
        %877 = vmatprep.subr.mxu0 0.0
        %878 = vmatpush1.msra.mxu0 0.0
        %879 = vmatprep.subr.mxu0 0.0
        %880 = vmatpush1.msra.mxu0 0.0
        %881 = vmatprep.subr.mxu0 0.0
        %882 = vmatpush1.msra.mxu0 0.0
        %883 = vmatprep.subr.mxu0 0.0
        %884 = vmatpush1.msra.mxu0 0.0
        %885 = vmatprep.subr.mxu0 0.0
        %886 = vmatpush1.msra.mxu0 0.0
        %887 = vmatprep.subr.mxu0 0.0
        %888 = vmatpush1.msra.mxu0 0.0
        %889 = vmatprep.subr.mxu0 0.0
        %890 = vmatpush1.msra.mxu0 0.0
        %891 = vmatprep.subr.mxu0 0.0
        %892 = vmatpush1.msra.mxu0 0.0
        %893 = vmatprep.subr.mxu0 0.0
        %894 = vmatpush1.msra.mxu0 0.0
        %895 = vmatprep.subr.mxu0 0.0
        %896 = vmatpush1.msra.mxu0 0.0
        %897 = vmatprep.subr.mxu0 0.0
        %898 = vmatpush1.msra.mxu0 0.0
        %899 = vmatprep.subr.mxu0 0.0
        %900 = vmatpush1.msra.mxu0 0.0
        %901 = vmatprep.mubr.f32.mxu0 0.0
        %902 = vmatmul.mubr.f32.gmra.mrb[0].mxu0 %v835
        %v903 = vpop.f32.mrb[0].mxu0
        %v904 = vadd.f32 %v831, %v903
        %v905 = vpop.f32.mrb[0].mxu0
        %906 = vdwg.mxu0
        %v907 = vmul.f32 %v904, 0.35355338
        %909 = vrot.lane.b32.xlu0 %v907, 120
        %v910 = vpop.permute.xlu0 %909
        %911 = vrot.lane.b32.xlu0 %v907, 112
        %v912 = vpop.permute.xlu0 %911
        %913 = vrot.lane.b32.xlu0 %v907, 104
        %v914 = vpop.permute.xlu0 %913
        %v915 = vld [vmem:[#allocation2] sm:$0xff]
        %v916 = vld [vmem:[#allocation2 + $0x8] sm:$0xff]
        %v917 = vld [vmem:[#allocation2 + $0x10] sm:$0xff]
        %v918 = vld [vmem:[#allocation2 + $0x18] sm:$0xff]
        %v919 = vld [vmem:[%s618] sm:$0x1]
        %v921 = vlaneseq
        %v922 = vshrl.u32 %v921, 7
        %v923 = vsub.s32 0, %v922
        %v924 = vrot.slane %v919, %v923
        %vm926 = vcmask 64512
        %v927 = vsel %vm926, %v907, 0
        %v930 = vsel %vm926, %v915, 0
        %932 = vmatprep.subr.mxu0 0.0
        %933 = vmatpush1.xpose.msra.mxu0 %v930
        %934 = vmatprep.subr.mxu0 0.0
        %935 = vmatpush1.xpose.msra.mxu0 0.0
        %936 = vmatprep.subr.mxu0 0.0
        %937 = vmatpush1.xpose.msra.mxu0 0.0
        %938 = vmatprep.subr.mxu0 0.0
        %939 = vmatpush1.xpose.msra.mxu0 0.0
        %940 = vmatprep.subr.mxu0 0.0
        %941 = vmatpush1.xpose.msra.mxu0 0.0
        %942 = vmatprep.subr.mxu0 0.0
        %943 = vmatpush1.xpose.msra.mxu0 0.0
        %944 = vmatprep.subr.mxu0 0.0
        %945 = vmatpush1.xpose.msra.mxu0 0.0
        %946 = vmatprep.subr.mxu0 0.0
        %947 = vmatpush1.xpose.msra.mxu0 0.0
        %948 = vmatprep.subr.mxu0 0.0
        %949 = vmatpush1.xpose.msra.mxu0 0.0
        %950 = vmatprep.subr.mxu0 0.0
        %951 = vmatpush1.xpose.msra.mxu0 0.0
        %952 = vmatprep.subr.mxu0 0.0
        %953 = vmatpush1.xpose.msra.mxu0 0.0
        %954 = vmatprep.subr.mxu0 0.0
        %955 = vmatpush1.xpose.msra.mxu0 0.0
        %956 = vmatprep.subr.mxu0 0.0
        %957 = vmatpush1.xpose.msra.mxu0 0.0
        %958 = vmatprep.subr.mxu0 0.0
        %959 = vmatpush1.xpose.msra.mxu0 0.0
        %960 = vmatprep.subr.mxu0 0.0
        %961 = vmatpush1.xpose.msra.mxu0 0.0
        %962 = vmatprep.subr.mxu0 0.0
        %963 = vmatpush1.xpose.msra.mxu0 0.0
        %964 = vmatprep.subr.mxu0 0.0
        %965 = vmatpush1.xpose.msra.mxu0 0.0
        %966 = vmatprep.subr.mxu0 0.0
        %967 = vmatpush1.xpose.msra.mxu0 0.0
        %968 = vmatprep.subr.mxu0 0.0
        %969 = vmatpush1.xpose.msra.mxu0 0.0
        %970 = vmatprep.subr.mxu0 0.0
        %971 = vmatpush1.xpose.msra.mxu0 0.0
        %972 = vmatprep.subr.mxu0 0.0
        %973 = vmatpush1.xpose.msra.mxu0 0.0
        %974 = vmatprep.subr.mxu0 0.0
        %975 = vmatpush1.xpose.msra.mxu0 0.0
        %976 = vmatprep.subr.mxu0 0.0
        %977 = vmatpush1.xpose.msra.mxu0 0.0
        %978 = vmatprep.subr.mxu0 0.0
        %979 = vmatpush1.xpose.msra.mxu0 0.0
        %980 = vmatprep.subr.mxu0 0.0
        %981 = vmatpush1.xpose.msra.mxu0 0.0
        %982 = vmatprep.subr.mxu0 0.0
        %983 = vmatpush1.xpose.msra.mxu0 0.0
        %984 = vmatprep.subr.mxu0 0.0
        %985 = vmatpush1.xpose.msra.mxu0 0.0
        %986 = vmatprep.subr.mxu0 0.0
        %987 = vmatpush1.xpose.msra.mxu0 0.0
        %988 = vmatprep.subr.mxu0 0.0
        %989 = vmatpush1.xpose.msra.mxu0 0.0
        %990 = vmatprep.subr.mxu0 0.0
        %991 = vmatpush1.xpose.msra.mxu0 0.0
        %992 = vmatprep.subr.mxu0 0.0
        %993 = vmatpush1.xpose.msra.mxu0 0.0
        %994 = vmatprep.subr.mxu0 0.0
        %995 = vmatpush1.xpose.msra.mxu0 0.0
        %996 = vmatprep.mubr.f32.mxu0 0.0
        %997 = vmatmul.mubr.f32.gmra.mrb[0].mxu0 %v927
        %v998 = vpop.f32.mrb[0].mxu0
        %v999 = vadd.f32 %v924, %v998
        %v1000 = vpop.f32.mrb[0].mxu0
        %1001 = vdwg.mxu0
        %v1002 = vsel %vm926, %v910, 0
        %v1005 = vsel %vm926, %v916, 0
        %1007 = vmatprep.subr.mxu0 0.0
        %1008 = vmatpush1.xpose.msra.mxu0 %v1005
        %1009 = vmatprep.subr.mxu0 0.0
        %1010 = vmatpush1.xpose.msra.mxu0 0.0
        %1011 = vmatprep.subr.mxu0 0.0
        %1012 = vmatpush1.xpose.msra.mxu0 0.0
        %1013 = vmatprep.subr.mxu0 0.0
        %1014 = vmatpush1.xpose.msra.mxu0 0.0
        %1015 = vmatprep.subr.mxu0 0.0
        %1016 = vmatpush1.xpose.msra.mxu0 0.0
        %1017 = vmatprep.subr.mxu0 0.0
        %1018 = vmatpush1.xpose.msra.mxu0 0.0
        %1019 = vmatprep.subr.mxu0 0.0
        %1020 = vmatpush1.xpose.msra.mxu0 0.0
        %1021 = vmatprep.subr.mxu0 0.0
        %1022 = vmatpush1.xpose.msra.mxu0 0.0
        %1023 = vmatprep.subr.mxu0 0.0
        %1024 = vmatpush1.xpose.msra.mxu0 0.0
        %1025 = vmatprep.subr.mxu0 0.0
        %1026 = vmatpush1.xpose.msra.mxu0 0.0
        %1027 = vmatprep.subr.mxu0 0.0
        %1028 = vmatpush1.xpose.msra.mxu0 0.0
        %1029 = vmatprep.subr.mxu0 0.0
        %1030 = vmatpush1.xpose.msra.mxu0 0.0
        %1031 = vmatprep.subr.mxu0 0.0
        %1032 = vmatpush1.xpose.msra.mxu0 0.0
        %1033 = vmatprep.subr.mxu0 0.0
        %1034 = vmatpush1.xpose.msra.mxu0 0.0
        %1035 = vmatprep.subr.mxu0 0.0
        %1036 = vmatpush1.xpose.msra.mxu0 0.0
        %1037 = vmatprep.subr.mxu0 0.0
        %1038 = vmatpush1.xpose.msra.mxu0 0.0
        %1039 = vmatprep.subr.mxu0 0.0
        %1040 = vmatpush1.xpose.msra.mxu0 0.0
        %1041 = vmatprep.subr.mxu0 0.0
        %1042 = vmatpush1.xpose.msra.mxu0 0.0
        %1043 = vmatprep.subr.mxu0 0.0
        %1044 = vmatpush1.xpose.msra.mxu0 0.0
        %1045 = vmatprep.subr.mxu0 0.0
        %1046 = vmatpush1.xpose.msra.mxu0 0.0
        %1047 = vmatprep.subr.mxu0 0.0
        %1048 = vmatpush1.xpose.msra.mxu0 0.0
        %1049 = vmatprep.subr.mxu0 0.0
        %1050 = vmatpush1.xpose.msra.mxu0 0.0
        %1051 = vmatprep.subr.mxu0 0.0
        %1052 = vmatpush1.xpose.msra.mxu0 0.0
        %1053 = vmatprep.subr.mxu0 0.0
        %1054 = vmatpush1.xpose.msra.mxu0 0.0
        %1055 = vmatprep.subr.mxu0 0.0
        %1056 = vmatpush1.xpose.msra.mxu0 0.0
        %1057 = vmatprep.subr.mxu0 0.0
        %1058 = vmatpush1.xpose.msra.mxu0 0.0
        %1059 = vmatprep.subr.mxu0 0.0
        %1060 = vmatpush1.xpose.msra.mxu0 0.0
        %1061 = vmatprep.subr.mxu0 0.0
        %1062 = vmatpush1.xpose.msra.mxu0 0.0
        %1063 = vmatprep.subr.mxu0 0.0
        %1064 = vmatpush1.xpose.msra.mxu0 0.0
        %1065 = vmatprep.subr.mxu0 0.0
        %1066 = vmatpush1.xpose.msra.mxu0 0.0
        %1067 = vmatprep.subr.mxu0 0.0
        %1068 = vmatpush1.xpose.msra.mxu0 0.0
        %1069 = vmatprep.subr.mxu0 0.0
        %1070 = vmatpush1.xpose.msra.mxu0 0.0
        %1071 = vmatprep.mubr.f32.mxu0 0.0
        %1072 = vmatmul.mubr.f32.gmra.mrb[0].mxu0 %v1002
        %v1073 = vpop.f32.mrb[0].mxu0
        %v1074 = vadd.f32 %v924, %v1073
        %v1075 = vpop.f32.mrb[0].mxu0
        %1076 = vdwg.mxu0
        %v1077 = vsel %vm926, %v912, 0
        %v1080 = vsel %vm926, %v917, 0
        %1082 = vmatprep.subr.mxu0 0.0
        %1083 = vmatpush1.xpose.msra.mxu0 %v1080
        %1084 = vmatprep.subr.mxu0 0.0
        %1085 = vmatpush1.xpose.msra.mxu0 0.0
        %1086 = vmatprep.subr.mxu0 0.0
        %1087 = vmatpush1.xpose.msra.mxu0 0.0
        %1088 = vmatprep.subr.mxu0 0.0
        %1089 = vmatpush1.xpose.msra.mxu0 0.0
        %1090 = vmatprep.subr.mxu0 0.0
        %1091 = vmatpush1.xpose.msra.mxu0 0.0
        %1092 = vmatprep.subr.mxu0 0.0
        %1093 = vmatpush1.xpose.msra.mxu0 0.0
        %1094 = vmatprep.subr.mxu0 0.0
        %1095 = vmatpush1.xpose.msra.mxu0 0.0
        %1096 = vmatprep.subr.mxu0 0.0
        %1097 = vmatpush1.xpose.msra.mxu0 0.0
        %1098 = vmatprep.subr.mxu0 0.0
        %1099 = vmatpush1.xpose.msra.mxu0 0.0
        %1100 = vmatprep.subr.mxu0 0.0
        %1101 = vmatpush1.xpose.msra.mxu0 0.0
        %1102 = vmatprep.subr.mxu0 0.0
        %1103 = vmatpush1.xpose.msra.mxu0 0.0
        %1104 = vmatprep.subr.mxu0 0.0
        %1105 = vmatpush1.xpose.msra.mxu0 0.0
        %1106 = vmatprep.subr.mxu0 0.0
        %1107 = vmatpush1.xpose.msra.mxu0 0.0
        %1108 = vmatprep.subr.mxu0 0.0
        %1109 = vmatpush1.xpose.msra.mxu0 0.0
        %1110 = vmatprep.subr.mxu0 0.0
        %1111 = vmatpush1.xpose.msra.mxu0 0.0
        %1112 = vmatprep.subr.mxu0 0.0
        %1113 = vmatpush1.xpose.msra.mxu0 0.0
        %1114 = vmatprep.subr.mxu0 0.0
        %1115 = vmatpush1.xpose.msra.mxu0 0.0
        %1116 = vmatprep.subr.mxu0 0.0
        %1117 = vmatpush1.xpose.msra.mxu0 0.0
        %1118 = vmatprep.subr.mxu0 0.0
        %1119 = vmatpush1.xpose.msra.mxu0 0.0
        %1120 = vmatprep.subr.mxu0 0.0
        %1121 = vmatpush1.xpose.msra.mxu0 0.0
        %1122 = vmatprep.subr.mxu0 0.0
        %1123 = vmatpush1.xpose.msra.mxu0 0.0
        %1124 = vmatprep.subr.mxu0 0.0
        %1125 = vmatpush1.xpose.msra.mxu0 0.0
        %1126 = vmatprep.subr.mxu0 0.0
        %1127 = vmatpush1.xpose.msra.mxu0 0.0
        %1128 = vmatprep.subr.mxu0 0.0
        %1129 = vmatpush1.xpose.msra.mxu0 0.0
        %1130 = vmatprep.subr.mxu0 0.0
        %1131 = vmatpush1.xpose.msra.mxu0 0.0
        %1132 = vmatprep.subr.mxu0 0.0
        %1133 = vmatpush1.xpose.msra.mxu0 0.0
        %1134 = vmatprep.subr.mxu0 0.0
        %1135 = vmatpush1.xpose.msra.mxu0 0.0
        %1136 = vmatprep.subr.mxu0 0.0
        %1137 = vmatpush1.xpose.msra.mxu0 0.0
        %1138 = vmatprep.subr.mxu0 0.0
        %1139 = vmatpush1.xpose.msra.mxu0 0.0
        %1140 = vmatprep.subr.mxu0 0.0
        %1141 = vmatpush1.xpose.msra.mxu0 0.0
        %1142 = vmatprep.subr.mxu0 0.0
        %1143 = vmatpush1.xpose.msra.mxu0 0.0
        %1144 = vmatprep.subr.mxu0 0.0
        %1145 = vmatpush1.xpose.msra.mxu0 0.0
        %1146 = vmatprep.mubr.f32.mxu0 0.0
        %1147 = vmatmul.mubr.f32.gmra.mrb[0].mxu0 %v1077
        %v1148 = vpop.f32.mrb[0].mxu0
        %v1149 = vadd.f32 %v924, %v1148
        %v1150 = vpop.f32.mrb[0].mxu0
        %1151 = vdwg.mxu0
        %v1152 = vsel %vm926, %v914, 0
        %v1155 = vsel %vm926, %v918, 0
        %1157 = vmatprep.subr.mxu0 0.0
        %1158 = vmatpush1.xpose.msra.mxu0 %v1155
        %1159 = vmatprep.subr.mxu0 0.0
        %1160 = vmatpush1.xpose.msra.mxu0 0.0
        %1161 = vmatprep.subr.mxu0 0.0
        %1162 = vmatpush1.xpose.msra.mxu0 0.0
        %1163 = vmatprep.subr.mxu0 0.0
        %1164 = vmatpush1.xpose.msra.mxu0 0.0
        %1165 = vmatprep.subr.mxu0 0.0
        %1166 = vmatpush1.xpose.msra.mxu0 0.0
        %1167 = vmatprep.subr.mxu0 0.0
        %1168 = vmatpush1.xpose.msra.mxu0 0.0
        %1169 = vmatprep.subr.mxu0 0.0
        %1170 = vmatpush1.xpose.msra.mxu0 0.0
        %1171 = vmatprep.subr.mxu0 0.0
        %1172 = vmatpush1.xpose.msra.mxu0 0.0
        %1173 = vmatprep.subr.mxu0 0.0
        %1174 = vmatpush1.xpose.msra.mxu0 0.0
        %1175 = vmatprep.subr.mxu0 0.0
        %1176 = vmatpush1.xpose.msra.mxu0 0.0
        %1177 = vmatprep.subr.mxu0 0.0
        %1178 = vmatpush1.xpose.msra.mxu0 0.0
        %1179 = vmatprep.subr.mxu0 0.0
        %1180 = vmatpush1.xpose.msra.mxu0 0.0
        %1181 = vmatprep.subr.mxu0 0.0
        %1182 = vmatpush1.xpose.msra.mxu0 0.0
        %1183 = vmatprep.subr.mxu0 0.0
        %1184 = vmatpush1.xpose.msra.mxu0 0.0
        %1185 = vmatprep.subr.mxu0 0.0
        %1186 = vmatpush1.xpose.msra.mxu0 0.0
        %1187 = vmatprep.subr.mxu0 0.0
        %1188 = vmatpush1.xpose.msra.mxu0 0.0
        %1189 = vmatprep.subr.mxu0 0.0
        %1190 = vmatpush1.xpose.msra.mxu0 0.0
        %1191 = vmatprep.subr.mxu0 0.0
        %1192 = vmatpush1.xpose.msra.mxu0 0.0
        %1193 = vmatprep.subr.mxu0 0.0
        %1194 = vmatpush1.xpose.msra.mxu0 0.0
        %1195 = vmatprep.subr.mxu0 0.0
        %1196 = vmatpush1.xpose.msra.mxu0 0.0
        %1197 = vmatprep.subr.mxu0 0.0
        %1198 = vmatpush1.xpose.msra.mxu0 0.0
        %1199 = vmatprep.subr.mxu0 0.0
        %1200 = vmatpush1.xpose.msra.mxu0 0.0
        %1201 = vmatprep.subr.mxu0 0.0
        %1202 = vmatpush1.xpose.msra.mxu0 0.0
        %1203 = vmatprep.subr.mxu0 0.0
        %1204 = vmatpush1.xpose.msra.mxu0 0.0
        %1205 = vmatprep.subr.mxu0 0.0
        %1206 = vmatpush1.xpose.msra.mxu0 0.0
        %1207 = vmatprep.subr.mxu0 0.0
        %1208 = vmatpush1.xpose.msra.mxu0 0.0
        %1209 = vmatprep.subr.mxu0 0.0
        %1210 = vmatpush1.xpose.msra.mxu0 0.0
        %1211 = vmatprep.subr.mxu0 0.0
        %1212 = vmatpush1.xpose.msra.mxu0 0.0
        %1213 = vmatprep.subr.mxu0 0.0
        %1214 = vmatpush1.xpose.msra.mxu0 0.0
        %1215 = vmatprep.subr.mxu0 0.0
        %1216 = vmatpush1.xpose.msra.mxu0 0.0
        %1217 = vmatprep.subr.mxu0 0.0
        %1218 = vmatpush1.xpose.msra.mxu0 0.0
        %1219 = vmatprep.subr.mxu0 0.0
        %1220 = vmatpush1.xpose.msra.mxu0 0.0
        %1221 = vmatprep.mubr.f32.mxu0 0.0
        %1222 = vmatmul.mubr.f32.gmra.mrb[0].mxu0 %v1152
        %v1223 = vpop.f32.mrb[0].mxu0
        %v1224 = vadd.f32 %v924, %v1223
        %v1225 = vpop.f32.mrb[0].mxu0
        %1226 = vdwg.mxu0
        %v1227 = vsel %vm926, %v999, -inf
        %1228 = vmax.xlane.f32.xlu0 %v1227
        %v1229 = vpop.xlane.xlu0 %1228
        %v1230 = vsel %vm926, %v1074, -inf
        %1231 = vmax.xlane.f32.xlu0 %v1230
        %v1232 = vpop.xlane.xlu0 %1231
        %v1233 = vsel %vm926, %v1149, -inf
        %1234 = vmax.xlane.f32.xlu0 %v1233
        %v1235 = vpop.xlane.xlu0 %1234
        %v1236 = vsel %vm926, %v1224, -inf
        %1237 = vmax.xlane.f32.xlu0 %v1236
        %v1238 = vpop.xlane.xlu0 %1237
        %v1239 = vsub.f32 %v999, %v1229
        %v1240 = vsub.f32 %v1074, %v1232
        %v1241 = vsub.f32 %v1149, %v1235
        %v1242 = vsub.f32 %v1224, %v1238
        %v1243 = vmul.f32 %v1239, 1.442695
        %v1244 = vpow.pop %v1243
        %v1245 = vmul.f32 %v1240, 1.442695
        %v1246 = vpow.pop %v1245
        %v1247 = vmul.f32 %v1241, 1.442695
        %v1248 = vpow.pop %v1247
        %v1249 = vmul.f32 %v1242, 1.442695
        %v1250 = vpow.pop %v1249
        %v1251 = vsel %vm926, %v1244, 0.0
        %1252 = vadd.xlane.f32.xlu0 %v1251
        %v1253 = vpop.xlane.xlu0 %1252
        %v1254 = vsel %vm926, %v1246, 0.0
        %1255 = vadd.xlane.f32.xlu0 %v1254
        %v1256 = vpop.xlane.xlu0 %1255
        %v1257 = vsel %vm926, %v1248, 0.0
        %1258 = vadd.xlane.f32.xlu0 %v1257
        %v1259 = vpop.xlane.xlu0 %1258
        %v1260 = vsel %vm926, %v1250, 0.0
        %1261 = vadd.xlane.f32.xlu0 %v1260
        %v1262 = vpop.xlane.xlu0 %1261
        %v1263 = vrcp.pop %v1253
        %v1264 = vrcp.pop %v1256
        %v1265 = vrcp.pop %v1259
        %v1266 = vrcp.pop %v1262
        %v1267 = vmul.f32 %v1244, %v1263
        %v1268 = vmul.f32 %v1246, %v1264
        %v1269 = vmul.f32 %v1248, %v1265
        %v1270 = vmul.f32 %v1250, %v1266
        %v1271 = vld [vmem:[#allocation3] sm:$0xff]
        %v1272 = vld [vmem:[#allocation3 + $0x8] sm:$0xff]
        %v1273 = vld [vmem:[#allocation3 + $0x10] sm:$0xff]
        %v1274 = vld [vmem:[#allocation3 + $0x18] sm:$0xff]
        %v1276 = vsel %vm926, %v1267, 0
        %1278 = vmatprep.subr.mxu0 0.0
        %1279 = vmatpush1.msra.mxu0 %v1271
        %1280 = vmatprep.subr.mxu0 0.0
        %1281 = vmatpush1.msra.mxu0 0.0
        %1282 = vmatprep.subr.mxu0 0.0
        %1283 = vmatpush1.msra.mxu0 0.0
        %1284 = vmatprep.subr.mxu0 0.0
        %1285 = vmatpush1.msra.mxu0 0.0
        %1286 = vmatprep.subr.mxu0 0.0
        %1287 = vmatpush1.msra.mxu0 0.0
        %1288 = vmatprep.subr.mxu0 0.0
        %1289 = vmatpush1.msra.mxu0 0.0
        %1290 = vmatprep.subr.mxu0 0.0
        %1291 = vmatpush1.msra.mxu0 0.0
        %1292 = vmatprep.subr.mxu0 0.0
        %1293 = vmatpush1.msra.mxu0 0.0
        %1294 = vmatprep.subr.mxu0 0.0
        %1295 = vmatpush1.msra.mxu0 0.0
        %1296 = vmatprep.subr.mxu0 0.0
        %1297 = vmatpush1.msra.mxu0 0.0
        %1298 = vmatprep.subr.mxu0 0.0
        %1299 = vmatpush1.msra.mxu0 0.0
        %1300 = vmatprep.subr.mxu0 0.0
        %1301 = vmatpush1.msra.mxu0 0.0
        %1302 = vmatprep.subr.mxu0 0.0
        %1303 = vmatpush1.msra.mxu0 0.0
        %1304 = vmatprep.subr.mxu0 0.0
        %1305 = vmatpush1.msra.mxu0 0.0
        %1306 = vmatprep.subr.mxu0 0.0
        %1307 = vmatpush1.msra.mxu0 0.0
        %1308 = vmatprep.subr.mxu0 0.0
        %1309 = vmatpush1.msra.mxu0 0.0
        %1310 = vmatprep.subr.mxu0 0.0
        %1311 = vmatpush1.msra.mxu0 0.0
        %1312 = vmatprep.subr.mxu0 0.0
        %1313 = vmatpush1.msra.mxu0 0.0
        %1314 = vmatprep.subr.mxu0 0.0
        %1315 = vmatpush1.msra.mxu0 0.0
        %1316 = vmatprep.subr.mxu0 0.0
        %1317 = vmatpush1.msra.mxu0 0.0
        %1318 = vmatprep.subr.mxu0 0.0
        %1319 = vmatpush1.msra.mxu0 0.0
        %1320 = vmatprep.subr.mxu0 0.0
        %1321 = vmatpush1.msra.mxu0 0.0
        %1322 = vmatprep.subr.mxu0 0.0
        %1323 = vmatpush1.msra.mxu0 0.0
        %1324 = vmatprep.subr.mxu0 0.0
        %1325 = vmatpush1.msra.mxu0 0.0
        %1326 = vmatprep.subr.mxu0 0.0
        %1327 = vmatpush1.msra.mxu0 0.0
        %1328 = vmatprep.subr.mxu0 0.0
        %1329 = vmatpush1.msra.mxu0 0.0
        %1330 = vmatprep.subr.mxu0 0.0
        %1331 = vmatpush1.msra.mxu0 0.0
        %1332 = vmatprep.subr.mxu0 0.0
        %1333 = vmatpush1.msra.mxu0 0.0
        %1334 = vmatprep.subr.mxu0 0.0
        %1335 = vmatpush1.msra.mxu0 0.0
        %1336 = vmatprep.subr.mxu0 0.0
        %1337 = vmatpush1.msra.mxu0 0.0
        %1338 = vmatprep.subr.mxu0 0.0
        %1339 = vmatpush1.msra.mxu0 0.0
        %1340 = vmatprep.subr.mxu0 0.0
        %1341 = vmatpush1.msra.mxu0 0.0
        %1342 = vmatprep.mubr.f32.mxu0 0.0
        %1343 = vmatmul.mubr.f32.gmra.mrb[0].mxu0 %v1276
        %v1344 = vpop.f32.mrb[0].mxu0
        %v1345 = vadd.f32 0.0, %v1344
        %v1346 = vpop.f32.mrb[0].mxu0
        %1347 = vdwg.mxu0
        %v1349 = vsel %vm926, %v1268, 0
        %1351 = vmatprep.subr.mxu0 0.0
        %1352 = vmatpush1.msra.mxu0 %v1272
        %1353 = vmatprep.subr.mxu0 0.0
        %1354 = vmatpush1.msra.mxu0 0.0
        %1355 = vmatprep.subr.mxu0 0.0
        %1356 = vmatpush1.msra.mxu0 0.0
        %1357 = vmatprep.subr.mxu0 0.0
        %1358 = vmatpush1.msra.mxu0 0.0
        %1359 = vmatprep.subr.mxu0 0.0
        %1360 = vmatpush1.msra.mxu0 0.0
        %1361 = vmatprep.subr.mxu0 0.0
        %1362 = vmatpush1.msra.mxu0 0.0
        %1363 = vmatprep.subr.mxu0 0.0
        %1364 = vmatpush1.msra.mxu0 0.0
        %1365 = vmatprep.subr.mxu0 0.0
        %1366 = vmatpush1.msra.mxu0 0.0
        %1367 = vmatprep.subr.mxu0 0.0
        %1368 = vmatpush1.msra.mxu0 0.0
        %1369 = vmatprep.subr.mxu0 0.0
        %1370 = vmatpush1.msra.mxu0 0.0
        %1371 = vmatprep.subr.mxu0 0.0
        %1372 = vmatpush1.msra.mxu0 0.0
        %1373 = vmatprep.subr.mxu0 0.0
        %1374 = vmatpush1.msra.mxu0 0.0
        %1375 = vmatprep.subr.mxu0 0.0
        %1376 = vmatpush1.msra.mxu0 0.0
        %1377 = vmatprep.subr.mxu0 0.0
        %1378 = vmatpush1.msra.mxu0 0.0
        %1379 = vmatprep.subr.mxu0 0.0
        %1380 = vmatpush1.msra.mxu0 0.0
        %1381 = vmatprep.subr.mxu0 0.0
        %1382 = vmatpush1.msra.mxu0 0.0
        %1383 = vmatprep.subr.mxu0 0.0
        %1384 = vmatpush1.msra.mxu0 0.0
        %1385 = vmatprep.subr.mxu0 0.0
        %1386 = vmatpush1.msra.mxu0 0.0
        %1387 = vmatprep.subr.mxu0 0.0
        %1388 = vmatpush1.msra.mxu0 0.0
        %1389 = vmatprep.subr.mxu0 0.0
        %1390 = vmatpush1.msra.mxu0 0.0
        %1391 = vmatprep.subr.mxu0 0.0
        %1392 = vmatpush1.msra.mxu0 0.0
        %1393 = vmatprep.subr.mxu0 0.0
        %1394 = vmatpush1.msra.mxu0 0.0
        %1395 = vmatprep.subr.mxu0 0.0
        %1396 = vmatpush1.msra.mxu0 0.0
        %1397 = vmatprep.subr.mxu0 0.0
        %1398 = vmatpush1.msra.mxu0 0.0
        %1399 = vmatprep.subr.mxu0 0.0
        %1400 = vmatpush1.msra.mxu0 0.0
        %1401 = vmatprep.subr.mxu0 0.0
        %1402 = vmatpush1.msra.mxu0 0.0
        %1403 = vmatprep.subr.mxu0 0.0
        %1404 = vmatpush1.msra.mxu0 0.0
        %1405 = vmatprep.subr.mxu0 0.0
        %1406 = vmatpush1.msra.mxu0 0.0
        %1407 = vmatprep.subr.mxu0 0.0
        %1408 = vmatpush1.msra.mxu0 0.0
        %1409 = vmatprep.subr.mxu0 0.0
        %1410 = vmatpush1.msra.mxu0 0.0
        %1411 = vmatprep.subr.mxu0 0.0
        %1412 = vmatpush1.msra.mxu0 0.0
        %1413 = vmatprep.subr.mxu0 0.0
        %1414 = vmatpush1.msra.mxu0 0.0
        %1415 = vmatprep.mubr.f32.mxu0 0.0
        %1416 = vmatmul.mubr.f32.gmra.mrb[0].mxu0 %v1349
        %v1417 = vpop.f32.mrb[0].mxu0
        %v1418 = vadd.f32 0.0, %v1417
        %v1419 = vpop.f32.mrb[0].mxu0
        %1420 = vdwg.mxu0
        %v1422 = vsel %vm926, %v1269, 0
        %1424 = vmatprep.subr.mxu0 0.0
        %1425 = vmatpush1.msra.mxu0 %v1273
        %1426 = vmatprep.subr.mxu0 0.0
        %1427 = vmatpush1.msra.mxu0 0.0
        %1428 = vmatprep.subr.mxu0 0.0
        %1429 = vmatpush1.msra.mxu0 0.0
        %1430 = vmatprep.subr.mxu0 0.0
        %1431 = vmatpush1.msra.mxu0 0.0
        %1432 = vmatprep.subr.mxu0 0.0
        %1433 = vmatpush1.msra.mxu0 0.0
        %1434 = vmatprep.subr.mxu0 0.0
        %1435 = vmatpush1.msra.mxu0 0.0
        %1436 = vmatprep.subr.mxu0 0.0
        %1437 = vmatpush1.msra.mxu0 0.0
        %1438 = vmatprep.subr.mxu0 0.0
        %1439 = vmatpush1.msra.mxu0 0.0
        %1440 = vmatprep.subr.mxu0 0.0
        %1441 = vmatpush1.msra.mxu0 0.0
        %1442 = vmatprep.subr.mxu0 0.0
        %1443 = vmatpush1.msra.mxu0 0.0
        %1444 = vmatprep.subr.mxu0 0.0
        %1445 = vmatpush1.msra.mxu0 0.0
        %1446 = vmatprep.subr.mxu0 0.0
        %1447 = vmatpush1.msra.mxu0 0.0
        %1448 = vmatprep.subr.mxu0 0.0
        %1449 = vmatpush1.msra.mxu0 0.0
        %1450 = vmatprep.subr.mxu0 0.0
        %1451 = vmatpush1.msra.mxu0 0.0
        %1452 = vmatprep.subr.mxu0 0.0
        %1453 = vmatpush1.msra.mxu0 0.0
        %1454 = vmatprep.subr.mxu0 0.0
        %1455 = vmatpush1.msra.mxu0 0.0
        %1456 = vmatprep.subr.mxu0 0.0
        %1457 = vmatpush1.msra.mxu0 0.0
        %1458 = vmatprep.subr.mxu0 0.0
        %1459 = vmatpush1.msra.mxu0 0.0
        %1460 = vmatprep.subr.mxu0 0.0
        %1461 = vmatpush1.msra.mxu0 0.0
        %1462 = vmatprep.subr.mxu0 0.0
        %1463 = vmatpush1.msra.mxu0 0.0
        %1464 = vmatprep.subr.mxu0 0.0
        %1465 = vmatpush1.msra.mxu0 0.0
        %1466 = vmatprep.subr.mxu0 0.0
        %1467 = vmatpush1.msra.mxu0 0.0
        %1468 = vmatprep.subr.mxu0 0.0
        %1469 = vmatpush1.msra.mxu0 0.0
        %1470 = vmatprep.subr.mxu0 0.0
        %1471 = vmatpush1.msra.mxu0 0.0
        %1472 = vmatprep.subr.mxu0 0.0
        %1473 = vmatpush1.msra.mxu0 0.0
        %1474 = vmatprep.subr.mxu0 0.0
        %1475 = vmatpush1.msra.mxu0 0.0
        %1476 = vmatprep.subr.mxu0 0.0
        %1477 = vmatpush1.msra.mxu0 0.0
        %1478 = vmatprep.subr.mxu0 0.0
        %1479 = vmatpush1.msra.mxu0 0.0
        %1480 = vmatprep.subr.mxu0 0.0
        %1481 = vmatpush1.msra.mxu0 0.0
        %1482 = vmatprep.subr.mxu0 0.0
        %1483 = vmatpush1.msra.mxu0 0.0
        %1484 = vmatprep.subr.mxu0 0.0
        %1485 = vmatpush1.msra.mxu0 0.0
        %1486 = vmatprep.subr.mxu0 0.0
        %1487 = vmatpush1.msra.mxu0 0.0
        %1488 = vmatprep.mubr.f32.mxu0 0.0
        %1489 = vmatmul.mubr.f32.gmra.mrb[0].mxu0 %v1422
        %v1490 = vpop.f32.mrb[0].mxu0
        %v1491 = vadd.f32 0.0, %v1490
        %v1492 = vpop.f32.mrb[0].mxu0
        %1493 = vdwg.mxu0
        %v1495 = vsel %vm926, %v1270, 0
        %1497 = vmatprep.subr.mxu0 0.0
        %1498 = vmatpush1.msra.mxu0 %v1274
        %1499 = vmatprep.subr.mxu0 0.0
        %1500 = vmatpush1.msra.mxu0 0.0
        %1501 = vmatprep.subr.mxu0 0.0
        %1502 = vmatpush1.msra.mxu0 0.0
        %1503 = vmatprep.subr.mxu0 0.0
        %1504 = vmatpush1.msra.mxu0 0.0
        %1505 = vmatprep.subr.mxu0 0.0
        %1506 = vmatpush1.msra.mxu0 0.0
        %1507 = vmatprep.subr.mxu0 0.0
        %1508 = vmatpush1.msra.mxu0 0.0
        %1509 = vmatprep.subr.mxu0 0.0
        %1510 = vmatpush1.msra.mxu0 0.0
        %1511 = vmatprep.subr.mxu0 0.0
        %1512 = vmatpush1.msra.mxu0 0.0
        %1513 = vmatprep.subr.mxu0 0.0
        %1514 = vmatpush1.msra.mxu0 0.0
        %1515 = vmatprep.subr.mxu0 0.0
        %1516 = vmatpush1.msra.mxu0 0.0
        %1517 = vmatprep.subr.mxu0 0.0
        %1518 = vmatpush1.msra.mxu0 0.0
        %1519 = vmatprep.subr.mxu0 0.0
        %1520 = vmatpush1.msra.mxu0 0.0
        %1521 = vmatprep.subr.mxu0 0.0
        %1522 = vmatpush1.msra.mxu0 0.0
        %1523 = vmatprep.subr.mxu0 0.0
        %1524 = vmatpush1.msra.mxu0 0.0
        %1525 = vmatprep.subr.mxu0 0.0
        %1526 = vmatpush1.msra.mxu0 0.0
        %1527 = vmatprep.subr.mxu0 0.0
        %1528 = vmatpush1.msra.mxu0 0.0
        %1529 = vmatprep.subr.mxu0 0.0
        %1530 = vmatpush1.msra.mxu0 0.0
        %1531 = vmatprep.subr.mxu0 0.0
        %1532 = vmatpush1.msra.mxu0 0.0
        %1533 = vmatprep.subr.mxu0 0.0
        %1534 = vmatpush1.msra.mxu0 0.0
        %1535 = vmatprep.subr.mxu0 0.0
        %1536 = vmatpush1.msra.mxu0 0.0
        %1537 = vmatprep.subr.mxu0 0.0
        %1538 = vmatpush1.msra.mxu0 0.0
        %1539 = vmatprep.subr.mxu0 0.0
        %1540 = vmatpush1.msra.mxu0 0.0
        %1541 = vmatprep.subr.mxu0 0.0
        %1542 = vmatpush1.msra.mxu0 0.0
        %1543 = vmatprep.subr.mxu0 0.0
        %1544 = vmatpush1.msra.mxu0 0.0
        %1545 = vmatprep.subr.mxu0 0.0
        %1546 = vmatpush1.msra.mxu0 0.0
        %1547 = vmatprep.subr.mxu0 0.0
        %1548 = vmatpush1.msra.mxu0 0.0
        %1549 = vmatprep.subr.mxu0 0.0
        %1550 = vmatpush1.msra.mxu0 0.0
        %1551 = vmatprep.subr.mxu0 0.0
        %1552 = vmatpush1.msra.mxu0 0.0
        %1553 = vmatprep.subr.mxu0 0.0
        %1554 = vmatpush1.msra.mxu0 0.0
        %1555 = vmatprep.subr.mxu0 0.0
        %1556 = vmatpush1.msra.mxu0 0.0
        %1557 = vmatprep.subr.mxu0 0.0
        %1558 = vmatpush1.msra.mxu0 0.0
        %1559 = vmatprep.subr.mxu0 0.0
        %1560 = vmatpush1.msra.mxu0 0.0
        %1561 = vmatprep.mubr.f32.mxu0 0.0
        %1562 = vmatmul.mubr.f32.gmra.mrb[0].mxu0 %v1495
        %v1563 = vpop.f32.mrb[0].mxu0
        %v1564 = vadd.f32 0.0, %v1563
        %v1565 = vpop.f32.mrb[0].mxu0
        %1566 = vdwg.mxu0
        %v1567 = vld [vmem:[%s8] sm:$0xff]
        %v1568 = vld [vmem:[%s8 + $0x8] sm:$0xff]
        %v1569 = vld [vmem:[%s8 + $0x10] sm:$0xff]
        %v1570 = vld [vmem:[%s8 + $0x18] sm:$0xff]
        %v1572 = vsel %vm926, %v1345, 0
        %1574 = vmatprep.subr.mxu0 0.0
        %1575 = vmatpush1.msra.mxu0 %v1567
        %1576 = vmatprep.subr.mxu0 0.0
        %1577 = vmatpush1.msra.mxu0 0.0
        %1578 = vmatprep.subr.mxu0 0.0
        %1579 = vmatpush1.msra.mxu0 0.0
        %1580 = vmatprep.subr.mxu0 0.0
        %1581 = vmatpush1.msra.mxu0 0.0
        %1582 = vmatprep.subr.mxu0 0.0
        %1583 = vmatpush1.msra.mxu0 0.0
        %1584 = vmatprep.subr.mxu0 0.0
        %1585 = vmatpush1.msra.mxu0 0.0
        %1586 = vmatprep.subr.mxu0 0.0
        %1587 = vmatpush1.msra.mxu0 0.0
        %1588 = vmatprep.subr.mxu0 0.0
        %1589 = vmatpush1.msra.mxu0 0.0
        %1590 = vmatprep.subr.mxu0 0.0
        %1591 = vmatpush1.msra.mxu0 0.0
        %1592 = vmatprep.subr.mxu0 0.0
        %1593 = vmatpush1.msra.mxu0 0.0
        %1594 = vmatprep.subr.mxu0 0.0
        %1595 = vmatpush1.msra.mxu0 0.0
        %1596 = vmatprep.subr.mxu0 0.0
        %1597 = vmatpush1.msra.mxu0 0.0
        %1598 = vmatprep.subr.mxu0 0.0
        %1599 = vmatpush1.msra.mxu0 0.0
        %1600 = vmatprep.subr.mxu0 0.0
        %1601 = vmatpush1.msra.mxu0 0.0
        %1602 = vmatprep.subr.mxu0 0.0
        %1603 = vmatpush1.msra.mxu0 0.0
        %1604 = vmatprep.subr.mxu0 0.0
        %1605 = vmatpush1.msra.mxu0 0.0
        %1606 = vmatprep.subr.mxu0 0.0
        %1607 = vmatpush1.msra.mxu0 0.0
        %1608 = vmatprep.subr.mxu0 0.0
        %1609 = vmatpush1.msra.mxu0 0.0
        %1610 = vmatprep.subr.mxu0 0.0
        %1611 = vmatpush1.msra.mxu0 0.0
        %1612 = vmatprep.subr.mxu0 0.0
        %1613 = vmatpush1.msra.mxu0 0.0
        %1614 = vmatprep.subr.mxu0 0.0
        %1615 = vmatpush1.msra.mxu0 0.0
        %1616 = vmatprep.subr.mxu0 0.0
        %1617 = vmatpush1.msra.mxu0 0.0
        %1618 = vmatprep.subr.mxu0 0.0
        %1619 = vmatpush1.msra.mxu0 0.0
        %1620 = vmatprep.subr.mxu0 0.0
        %1621 = vmatpush1.msra.mxu0 0.0
        %1622 = vmatprep.subr.mxu0 0.0
        %1623 = vmatpush1.msra.mxu0 0.0
        %1624 = vmatprep.subr.mxu0 0.0
        %1625 = vmatpush1.msra.mxu0 0.0
        %1626 = vmatprep.subr.mxu0 0.0
        %1627 = vmatpush1.msra.mxu0 0.0
        %1628 = vmatprep.subr.mxu0 0.0
        %1629 = vmatpush1.msra.mxu0 0.0
        %1630 = vmatprep.subr.mxu0 0.0
        %1631 = vmatpush1.msra.mxu0 0.0
        %1632 = vmatprep.subr.mxu0 0.0
        %1633 = vmatpush1.msra.mxu0 0.0
        %1634 = vmatprep.subr.mxu0 0.0
        %1635 = vmatpush1.msra.mxu0 0.0
        %1636 = vmatprep.subr.mxu0 0.0
        %1637 = vmatpush1.msra.mxu0 0.0
        %1638 = vmatprep.mubr.f32.mxu0 0.0
        %1639 = vmatmul.mubr.f32.gmra.mrb[0].mxu0 %v1572
        %v1640 = vpop.f32.mrb[0].mxu0
        %v1641 = vadd.f32 0.0, %v1640
        %v1642 = vpop.f32.mrb[0].mxu0
        %1643 = vdwg.mxu0
        %v1645 = vsel %vm926, %v1418, 0
        %1647 = vmatprep.subr.mxu0 0.0
        %1648 = vmatpush1.msra.mxu0 %v1568
        %1649 = vmatprep.subr.mxu0 0.0
        %1650 = vmatpush1.msra.mxu0 0.0
        %1651 = vmatprep.subr.mxu0 0.0
        %1652 = vmatpush1.msra.mxu0 0.0
        %1653 = vmatprep.subr.mxu0 0.0
        %1654 = vmatpush1.msra.mxu0 0.0
        %1655 = vmatprep.subr.mxu0 0.0
        %1656 = vmatpush1.msra.mxu0 0.0
        %1657 = vmatprep.subr.mxu0 0.0
        %1658 = vmatpush1.msra.mxu0 0.0
        %1659 = vmatprep.subr.mxu0 0.0
        %1660 = vmatpush1.msra.mxu0 0.0
        %1661 = vmatprep.subr.mxu0 0.0
        %1662 = vmatpush1.msra.mxu0 0.0
        %1663 = vmatprep.subr.mxu0 0.0
        %1664 = vmatpush1.msra.mxu0 0.0
        %1665 = vmatprep.subr.mxu0 0.0
        %1666 = vmatpush1.msra.mxu0 0.0
        %1667 = vmatprep.subr.mxu0 0.0
        %1668 = vmatpush1.msra.mxu0 0.0
        %1669 = vmatprep.subr.mxu0 0.0
        %1670 = vmatpush1.msra.mxu0 0.0
        %1671 = vmatprep.subr.mxu0 0.0
        %1672 = vmatpush1.msra.mxu0 0.0
        %1673 = vmatprep.subr.mxu0 0.0
        %1674 = vmatpush1.msra.mxu0 0.0
        %1675 = vmatprep.subr.mxu0 0.0
        %1676 = vmatpush1.msra.mxu0 0.0
        %1677 = vmatprep.subr.mxu0 0.0
        %1678 = vmatpush1.msra.mxu0 0.0
        %1679 = vmatprep.subr.mxu0 0.0
        %1680 = vmatpush1.msra.mxu0 0.0
        %1681 = vmatprep.subr.mxu0 0.0
        %1682 = vmatpush1.msra.mxu0 0.0
        %1683 = vmatprep.subr.mxu0 0.0
        %1684 = vmatpush1.msra.mxu0 0.0
        %1685 = vmatprep.subr.mxu0 0.0
        %1686 = vmatpush1.msra.mxu0 0.0
        %1687 = vmatprep.subr.mxu0 0.0
        %1688 = vmatpush1.msra.mxu0 0.0
        %1689 = vmatprep.subr.mxu0 0.0
        %1690 = vmatpush1.msra.mxu0 0.0
        %1691 = vmatprep.subr.mxu0 0.0
        %1692 = vmatpush1.msra.mxu0 0.0
        %1693 = vmatprep.subr.mxu0 0.0
        %1694 = vmatpush1.msra.mxu0 0.0
        %1695 = vmatprep.subr.mxu0 0.0
        %1696 = vmatpush1.msra.mxu0 0.0
        %1697 = vmatprep.subr.mxu0 0.0
        %1698 = vmatpush1.msra.mxu0 0.0
        %1699 = vmatprep.subr.mxu0 0.0
        %1700 = vmatpush1.msra.mxu0 0.0
        %1701 = vmatprep.subr.mxu0 0.0
        %1702 = vmatpush1.msra.mxu0 0.0
        %1703 = vmatprep.subr.mxu0 0.0
        %1704 = vmatpush1.msra.mxu0 0.0
        %1705 = vmatprep.subr.mxu0 0.0
        %1706 = vmatpush1.msra.mxu0 0.0
        %1707 = vmatprep.subr.mxu0 0.0
        %1708 = vmatpush1.msra.mxu0 0.0
        %1709 = vmatprep.subr.mxu0 0.0
        %1710 = vmatpush1.msra.mxu0 0.0
        %1711 = vmatprep.mubr.f32.mxu0 0.0
        %1712 = vmatmul.mubr.f32.gmra.mrb[0].mxu0 %v1645
        %v1713 = vpop.f32.mrb[0].mxu0
        %v1714 = vadd.f32 0.0, %v1713
        %v1715 = vpop.f32.mrb[0].mxu0
        %1716 = vdwg.mxu0
        %v1718 = vsel %vm926, %v1491, 0
        %1720 = vmatprep.subr.mxu0 0.0
        %1721 = vmatpush1.msra.mxu0 %v1569
        %1722 = vmatprep.subr.mxu0 0.0
        %1723 = vmatpush1.msra.mxu0 0.0
        %1724 = vmatprep.subr.mxu0 0.0
        %1725 = vmatpush1.msra.mxu0 0.0
        %1726 = vmatprep.subr.mxu0 0.0
        %1727 = vmatpush1.msra.mxu0 0.0
        %1728 = vmatprep.subr.mxu0 0.0
        %1729 = vmatpush1.msra.mxu0 0.0
        %1730 = vmatprep.subr.mxu0 0.0
        %1731 = vmatpush1.msra.mxu0 0.0
        %1732 = vmatprep.subr.mxu0 0.0
        %1733 = vmatpush1.msra.mxu0 0.0
        %1734 = vmatprep.subr.mxu0 0.0
        %1735 = vmatpush1.msra.mxu0 0.0
        %1736 = vmatprep.subr.mxu0 0.0
        %1737 = vmatpush1.msra.mxu0 0.0
        %1738 = vmatprep.subr.mxu0 0.0
        %1739 = vmatpush1.msra.mxu0 0.0
        %1740 = vmatprep.subr.mxu0 0.0
        %1741 = vmatpush1.msra.mxu0 0.0
        %1742 = vmatprep.subr.mxu0 0.0
        %1743 = vmatpush1.msra.mxu0 0.0
        %1744 = vmatprep.subr.mxu0 0.0
        %1745 = vmatpush1.msra.mxu0 0.0
        %1746 = vmatprep.subr.mxu0 0.0
        %1747 = vmatpush1.msra.mxu0 0.0
        %1748 = vmatprep.subr.mxu0 0.0
        %1749 = vmatpush1.msra.mxu0 0.0
        %1750 = vmatprep.subr.mxu0 0.0
        %1751 = vmatpush1.msra.mxu0 0.0
        %1752 = vmatprep.subr.mxu0 0.0
        %1753 = vmatpush1.msra.mxu0 0.0
        %1754 = vmatprep.subr.mxu0 0.0
        %1755 = vmatpush1.msra.mxu0 0.0
        %1756 = vmatprep.subr.mxu0 0.0
        %1757 = vmatpush1.msra.mxu0 0.0
        %1758 = vmatprep.subr.mxu0 0.0
        %1759 = vmatpush1.msra.mxu0 0.0
        %1760 = vmatprep.subr.mxu0 0.0
        %1761 = vmatpush1.msra.mxu0 0.0
        %1762 = vmatprep.subr.mxu0 0.0
        %1763 = vmatpush1.msra.mxu0 0.0
        %1764 = vmatprep.subr.mxu0 0.0
        %1765 = vmatpush1.msra.mxu0 0.0
        %1766 = vmatprep.subr.mxu0 0.0
        %1767 = vmatpush1.msra.mxu0 0.0
        %1768 = vmatprep.subr.mxu0 0.0
        %1769 = vmatpush1.msra.mxu0 0.0
        %1770 = vmatprep.subr.mxu0 0.0
        %1771 = vmatpush1.msra.mxu0 0.0
        %1772 = vmatprep.subr.mxu0 0.0
        %1773 = vmatpush1.msra.mxu0 0.0
        %1774 = vmatprep.subr.mxu0 0.0
        %1775 = vmatpush1.msra.mxu0 0.0
        %1776 = vmatprep.subr.mxu0 0.0
        %1777 = vmatpush1.msra.mxu0 0.0
        %1778 = vmatprep.subr.mxu0 0.0
        %1779 = vmatpush1.msra.mxu0 0.0
        %1780 = vmatprep.subr.mxu0 0.0
        %1781 = vmatpush1.msra.mxu0 0.0
        %1782 = vmatprep.subr.mxu0 0.0
        %1783 = vmatpush1.msra.mxu0 0.0
        %1784 = vmatprep.mubr.f32.mxu0 0.0
        %1785 = vmatmul.mubr.f32.gmra.mrb[0].mxu0 %v1718
        %v1786 = vpop.f32.mrb[0].mxu0
        %v1787 = vadd.f32 0.0, %v1786
        %v1788 = vpop.f32.mrb[0].mxu0
        %1789 = vdwg.mxu0
        %v1791 = vsel %vm926, %v1564, 0
        %1793 = vmatprep.subr.mxu0 0.0
        %1794 = vmatpush1.msra.mxu0 %v1570
        %1795 = vmatprep.subr.mxu0 0.0
        %1796 = vmatpush1.msra.mxu0 0.0
        %1797 = vmatprep.subr.mxu0 0.0
        %1798 = vmatpush1.msra.mxu0 0.0
        %1799 = vmatprep.subr.mxu0 0.0
        %1800 = vmatpush1.msra.mxu0 0.0
        %1801 = vmatprep.subr.mxu0 0.0
        %1802 = vmatpush1.msra.mxu0 0.0
        %1803 = vmatprep.subr.mxu0 0.0
        %1804 = vmatpush1.msra.mxu0 0.0
        %1805 = vmatprep.subr.mxu0 0.0
        %1806 = vmatpush1.msra.mxu0 0.0
        %1807 = vmatprep.subr.mxu0 0.0
        %1808 = vmatpush1.msra.mxu0 0.0
        %1809 = vmatprep.subr.mxu0 0.0
        %1810 = vmatpush1.msra.mxu0 0.0
        %1811 = vmatprep.subr.mxu0 0.0
        %1812 = vmatpush1.msra.mxu0 0.0
        %1813 = vmatprep.subr.mxu0 0.0
        %1814 = vmatpush1.msra.mxu0 0.0
        %1815 = vmatprep.subr.mxu0 0.0
        %1816 = vmatpush1.msra.mxu0 0.0
        %1817 = vmatprep.subr.mxu0 0.0
        %1818 = vmatpush1.msra.mxu0 0.0
        %1819 = vmatprep.subr.mxu0 0.0
        %1820 = vmatpush1.msra.mxu0 0.0
        %1821 = vmatprep.subr.mxu0 0.0
        %1822 = vmatpush1.msra.mxu0 0.0
        %1823 = vmatprep.subr.mxu0 0.0
        %1824 = vmatpush1.msra.mxu0 0.0
        %1825 = vmatprep.subr.mxu0 0.0
        %1826 = vmatpush1.msra.mxu0 0.0
        %1827 = vmatprep.subr.mxu0 0.0
        %1828 = vmatpush1.msra.mxu0 0.0
        %1829 = vmatprep.subr.mxu0 0.0
        %1830 = vmatpush1.msra.mxu0 0.0
        %1831 = vmatprep.subr.mxu0 0.0
        %1832 = vmatpush1.msra.mxu0 0.0
        %1833 = vmatprep.subr.mxu0 0.0
        %1834 = vmatpush1.msra.mxu0 0.0
        %1835 = vmatprep.subr.mxu0 0.0
        %1836 = vmatpush1.msra.mxu0 0.0
        %1837 = vmatprep.subr.mxu0 0.0
        %1838 = vmatpush1.msra.mxu0 0.0
        %1839 = vmatprep.subr.mxu0 0.0
        %1840 = vmatpush1.msra.mxu0 0.0
        %1841 = vmatprep.subr.mxu0 0.0
        %1842 = vmatpush1.msra.mxu0 0.0
        %1843 = vmatprep.subr.mxu0 0.0
        %1844 = vmatpush1.msra.mxu0 0.0
        %1845 = vmatprep.subr.mxu0 0.0
        %1846 = vmatpush1.msra.mxu0 0.0
        %1847 = vmatprep.subr.mxu0 0.0
        %1848 = vmatpush1.msra.mxu0 0.0
        %1849 = vmatprep.subr.mxu0 0.0
        %1850 = vmatpush1.msra.mxu0 0.0
        %1851 = vmatprep.subr.mxu0 0.0
        %1852 = vmatpush1.msra.mxu0 0.0
        %1853 = vmatprep.subr.mxu0 0.0
        %1854 = vmatpush1.msra.mxu0 0.0
        %1855 = vmatprep.subr.mxu0 0.0
        %1856 = vmatpush1.msra.mxu0 0.0
        %1857 = vmatprep.mubr.f32.mxu0 0.0
        %1858 = vmatmul.mubr.f32.gmra.mrb[0].mxu0 %v1791
        %v1859 = vpop.f32.mrb[0].mxu0
        %v1860 = vadd.f32 0.0, %v1859
        %v1861 = vpop.f32.mrb[0].mxu0
        %1862 = vdwg.mxu0
        %v1863 = vsel %vm833, %v1641, 0.0
        %v1864 = vsel %vm833, %v1714, 0.0
        %v1865 = vadd.f32 %v1863, %v1864
        %v1866 = vsel %vm833, %v1787, 0.0
        %v1867 = vadd.f32 %v1865, %v1866
        %v1868 = vsel %vm833, %v1860, 0.0
        %v1869 = vadd.f32 %v1867, %v1868
        %v1870 = vld [vmem:[%s9] sm:$0x1]
        %v1872 = vlaneseq
        %v1873 = vshrl.u32 %v1872, 7
        %v1874 = vsub.s32 0, %v1873
        %v1875 = vrot.slane %v1870, %v1874
        %v1877 = vadd.f32 %v1869, %v1875
        %v1878 = vadd.f32 %v1877, %v821
        %v1879 = vsel %vm833, %v1878, 0.0
        %1880 = vadd.xlane.f32.xlu0 %v1879
        %v1881 = vpop.xlane.xlu0 %1880
        %v1882 = vrcp.pop 32.0
        %v1883 = vmul.f32 %v1881, %v1882
        %v1884 = vsub.f32 %v1878, %v1883
        %v1885 = vmul.f32 %v1884, %v1884
        %v1886 = vsel %vm833, %v1885, 0.0
        %1887 = vadd.xlane.f32.xlu0 %v1886
        %v1888 = vpop.xlane.xlu0 %1887
        %v1889 = vmul.f32 %v1888, %v1882
        %v1890 = vadd.f32 %v1889, 1e-12
        %v1891 = vrsqrt.pop %v1890
        %v1892 = vmul.f32 %v1884, %v1891
        %v1893 = vld [vmem:[%s10] sm:$0x1]
        %v1895 = vlaneseq
        %v1896 = vshrl.u32 %v1895, 7
        %v1897 = vsub.s32 0, %v1896
        %v1898 = vrot.slane %v1893, %v1897
        %v1900 = vmul.f32 %v1892, %v1898
        %v1901 = vld [vmem:[%s11] sm:$0x1]
        %v1903 = vlaneseq
        %v1904 = vshrl.u32 %v1903, 7
        %v1905 = vsub.s32 0, %v1904
        %v1906 = vrot.slane %v1901, %v1905
        %v1908 = vadd.f32 %v1900, %v1906
        %v1909 = vld [vmem:[%s12] sm:$0xff]
        %v1910 = vld [vmem:[%s12 + $0x8] sm:$0xff]
        %v1911 = vld [vmem:[%s12 + $0x10] sm:$0xff]
        %v1912 = vld [vmem:[%s12 + $0x18] sm:$0xff]
        %v1913 = vld [vmem:[%s13] sm:$0x1]
        %v1915 = vlaneseq
        %v1916 = vshrl.u32 %v1915, 7
        %v1917 = vsub.s32 0, %v1916
        %v1918 = vrot.slane %v1913, %v1917
        %v1921 = vsel %vm833, %v1908, 0
        %1923 = vmatprep.subr.mxu0 0.0
        %1924 = vmatpush1.msra.mxu0 %v1909
        %1925 = vmatprep.subr.mxu0 0.0
        %1926 = vmatpush1.msra.mxu0 %v1910
        %1927 = vmatprep.subr.mxu0 0.0
        %1928 = vmatpush1.msra.mxu0 %v1911
        %1929 = vmatprep.subr.mxu0 0.0
        %1930 = vmatpush1.msra.mxu0 %v1912
        %1931 = vmatprep.subr.mxu0 0.0
        %1932 = vmatpush1.msra.mxu0 0.0
        %1933 = vmatprep.subr.mxu0 0.0
        %1934 = vmatpush1.msra.mxu0 0.0
        %1935 = vmatprep.subr.mxu0 0.0
        %1936 = vmatpush1.msra.mxu0 0.0
        %1937 = vmatprep.subr.mxu0 0.0
        %1938 = vmatpush1.msra.mxu0 0.0
        %1939 = vmatprep.subr.mxu0 0.0
        %1940 = vmatpush1.msra.mxu0 0.0
        %1941 = vmatprep.subr.mxu0 0.0
        %1942 = vmatpush1.msra.mxu0 0.0
        %1943 = vmatprep.subr.mxu0 0.0
        %1944 = vmatpush1.msra.mxu0 0.0
        %1945 = vmatprep.subr.mxu0 0.0
        %1946 = vmatpush1.msra.mxu0 0.0
        %1947 = vmatprep.subr.mxu0 0.0
        %1948 = vmatpush1.msra.mxu0 0.0
        %1949 = vmatprep.subr.mxu0 0.0
        %1950 = vmatpush1.msra.mxu0 0.0
        %1951 = vmatprep.subr.mxu0 0.0
        %1952 = vmatpush1.msra.mxu0 0.0
        %1953 = vmatprep.subr.mxu0 0.0
        %1954 = vmatpush1.msra.mxu0 0.0
        %1955 = vmatprep.subr.mxu0 0.0
        %1956 = vmatpush1.msra.mxu0 0.0
        %1957 = vmatprep.subr.mxu0 0.0
        %1958 = vmatpush1.msra.mxu0 0.0
        %1959 = vmatprep.subr.mxu0 0.0
        %1960 = vmatpush1.msra.mxu0 0.0
        %1961 = vmatprep.subr.mxu0 0.0
        %1962 = vmatpush1.msra.mxu0 0.0
        %1963 = vmatprep.subr.mxu0 0.0
        %1964 = vmatpush1.msra.mxu0 0.0
        %1965 = vmatprep.subr.mxu0 0.0
        %1966 = vmatpush1.msra.mxu0 0.0
        %1967 = vmatprep.subr.mxu0 0.0
        %1968 = vmatpush1.msra.mxu0 0.0
        %1969 = vmatprep.subr.mxu0 0.0
        %1970 = vmatpush1.msra.mxu0 0.0
        %1971 = vmatprep.subr.mxu0 0.0
        %1972 = vmatpush1.msra.mxu0 0.0
        %1973 = vmatprep.subr.mxu0 0.0
        %1974 = vmatpush1.msra.mxu0 0.0
        %1975 = vmatprep.subr.mxu0 0.0
        %1976 = vmatpush1.msra.mxu0 0.0
        %1977 = vmatprep.subr.mxu0 0.0
        %1978 = vmatpush1.msra.mxu0 0.0
        %1979 = vmatprep.subr.mxu0 0.0
        %1980 = vmatpush1.msra.mxu0 0.0
        %1981 = vmatprep.subr.mxu0 0.0
        %1982 = vmatpush1.msra.mxu0 0.0
        %1983 = vmatprep.subr.mxu0 0.0
        %1984 = vmatpush1.msra.mxu0 0.0
        %1985 = vmatprep.subr.mxu0 0.0
        %1986 = vmatpush1.msra.mxu0 0.0
        %1987 = vmatprep.mubr.f32.mxu0 0.0
        %1988 = vmatmul.mubr.f32.gmra.mrb[0].mxu0 %v1921
        %v1989 = vpop.f32.mrb[0].mxu0
        %v1990 = vadd.f32 %v1918, %v1989
        %v1991 = vpop.f32.mrb[0].mxu0
        %1992 = vdwg.mxu0
        %v1993 = vmul.f32 %v1990, 0.5
        %v1994 = vmul.f32 %v1990, 0.044715
        %v1995 = vmul.f32 %v1994, %v1990
        %v1996 = vmul.f32 %v1995, %v1990
        %v1997 = vadd.f32 %v1990, %v1996
        %v1998 = vmul.f32 %v1997, 0.7978846
        %v1999 = vtanh.pop %v1998
        %v2000 = vadd.f32 %v1999, 1.0
        %v2001 = vmul.f32 %v1993, %v2000
        %v2002 = vld [vmem:[%s14] sm:$0xff]
        %v2003 = vld [vmem:[%s14 + $0x8] sm:$0xff]
        %v2004 = vld [vmem:[%s14 + $0x10] sm:$0xff]
        %v2005 = vld [vmem:[%s14 + $0x18] sm:$0xff]
        %v2006 = vld [vmem:[%s14 + $0x20] sm:$0xff]
        %v2007 = vld [vmem:[%s14 + $0x28] sm:$0xff]
        %v2008 = vld [vmem:[%s14 + $0x30] sm:$0xff]
        %v2009 = vld [vmem:[%s14 + $0x38] sm:$0xff]
        %v2010 = vld [vmem:[%s14 + $0x40] sm:$0xff]
        %v2011 = vld [vmem:[%s14 + $0x48] sm:$0xff]
        %v2012 = vld [vmem:[%s14 + $0x50] sm:$0xff]
        %v2013 = vld [vmem:[%s14 + $0x58] sm:$0xff]
        %v2014 = vld [vmem:[%s14 + $0x60] sm:$0xff]
        %v2015 = vld [vmem:[%s14 + $0x68] sm:$0xff]
        %v2016 = vld [vmem:[%s14 + $0x70] sm:$0xff]
        %v2017 = vld [vmem:[%s14 + $0x78] sm:$0xff]
        %v2018 = vld [vmem:[%s15] sm:$0x1]
        %v2020 = vlaneseq
        %v2021 = vshrl.u32 %v2020, 7
        %v2022 = vsub.s32 0, %v2021
        %v2023 = vrot.slane %v2018, %v2022
        %2025 = vmatprep.subr.mxu0 0.0
        %2026 = vmatpush1.msra.mxu0 %v2002
        %2027 = vmatprep.subr.mxu0 0.0
        %2028 = vmatpush1.msra.mxu0 %v2003
        %2029 = vmatprep.subr.mxu0 0.0
        %2030 = vmatpush1.msra.mxu0 %v2004
        %2031 = vmatprep.subr.mxu0 0.0
        %2032 = vmatpush1.msra.mxu0 %v2005
        %2033 = vmatprep.subr.mxu0 0.0
        %2034 = vmatpush1.msra.mxu0 %v2006
        %2035 = vmatprep.subr.mxu0 0.0
        %2036 = vmatpush1.msra.mxu0 %v2007
        %2037 = vmatprep.subr.mxu0 0.0
        %2038 = vmatpush1.msra.mxu0 %v2008
        %2039 = vmatprep.subr.mxu0 0.0
        %2040 = vmatpush1.msra.mxu0 %v2009
        %2041 = vmatprep.subr.mxu0 0.0
        %2042 = vmatpush1.msra.mxu0 %v2010
        %2043 = vmatprep.subr.mxu0 0.0
        %2044 = vmatpush1.msra.mxu0 %v2011
        %2045 = vmatprep.subr.mxu0 0.0
        %2046 = vmatpush1.msra.mxu0 %v2012
        %2047 = vmatprep.subr.mxu0 0.0
        %2048 = vmatpush1.msra.mxu0 %v2013
        %2049 = vmatprep.subr.mxu0 0.0
        %2050 = vmatpush1.msra.mxu0 %v2014
        %2051 = vmatprep.subr.mxu0 0.0
        %2052 = vmatpush1.msra.mxu0 %v2015
        %2053 = vmatprep.subr.mxu0 0.0
        %2054 = vmatpush1.msra.mxu0 %v2016
        %2055 = vmatprep.subr.mxu0 0.0
        %2056 = vmatpush1.msra.mxu0 %v2017
        %2057 = vmatprep.subr.mxu0 0.0
        %2058 = vmatpush1.msra.mxu0 0.0
        %2059 = vmatprep.subr.mxu0 0.0
        %2060 = vmatpush1.msra.mxu0 0.0
        %2061 = vmatprep.subr.mxu0 0.0
        %2062 = vmatpush1.msra.mxu0 0.0
        %2063 = vmatprep.subr.mxu0 0.0
        %2064 = vmatpush1.msra.mxu0 0.0
        %2065 = vmatprep.subr.mxu0 0.0
        %2066 = vmatpush1.msra.mxu0 0.0
        %2067 = vmatprep.subr.mxu0 0.0
        %2068 = vmatpush1.msra.mxu0 0.0
        %2069 = vmatprep.subr.mxu0 0.0
        %2070 = vmatpush1.msra.mxu0 0.0
        %2071 = vmatprep.subr.mxu0 0.0
        %2072 = vmatpush1.msra.mxu0 0.0
        %2073 = vmatprep.subr.mxu0 0.0
        %2074 = vmatpush1.msra.mxu0 0.0
        %2075 = vmatprep.subr.mxu0 0.0
        %2076 = vmatpush1.msra.mxu0 0.0
        %2077 = vmatprep.subr.mxu0 0.0
        %2078 = vmatpush1.msra.mxu0 0.0
        %2079 = vmatprep.subr.mxu0 0.0
        %2080 = vmatpush1.msra.mxu0 0.0
        %2081 = vmatprep.subr.mxu0 0.0
        %2082 = vmatpush1.msra.mxu0 0.0
        %2083 = vmatprep.subr.mxu0 0.0
        %2084 = vmatpush1.msra.mxu0 0.0
        %2085 = vmatprep.subr.mxu0 0.0
        %2086 = vmatpush1.msra.mxu0 0.0
        %2087 = vmatprep.subr.mxu0 0.0
        %2088 = vmatpush1.msra.mxu0 0.0
        %2089 = vmatprep.mubr.f32.mxu0 0.0
        %2090 = vmatmul.mubr.f32.gmra.mrb[0].mxu0 %v2001
        %v2091 = vpop.f32.mrb[0].mxu0
        %v2092 = vadd.f32 %v2023, %v2091
        %v2093 = vpop.f32.mrb[0].mxu0
        %2094 = vdwg.mxu0
        %v2095 = vadd.f32 %v2092, %v1908
        %v2096 = vsel %vm833, %v2095, 0.0
        %2097 = vadd.xlane.f32.xlu0 %v2096
        %v2098 = vpop.xlane.xlu0 %2097
        %v2099 = vmul.f32 %v2098, %v1882
        %v2100 = vsub.f32 %v2095, %v2099
        %v2101 = vmul.f32 %v2100, %v2100
        %v2102 = vsel %vm833, %v2101, 0.0
        %2103 = vadd.xlane.f32.xlu0 %v2102
        %v2104 = vpop.xlane.xlu0 %2103
        %v2105 = vmul.f32 %v2104, %v1882
        %v2106 = vadd.f32 %v2105, 1e-12
        %v2107 = vrsqrt.pop %v2106
        %v2108 = vmul.f32 %v2100, %v2107
        %v2109 = vld [vmem:[%s16] sm:$0x1]
        %v2111 = vlaneseq
        %v2112 = vshrl.u32 %v2111, 7
        %v2113 = vsub.s32 0, %v2112
        %v2114 = vrot.slane %v2109, %v2113
        %v2116 = vmul.f32 %v2108, %v2114
        %v2117 = vld [vmem:[%s17] sm:$0x1]
        %v2119 = vlaneseq
        %v2120 = vshrl.u32 %v2119, 7
        %v2121 = vsub.s32 0, %v2120
        %v2122 = vrot.slane %v2117, %v2121
        %v2124 = vadd.f32 %v2116, %v2122
        %2125 = vst.msk [vmem:[%s615] sm:$0xff] %vm833, %v2124
        %s2126 = sand.u32 %s445, 1
        %s2127 = scalar_lea.sflag [#allocation6], %s2126
        %s2128 = sand.u32 %s445, 1
        %s2129 = smul.addr %s2128, 8
        %s2130 = scalar_lea.vmem [#allocation7], %s2129
        // Predicated region
        $region101: #{tpu_custom_call.1} parent=91 // pred_check
          %p2131 = pneg %p455
        $region102: #{tpu_custom_call.1} parent=91 // pred_check_branch
          %2133 = sbr.rel (%p2131) target = $region104
        $region103: #{tpu_custom_call.1} parent=91 // pred_region
          %s2135 = ssub.s32 128, 128
          %2136 = vsyncadd %s2127, %s2135
          %s2137 = sadd.s32 %s40, %s39
          %s2138 = smul.addr %s2137, 128
          %s2139 = scalar_lea.hbm %s18, %s2138
          %s2141 = sshll.u32 %s2130, 4
          %s2142 = int_to_ptr.vmem [resolvable:$true] %s2141
          %2144 = dma.vmem_to_hbm [thread:$0]  %s2142, 128, %s2139, %s2127
        $region104: #{tpu_custom_call.1} parent=91 // pred_fallthru
          _
      $region92: #{tpu_custom_call.1} parent=5 // pred_fallthru
        _
      %p2145 = scmp.le.s32.totalorder 2, %s30
      // Predicated region
      $region105: #{tpu_custom_call.1} parent=5 // pred_check
        %p2146 = pneg %p2145
      $region106: #{tpu_custom_call.1} parent=5 // pred_check_branch
        %2148 = sbr.rel (%p2146) target = $region108
      $region107: #{tpu_custom_call.1} parent=5 // pred_region
        %s2149 = ssub.s32 %s30, 2
        // Predicated region
        $region109: #{tpu_custom_call.1} parent=107 // pred_check
          %p2150 = pneg %p461
        $region110: #{tpu_custom_call.1} parent=107 // pred_check_branch
          %2152 = sbr.rel (%p2150) target = $region112
        $region111: #{tpu_custom_call.1} parent=107 // pred_region
          %s2153 = sand.u32 %s446, 1
          %s2154 = scalar_lea.sflag [#allocation6], %s2153
          %s2155 = sand.u32 %s446, 1
          %s2156 = smul.addr %s2155, 8
          %s2157 = scalar_lea.vmem [#allocation7], %s2156
          %2158 = dma.done %s2154, 128
        $region112: #{tpu_custom_call.1} parent=107 // pred_fallthru
          _
      $region108: #{tpu_custom_call.1} parent=5 // pred_fallthru
        _
    $region6: #{tpu_custom_call.1} parent=1 // loop_footer
      %s34 = sadd.s32 1, %s30
    $region7: #{tpu_custom_call.1} parent=1 // loop_footer_branch
      %29 = sbr.rel target = $region3
    $region8: #{tpu_custom_call.1} parent=1 // loop_exit
      _
    %2159 = vsyncpa [#allocation5], 1
    %s2160 = scalar_lea.sflag [#allocation5], 1
    %2161 = vsyncpa %s2160, 1
    %2162 = vsyncpa [#allocation6], 1
    %s2163 = scalar_lea.sflag [#allocation6], 1
    %2164 = vsyncpa %s2163, 1

// kernel: tpu_custom_call.1
$region0: #{tpu_custom_call.1}
  #allocation0 [shape = 'u32[]', space=smem, size = 0x4, offset = 0x4, fixed_abs, tag = 'smem constant byte address 0x4 - core index']
  #allocation1 [shape = 'u32[144,128]{1,0:T(1,128)}', space=vmem, size = 0x12000, scoped, tag = 'internal scratch']
  #allocation2 [shape = 'f32[4,8,8]{2,1,0:T(8,128)}', space=vmem, size = 0x4000, scoped, tag = 'scratch operand']
  #allocation3 [shape = 'f32[4,8,8]{2,1,0:T(8,128)}', space=vmem, size = 0x4000, scoped, tag = 'scratch operand']
  %s0 = inlined_call_operand.hbm [shape: f32[2,8,32], index: 0, kind: input, shape index: {}]
  %s1 = inlined_call_operand.vmem [shape: f32[2,1,8], index: 1, kind: input, shape index: {}]
  %s2 = inlined_call_operand.vmem [shape: f32[32,32], index: 2, kind: input, shape index: {}]
  %s3 = inlined_call_operand.vmem [shape: f32[1,32], index: 3, kind: input, shape index: {}]
  %s4 = inlined_call_operand.vmem [shape: f32[32,32], index: 4, kind: input, shape index: {}]
  %s5 = inlined_call_operand.vmem [shape: f32[1,32], index: 5, kind: input, shape index: {}]
  %s6 = inlined_call_operand.vmem [shape: f32[32,32], index: 6, kind: input, shape index: {}]
  %s7 = inlined_call_operand.vmem [shape: f32[1,32], index: 7, kind: input, shape index: {}]
  %s8 = inlined_call_operand.vmem [shape: f32[4,8,32], index: 8, kind: input, shape index: {}]
  %s9 = inlined_call_operand.vmem [shape: f32[1,32], index: 9, kind: input, shape index: {}]
  %s10 = inlined_call_operand.vmem [shape: f32[1,32], index: 10, kind: input, shape index: {}]
  %s11 = inlined_call_operand.vmem [shape: f32[1,32], index: 11, kind: input, shape index: {}]
  %s12 = inlined_call_operand.vmem [shape: f32[32,128], index: 12, kind: input, shape index: {}]
  %s13 = inlined_call_operand.vmem [shape: f32[1,128], index: 13, kind: input, shape index: {}]
  %s14 = inlined_call_operand.vmem [shape: f32[128,32], index: 14, kind: input, shape index: {}]
  %s15 = inlined_call_operand.vmem [shape: f32[1,32], index: 15, kind: input, shape index: {}]
  %s16 = inlined_call_operand.vmem [shape: f32[1,32], index: 16, kind: input, shape index: {}]
  %s17 = inlined_call_operand.vmem [shape: f32[1,32], index: 17, kind: input, shape index: {}]
  %s18 = inlined_call_operand.hbm [shape: f32[2,8,32], index: 18, kind: output, shape index: {}]
  %s19 = sld [smem:[#allocation0]]
  $region113: #{tpu_custom_call.1} parent=0
    _
  %s21 = ssub.s32 1, %s19
  %s22 = scalar_select 0, %s21, %s19
  $region1: #{tpu_custom_call.1} parent=0
    #allocation4 [shape = 'u8[8192]{0}', space=vmem, size = 0x2000, scoped, tag = 'input window, operand 0']
    #allocation5 [shape = 's32[2]{0}', space=sflag, size = 0x8, scoped, tag = 'scoped memory for tpu_custom_call.1']
    #allocation6 [shape = 's32[2]{0}', space=sflag, size = 0x8, scoped, tag = 'scoped memory for tpu_custom_call.1']
    #allocation7 [shape = 'u8[8192]{0}', space=vmem, size = 0x2000, scoped, tag = 'output window, operand 0']
    %23 = vsyncpa [#allocation5], 0
    %s24 = scalar_lea.sflag [#allocation5], 1
    %25 = vsyncpa %s24, 0
    %26 = vsyncpa [#allocation6], 0
    %s27 = scalar_lea.sflag [#allocation6], 1
    %28 = vsyncpa %s27, 0
    loop: start=0, step=1, limit=4
    $region2: #{tpu_custom_call.1} parent=1 // loop_pre_header
      _
    $region3: #{tpu_custom_call.1} parent=1 // loop_header
      %s30 = sphi 0, %s34
      %p31 = scmp.ge.s32.totalorder %s30, 4
      %s37 = sphi 0, %s49
      %s38 = sphi 0, %s45
      %s39 = sphi 0, %s37
      %s40 = sphi 0, %s38
      %s41 = sphi 0, %s39
      %s42 = sphi 0, %s40
      %s52 = sphi 0, %s54
      %s55 = sphi 0, %s52
      %s56 = sphi 0, %s55
      %s72 = sphi 0, %s56
      %s78 = sphi 0, %s80
      %s81 = sphi 0, %s78
      %s82 = sphi 0, %s81
      %s98 = sphi 0, %s82
      %s102 = sphi 0, %s102
      %s104 = sphi 0, %s102
      %s105 = sphi 0, %s104
      %s119 = sphi 0, %s105
      %s123 = sphi 0, %s123
      %s125 = sphi 0, %s123
      %s126 = sphi 0, %s125
      %s140 = sphi 0, %s126
      %s144 = sphi 0, %s144
      %s146 = sphi 0, %s144
      %s147 = sphi 0, %s146
      %s161 = sphi 0, %s147
      %s165 = sphi 0, %s165
      %s167 = sphi 0, %s165
      %s168 = sphi 0, %s167
      %s182 = sphi 0, %s168
      %s186 = sphi 0, %s186
      %s188 = sphi 0, %s186
      %s189 = sphi 0, %s188
      %s203 = sphi 0, %s189
      %s207 = sphi 0, %s207
      %s209 = sphi 0, %s207
      %s210 = sphi 0, %s209
      %s224 = sphi 0, %s210
      %s228 = sphi 0, %s228
      %s230 = sphi 0, %s228
      %s231 = sphi 0, %s230
      %s245 = sphi 0, %s231
      %s249 = sphi 0, %s249
      %s251 = sphi 0, %s249
      %s252 = sphi 0, %s251
      %s266 = sphi 0, %s252
      %s270 = sphi 0, %s270
      %s272 = sphi 0, %s270
      %s273 = sphi 0, %s272
      %s287 = sphi 0, %s273
      %s291 = sphi 0, %s291
      %s293 = sphi 0, %s291
      %s294 = sphi 0, %s293
      %s308 = sphi 0, %s294
      %s312 = sphi 0, %s312
      %s314 = sphi 0, %s312
      %s315 = sphi 0, %s314
      %s329 = sphi 0, %s315
      %s333 = sphi 0, %s333
      %s335 = sphi 0, %s333
      %s336 = sphi 0, %s335
      %s350 = sphi 0, %s336
      %s354 = sphi 0, %s354
      %s356 = sphi 0, %s354
      %s357 = sphi 0, %s356
      %s371 = sphi 0, %s357
      %s375 = sphi 0, %s375
      %s377 = sphi 0, %s375
      %s378 = sphi 0, %s377
      %s392 = sphi 0, %s378
      %s396 = sphi 0, %s396
      %s398 = sphi 0, %s396
      %s399 = sphi 0, %s398
      %s413 = sphi 0, %s399
      %s417 = sphi 0, %s417
      %s419 = sphi 0, %s417
      %s420 = sphi 0, %s419
      %s434 = sphi 0, %s420
      %s442 = sphi 0, %s444
      %s445 = sphi 0, %s442
      %s446 = sphi 0, %s445
      %s462 = sphi 0, %s446
    $region4: #{tpu_custom_call.1} parent=1 // loop_header_branch
      %33 = sbr.rel (%p31) target = $region8
    $region5: #{tpu_custom_call.1} parent=1 // loop_body
      %s35 = ssub.s32 %s30, 1
      %s36 = ssub.s32 %s30, 2
      %s43 = sadd.s32 1, %s38
      %p44 = scmp.ge.s32.totalorder %s43, 1
      %s45 = scalar_select %p44, 0, %s43
      %s46 = sadd.s32 1, %s37
      %s47 = scalar_select %p44, %s46, %s37
      %p48 = scmp.ge.s32.totalorder %s47, 2
      %s49 = scalar_select %p48, 0, %s47
      %s50 = ssub.s32 %s37, %s49
      %p51 = scmp.eq.s32.totalorder %s50, 0
      %s53 = sadd.s32 %s52, 1
      %s54 = scalar_select %p51, %s52, %s53
      %p57 = pneg %p51
      %p58 = scmp.eq.s32.totalorder %s30, 1
      %p59 = por %p57, %p58
      %p60 = scmp.ne.s32.totalorder %s52, %s55
      %p61 = scmp.eq.s32.totalorder %s30, 0
      %p62 = por %p60, %p61
      %p63 = scmp.ne.s32.totalorder %s52, %s55
      %p64 = scmp.eq.s32.totalorder %s35, 1
      %p65 = por %p63, %p64
      %p66 = scmp.ne.s32.totalorder %s55, %s56
      %p67 = scmp.eq.s32.totalorder %s35, 0
      %p68 = por %p66, %p67
      %p69 = scmp.ne.s32.totalorder %s55, %s56
      %p70 = scmp.eq.s32.totalorder %s36, 1
      %p71 = por %p69, %p70
      %p73 = scmp.ne.s32.totalorder %s56, %s72
      %p74 = scmp.eq.s32.totalorder %s36, 0
      %p75 = por %p73, %p74
      %s76 = ssub.s32 %s37, %s49
      %p77 = scmp.eq.s32.totalorder %s76, 0
      %s79 = sadd.s32 %s78, 1
      %s80 = scalar_select %p77, %s78, %s79
      %p83 = pneg %p77
      %p84 = scmp.eq.s32.totalorder %s30, 1
      %p85 = por %p83, %p84
      %p86 = scmp.ne.s32.totalorder %s78, %s81
      %p87 = scmp.eq.s32.totalorder %s30, 0
      %p88 = por %p86, %p87
      %p89 = scmp.ne.s32.totalorder %s78, %s81
      %p90 = scmp.eq.s32.totalorder %s35, 1
      %p91 = por %p89, %p90
      %p92 = scmp.ne.s32.totalorder %s81, %s82
      %p93 = scmp.eq.s32.totalorder %s35, 0
      %p94 = por %p92, %p93
      %p95 = scmp.ne.s32.totalorder %s81, %s82
      %p96 = scmp.eq.s32.totalorder %s36, 1
      %p97 = por %p95, %p96
      %p99 = scmp.ne.s32.totalorder %s82, %s98
      %p100 = scmp.eq.s32.totalorder %s36, 0
      %p101 = por %p99, %p100
      %s103 = sadd.s32 %s102, 1
      %p106 = scmp.eq.s32.totalorder %s30, 1
      %p107 = scmp.ne.s32.totalorder %s102, %s104
      %p108 = scmp.eq.s32.totalorder %s30, 0
      %p109 = por %p107, %p108
      %p110 = scmp.ne.s32.totalorder %s102, %s104
      %p111 = scmp.eq.s32.totalorder %s35, 1
      %p112 = por %p110, %p111
      %p113 = scmp.ne.s32.totalorder %s104, %s105
      %p114 = scmp.eq.s32.totalorder %s35, 0
      %p115 = por %p113, %p114
      %p116 = scmp.ne.s32.totalorder %s104, %s105
      %p117 = scmp.eq.s32.totalorder %s36, 1
      %p118 = por %p116, %p117
      %p120 = scmp.ne.s32.totalorder %s105, %s119
      %p121 = scmp.eq.s32.totalorder %s36, 0
      %p122 = por %p120, %p121
      %s124 = sadd.s32 %s123, 1
      %p127 = scmp.eq.s32.totalorder %s30, 1
      %p128 = scmp.ne.s32.totalorder %s123, %s125
      %p129 = scmp.eq.s32.totalorder %s30, 0
      %p130 = por %p128, %p129
      %p131 = scmp.ne.s32.totalorder %s123, %s125
      %p132 = scmp.eq.s32.totalorder %s35, 1
      %p133 = por %p131, %p132
      %p134 = scmp.ne.s32.totalorder %s125, %s126
      %p135 = scmp.eq.s32.totalorder %s35, 0
      %p136 = por %p134, %p135
      %p137 = scmp.ne.s32.totalorder %s125, %s126
      %p138 = scmp.eq.s32.totalorder %s36, 1
      %p139 = por %p137, %p138
      %p141 = scmp.ne.s32.totalorder %s126, %s140
      %p142 = scmp.eq.s32.totalorder %s36, 0
      %p143 = por %p141, %p142
      %s145 = sadd.s32 %s144, 1
      %p148 = scmp.eq.s32.totalorder %s30, 1
      %p149 = scmp.ne.s32.totalorder %s144, %s146
      %p150 = scmp.eq.s32.totalorder %s30, 0
      %p151 = por %p149, %p150
      %p152 = scmp.ne.s32.totalorder %s144, %s146
      %p153 = scmp.eq.s32.totalorder %s35, 1
      %p154 = por %p152, %p153
      %p155 = scmp.ne.s32.totalorder %s146, %s147
      %p156 = scmp.eq.s32.totalorder %s35, 0
      %p157 = por %p155, %p156
      %p158 = scmp.ne.s32.totalorder %s146, %s147
      %p159 = scmp.eq.s32.totalorder %s36, 1
      %p160 = por %p158, %p159
      %p162 = scmp.ne.s32.totalorder %s147, %s161
      %p163 = scmp.eq.s32.totalorder %s36, 0
      %p164 = por %p162, %p163
      %s166 = sadd.s32 %s165, 1
      %p169 = scmp.eq.s32.totalorder %s30, 1
      %p170 = scmp.ne.s32.totalorder %s165, %s167
      %p171 = scmp.eq.s32.totalorder %s30, 0
      %p172 = por %p170, %p171
      %p173 = scmp.ne.s32.totalorder %s165, %s167
      %p174 = scmp.eq.s32.totalorder %s35, 1
      %p175 = por %p173, %p174
      %p176 = scmp.ne.s32.totalorder %s167, %s168
      %p177 = scmp.eq.s32.totalorder %s35, 0
      %p178 = por %p176, %p177
      %p179 = scmp.ne.s32.totalorder %s167, %s168
      %p180 = scmp.eq.s32.totalorder %s36, 1
      %p181 = por %p179, %p180
      %p183 = scmp.ne.s32.totalorder %s168, %s182
      %p184 = scmp.eq.s32.totalorder %s36, 0
      %p185 = por %p183, %p184
      %s187 = sadd.s32 %s186, 1
      %p190 = scmp.eq.s32.totalorder %s30, 1
      %p191 = scmp.ne.s32.totalorder %s186, %s188
      %p192 = scmp.eq.s32.totalorder %s30, 0
      %p193 = por %p191, %p192
      %p194 = scmp.ne.s32.totalorder %s186, %s188
      %p195 = scmp.eq.s32.totalorder %s35, 1
      %p196 = por %p194, %p195
      %p197 = scmp.ne.s32.totalorder %s188, %s189
      %p198 = scmp.eq.s32.totalorder %s35, 0
      %p199 = por %p197, %p198
      %p200 = scmp.ne.s32.totalorder %s188, %s189
      %p201 = scmp.eq.s32.totalorder %s36, 1
      %p202 = por %p200, %p201
      %p204 = scmp.ne.s32.totalorder %s189, %s203
      %p205 = scmp.eq.s32.totalorder %s36, 0
      %p206 = por %p204, %p205
      %s208 = sadd.s32 %s207, 1
      %p211 = scmp.eq.s32.totalorder %s30, 1
      %p212 = scmp.ne.s32.totalorder %s207, %s209
      %p213 = scmp.eq.s32.totalorder %s30, 0
      %p214 = por %p212, %p213
      %p215 = scmp.ne.s32.totalorder %s207, %s209
      %p216 = scmp.eq.s32.totalorder %s35, 1
      %p217 = por %p215, %p216
      %p218 = scmp.ne.s32.totalorder %s209, %s210
      %p219 = scmp.eq.s32.totalorder %s35, 0
      %p220 = por %p218, %p219
      %p221 = scmp.ne.s32.totalorder %s209, %s210
      %p222 = scmp.eq.s32.totalorder %s36, 1
      %p223 = por %p221, %p222
      %p225 = scmp.ne.s32.totalorder %s210, %s224
      %p226 = scmp.eq.s32.totalorder %s36, 0
      %p227 = por %p225, %p226
      %s229 = sadd.s32 %s228, 1
      %p232 = scmp.eq.s32.totalorder %s30, 1
      %p233 = scmp.ne.s32.totalorder %s228, %s230
      %p234 = scmp.eq.s32.totalorder %s30, 0
      %p235 = por %p233, %p234
      %p236 = scmp.ne.s32.totalorder %s228, %s230
      %p237 = scmp.eq.s32.totalorder %s35, 1
      %p238 = por %p236, %p237
      %p239 = scmp.ne.s32.totalorder %s230, %s231
      %p240 = scmp.eq.s32.totalorder %s35, 0
      %p241 = por %p239, %p240
      %p242 = scmp.ne.s32.totalorder %s230, %s231
      %p243 = scmp.eq.s32.totalorder %s36, 1
      %p244 = por %p242, %p243
      %p246 = scmp.ne.s32.totalorder %s231, %s245
      %p247 = scmp.eq.s32.totalorder %s36, 0
      %p248 = por %p246, %p247
      %s250 = sadd.s32 %s249, 1
      %p253 = scmp.eq.s32.totalorder %s30, 1
      %p254 = scmp.ne.s32.totalorder %s249, %s251
      %p255 = scmp.eq.s32.totalorder %s30, 0
      %p256 = por %p254, %p255
      %p257 = scmp.ne.s32.totalorder %s249, %s251
      %p258 = scmp.eq.s32.totalorder %s35, 1
      %p259 = por %p257, %p258
      %p260 = scmp.ne.s32.totalorder %s251, %s252
      %p261 = scmp.eq.s32.totalorder %s35, 0
      %p262 = por %p260, %p261
      %p263 = scmp.ne.s32.totalorder %s251, %s252
      %p264 = scmp.eq.s32.totalorder %s36, 1
      %p265 = por %p263, %p264
      %p267 = scmp.ne.s32.totalorder %s252, %s266
      %p268 = scmp.eq.s32.totalorder %s36, 0
      %p269 = por %p267, %p268
      %s271 = sadd.s32 %s270, 1
      %p274 = scmp.eq.s32.totalorder %s30, 1
      %p275 = scmp.ne.s32.totalorder %s270, %s272
      %p276 = scmp.eq.s32.totalorder %s30, 0
      %p277 = por %p275, %p276
      %p278 = scmp.ne.s32.totalorder %s270, %s272
      %p279 = scmp.eq.s32.totalorder %s35, 1
      %p280 = por %p278, %p279
      %p281 = scmp.ne.s32.totalorder %s272, %s273
      %p282 = scmp.eq.s32.totalorder %s35, 0
      %p283 = por %p281, %p282
      %p284 = scmp.ne.s32.totalorder %s272, %s273
      %p285 = scmp.eq.s32.totalorder %s36, 1
      %p286 = por %p284, %p285
      %p288 = scmp.ne.s32.totalorder %s273, %s287
      %p289 = scmp.eq.s32.totalorder %s36, 0
      %p290 = por %p288, %p289
      %s292 = sadd.s32 %s291, 1
      %p295 = scmp.eq.s32.totalorder %s30, 1
      %p296 = scmp.ne.s32.totalorder %s291, %s293
      %p297 = scmp.eq.s32.totalorder %s30, 0
      %p298 = por %p296, %p297
      %p299 = scmp.ne.s32.totalorder %s291, %s293
      %p300 = scmp.eq.s32.totalorder %s35, 1
      %p301 = por %p299, %p300
      %p302 = scmp.ne.s32.totalorder %s293, %s294
      %p303 = scmp.eq.s32.totalorder %s35, 0
      %p304 = por %p302, %p303
      %p305 = scmp.ne.s32.totalorder %s293, %s294
      %p306 = scmp.eq.s32.totalorder %s36, 1
      %p307 = por %p305, %p306
      %p309 = scmp.ne.s32.totalorder %s294, %s308
      %p310 = scmp.eq.s32.totalorder %s36, 0
      %p311 = por %p309, %p310
      %s313 = sadd.s32 %s312, 1
      %p316 = scmp.eq.s32.totalorder %s30, 1
      %p317 = scmp.ne.s32.totalorder %s312, %s314
      %p318 = scmp.eq.s32.totalorder %s30, 0
      %p319 = por %p317, %p318
      %p320 = scmp.ne.s32.totalorder %s312, %s314
      %p321 = scmp.eq.s32.totalorder %s35, 1
      %p322 = por %p320, %p321
      %p323 = scmp.ne.s32.totalorder %s314, %s315
      %p324 = scmp.eq.s32.totalorder %s35, 0
      %p325 = por %p323, %p324
      %p326 = scmp.ne.s32.totalorder %s314, %s315
      %p327 = scmp.eq.s32.totalorder %s36, 1
      %p328 = por %p326, %p327
      %p330 = scmp.ne.s32.totalorder %s315, %s329
      %p331 = scmp.eq.s32.totalorder %s36, 0
      %p332 = por %p330, %p331
      %s334 = sadd.s32 %s333, 1
      %p337 = scmp.eq.s32.totalorder %s30, 1
      %p338 = scmp.ne.s32.totalorder %s333, %s335
      %p339 = scmp.eq.s32.totalorder %s30, 0
      %p340 = por %p338, %p339
      %p341 = scmp.ne.s32.totalorder %s333, %s335
      %p342 = scmp.eq.s32.totalorder %s35, 1
      %p343 = por %p341, %p342
      %p344 = scmp.ne.s32.totalorder %s335, %s336
      %p345 = scmp.eq.s32.totalorder %s35, 0
      %p346 = por %p344, %p345
      %p347 = scmp.ne.s32.totalorder %s335, %s336
      %p348 = scmp.eq.s32.totalorder %s36, 1
      %p349 = por %p347, %p348
      %p351 = scmp.ne.s32.totalorder %s336, %s350
      %p352 = scmp.eq.s32.totalorder %s36, 0
      %p353 = por %p351, %p352
      %s355 = sadd.s32 %s354, 1
      %p358 = scmp.eq.s32.totalorder %s30, 1
      %p359 = scmp.ne.s32.totalorder %s354, %s356
      %p360 = scmp.eq.s32.totalorder %s30, 0
      %p361 = por %p359, %p360
      %p362 = scmp.ne.s32.totalorder %s354, %s356
      %p363 = scmp.eq.s32.totalorder %s35, 1
      %p364 = por %p362, %p363
      %p365 = scmp.ne.s32.totalorder %s356, %s357
      %p366 = scmp.eq.s32.totalorder %s35, 0
      %p367 = por %p365, %p366
      %p368 = scmp.ne.s32.totalorder %s356, %s357
      %p369 = scmp.eq.s32.totalorder %s36, 1
      %p370 = por %p368, %p369
      %p372 = scmp.ne.s32.totalorder %s357, %s371
      %p373 = scmp.eq.s32.totalorder %s36, 0
      %p374 = por %p372, %p373
      %s376 = sadd.s32 %s375, 1
      %p379 = scmp.eq.s32.totalorder %s30, 1
      %p380 = scmp.ne.s32.totalorder %s375, %s377
      %p381 = scmp.eq.s32.totalorder %s30, 0
      %p382 = por %p380, %p381
      %p383 = scmp.ne.s32.totalorder %s375, %s377
      %p384 = scmp.eq.s32.totalorder %s35, 1
      %p385 = por %p383, %p384
      %p386 = scmp.ne.s32.totalorder %s377, %s378
      %p387 = scmp.eq.s32.totalorder %s35, 0
      %p388 = por %p386, %p387
      %p389 = scmp.ne.s32.totalorder %s377, %s378
      %p390 = scmp.eq.s32.totalorder %s36, 1
      %p391 = por %p389, %p390
      %p393 = scmp.ne.s32.totalorder %s378, %s392
      %p394 = scmp.eq.s32.totalorder %s36, 0
      %p395 = por %p393, %p394
      %s397 = sadd.s32 %s396, 1
      %p400 = scmp.eq.s32.totalorder %s30, 1
      %p401 = scmp.ne.s32.totalorder %s396, %s398
      %p402 = scmp.eq.s32.totalorder %s30, 0
      %p403 = por %p401, %p402
      %p404 = scmp.ne.s32.totalorder %s396, %s398
      %p405 = scmp.eq.s32.totalorder %s35, 1
      %p406 = por %p404, %p405
      %p407 = scmp.ne.s32.totalorder %s398, %s399
      %p408 = scmp.eq.s32.totalorder %s35, 0
      %p409 = por %p407, %p408
      %p410 = scmp.ne.s32.totalorder %s398, %s399
      %p411 = scmp.eq.s32.totalorder %s36, 1
      %p412 = por %p410, %p411
      %p414 = scmp.ne.s32.totalorder %s399, %s413
      %p415 = scmp.eq.s32.totalorder %s36, 0
      %p416 = por %p414, %p415
      %s418 = sadd.s32 %s417, 1
      %p421 = scmp.eq.s32.totalorder %s30, 1
      %p422 = scmp.ne.s32.totalorder %s417, %s419
      %p423 = scmp.eq.s32.totalorder %s30, 0
      %p424 = por %p422, %p423
      %p425 = scmp.ne.s32.totalorder %s417, %s419
      %p426 = scmp.eq.s32.totalorder %s35, 1
      %p427 = por %p425, %p426
      %p428 = scmp.ne.s32.totalorder %s419, %s420
      %p429 = scmp.eq.s32.totalorder %s35, 0
      %p430 = por %p428, %p429
      %p431 = scmp.ne.s32.totalorder %s419, %s420
      %p432 = scmp.eq.s32.totalorder %s36, 1
      %p433 = por %p431, %p432
      %p435 = scmp.ne.s32.totalorder %s420, %s434
      %p436 = scmp.eq.s32.totalorder %s36, 0
      %p437 = por %p435, %p436
      %s438 = ssub.s32 %s37, %s49
      %s439 = ssub.s32 %s38, %s45
      %s440 = sor.u32 %s438, %s439
      %p441 = scmp.eq.s32.totalorder %s440, 0
      %s443 = sadd.s32 %s442, 1
      %s444 = scalar_select %p441, %s442, %s443
      %p447 = pneg %p441
      %p448 = scmp.eq.s32.totalorder %s30, 1
      %p449 = por %p447, %p448
      %p450 = scmp.ne.s32.totalorder %s442, %s445
      %p451 = scmp.eq.s32.totalorder %s30, 0
      %p452 = por %p450, %p451
      %p453 = scmp.ne.s32.totalorder %s442, %s445
      %p454 = scmp.eq.s32.totalorder %s35, 1
      %p455 = por %p453, %p454
      %p456 = scmp.ne.s32.totalorder %s445, %s446
      %p457 = scmp.eq.s32.totalorder %s35, 0
      %p458 = por %p456, %p457
      %p459 = scmp.ne.s32.totalorder %s445, %s446
      %p460 = scmp.eq.s32.totalorder %s36, 1
      %p461 = por %p459, %p460
      %p463 = scmp.ne.s32.totalorder %s446, %s462
      %p464 = scmp.eq.s32.totalorder %s36, 0
      %p465 = por %p463, %p464
      %p466 = scmp.le.s32.totalorder 1, %s30
      %p467 = scmp.lt.s32.totalorder %s30, 3
      %p468 = pnand %p466, %p467
      %p469 = pneg %p468
      // Predicated region
      $region9: #{tpu_custom_call.1} parent=5 // pred_check
        _
      $region10: #{tpu_custom_call.1} parent=5 // pred_check_branch
        %471 = sbr.rel (%p468) target = $region12
      $region11: #{tpu_custom_call.1} parent=5 // pred_region
        %s472 = ssub.s32 %s30, 1
        // Predicated region
        $region13: #{tpu_custom_call.1} parent=11 // pred_check
          %p473 = pneg %p115
        $region14: #{tpu_custom_call.1} parent=11 // pred_check_branch
          %475 = sbr.rel (%p473) target = $region16
        $region15: #{tpu_custom_call.1} parent=11 // pred_region
          _
        $region16: #{tpu_custom_call.1} parent=11 // pred_fallthru
          _
        // Predicated region
        $region17: #{tpu_custom_call.1} parent=11 // pred_check
          %p476 = pneg %p136
        $region18: #{tpu_custom_call.1} parent=11 // pred_check_branch
          %478 = sbr.rel (%p476) target = $region20
        $region19: #{tpu_custom_call.1} parent=11 // pred_region
          _
        $region20: #{tpu_custom_call.1} parent=11 // pred_fallthru
          _
        // Predicated region
        $region21: #{tpu_custom_call.1} parent=11 // pred_check
          %p479 = pneg %p157
        $region22: #{tpu_custom_call.1} parent=11 // pred_check_branch
          %481 = sbr.rel (%p479) target = $region24
        $region23: #{tpu_custom_call.1} parent=11 // pred_region
          _
        $region24: #{tpu_custom_call.1} parent=11 // pred_fallthru
          _
        // Predicated region
        $region25: #{tpu_custom_call.1} parent=11 // pred_check
          %p482 = pneg %p178
        $region26: #{tpu_custom_call.1} parent=11 // pred_check_branch
          %484 = sbr.rel (%p482) target = $region28
        $region27: #{tpu_custom_call.1} parent=11 // pred_region
          _
        $region28: #{tpu_custom_call.1} parent=11 // pred_fallthru
          _
        // Predicated region
        $region29: #{tpu_custom_call.1} parent=11 // pred_check
          %p485 = pneg %p199
        $region30: #{tpu_custom_call.1} parent=11 // pred_check_branch
          %487 = sbr.rel (%p485) target = $region32
        $region31: #{tpu_custom_call.1} parent=11 // pred_region
          _
        $region32: #{tpu_custom_call.1} parent=11 // pred_fallthru
          _
        // Predicated region
        $region33: #{tpu_custom_call.1} parent=11 // pred_check
          %p488 = pneg %p220
        $region34: #{tpu_custom_call.1} parent=11 // pred_check_branch
          %490 = sbr.rel (%p488) target = $region36
        $region35: #{tpu_custom_call.1} parent=11 // pred_region
          _
        $region36: #{tpu_custom_call.1} parent=11 // pred_fallthru
          _
        // Predicated region
        $region37: #{tpu_custom_call.1} parent=11 // pred_check
          %p491 = pneg %p241
        $region38: #{tpu_custom_call.1} parent=11 // pred_check_branch
          %493 = sbr.rel (%p491) target = $region40
        $region39: #{tpu_custom_call.1} parent=11 // pred_region
          _
        $region40: #{tpu_custom_call.1} parent=11 // pred_fallthru
          _
        // Predicated region
        $region41: #{tpu_custom_call.1} parent=11 // pred_check
          %p494 = pneg %p262
        $region42: #{tpu_custom_call.1} parent=11 // pred_check_branch
          %496 = sbr.rel (%p494) target = $region44
        $region43: #{tpu_custom_call.1} parent=11 // pred_region
          _
        $region44: #{tpu_custom_call.1} parent=11 // pred_fallthru
          _
        // Predicated region
        $region45: #{tpu_custom_call.1} parent=11 // pred_check
          %p497 = pneg %p283
        $region46: #{tpu_custom_call.1} parent=11 // pred_check_branch
          %499 = sbr.rel (%p497) target = $region48
        $region47: #{tpu_custom_call.1} parent=11 // pred_region
          _
        $region48: #{tpu_custom_call.1} parent=11 // pred_fallthru
          _
        // Predicated region
        $region49: #{tpu_custom_call.1} parent=11 // pred_check
          %p500 = pneg %p304
        $region50: #{tpu_custom_call.1} parent=11 // pred_check_branch
          %502 = sbr.rel (%p500) target = $region52
        $region51: #{tpu_custom_call.1} parent=11 // pred_region
          _
        $region52: #{tpu_custom_call.1} parent=11 // pred_fallthru
          _
        // Predicated region
        $region53: #{tpu_custom_call.1} parent=11 // pred_check
          %p503 = pneg %p325
        $region54: #{tpu_custom_call.1} parent=11 // pred_check_branch
          %505 = sbr.rel (%p503) target = $region56
        $region55: #{tpu_custom_call.1} parent=11 // pred_region
          _
        $region56: #{tpu_custom_call.1} parent=11 // pred_fallthru
          _
        // Predicated region
        $region57: #{tpu_custom_call.1} parent=11 // pred_check
          %p506 = pneg %p346
        $region58: #{tpu_custom_call.1} parent=11 // pred_check_branch
          %508 = sbr.rel (%p506) target = $region60
        $region59: #{tpu_custom_call.1} parent=11 // pred_region
          _
        $region60: #{tpu_custom_call.1} parent=11 // pred_fallthru
          _
        // Predicated region
        $region61: #{tpu_custom_call.1} parent=11 // pred_check
          %p509 = pneg %p367
        $region62: #{tpu_custom_call.1} parent=11 // pred_check_branch
          %511 = sbr.rel (%p509) target = $region64
        $region63: #{tpu_custom_call.1} parent=11 // pred_region
          _
        $region64: #{tpu_custom_call.1} parent=11 // pred_fallthru
          _
        // Predicated region
        $region65: #{tpu_custom_call.1} parent=11 // pred_check
          %p512 = pneg %p388
        $region66: #{tpu_custom_call.1} parent=11 // pred_check_branch
          %514 = sbr.rel (%p512) target = $region68
        $region67: #{tpu_custom_call.1} parent=11 // pred_region
          _
        $region68: #{tpu_custom_call.1} parent=11 // pred_fallthru
          _
        // Predicated region
        $region69: #{tpu_custom_call.1} parent=11 // pred_check
          %p515 = pneg %p409
        $region70: #{tpu_custom_call.1} parent=11 // pred_check_branch
          %517 = sbr.rel (%p515) target = $region72
        $region71: #{tpu_custom_call.1} parent=11 // pred_region
          _
        $region72: #{tpu_custom_call.1} parent=11 // pred_fallthru
          _
        // Predicated region
        $region73: #{tpu_custom_call.1} parent=11 // pred_check
          %p518 = pneg %p430
        $region74: #{tpu_custom_call.1} parent=11 // pred_check_branch
          %520 = sbr.rel (%p518) target = $region76
        $region75: #{tpu_custom_call.1} parent=11 // pred_region
          _
        $region76: #{tpu_custom_call.1} parent=11 // pred_fallthru
          _
      $region12: #{tpu_custom_call.1} parent=5 // pred_fallthru
        _
      %p521 = scmp.lt.s32.totalorder %s30, 2
      // Predicated region
      $region77: #{tpu_custom_call.1} parent=5 // pred_check
        %p522 = pneg %p521
      $region78: #{tpu_custom_call.1} parent=5 // pred_check_branch
        %524 = sbr.rel (%p522) target = $region80
      $region79: #{tpu_custom_call.1} parent=5 // pred_region
        // Predicated region
        $region81: #{tpu_custom_call.1} parent=79 // pred_check
          %p525 = pneg %p62
        $region82: #{tpu_custom_call.1} parent=79 // pred_check_branch
          %527 = sbr.rel (%p525) target = $region84
        $region83: #{tpu_custom_call.1} parent=79 // pred_region
          %s528 = sand.u32 %s52, 1
          %s529 = scalar_lea.sflag [#allocation5], %s528
          %s530 = sand.u32 %s52, 1
          %s531 = smul.addr %s530, 8
          %s532 = scalar_lea.vmem [#allocation4], %s531
          %s534 = ssub.s32 128, 128
          %535 = vsyncadd %s529, %s534
          %s536 = smul.addr %s37, 128
          %s537 = scalar_lea.hbm %s0, %s536
          %s539 = sshll.u32 %s532, 4
          %s540 = int_to_ptr.vmem [resolvable:$true] %s539
          %542 = dma.hbm_to_vmem [thread:$0]  %s537, 128, %s540, %s529
        $region84: #{tpu_custom_call.1} parent=79 // pred_fallthru
          _
        // Predicated region
        $region85: #{tpu_custom_call.1} parent=79 // pred_check
          %p543 = pneg %p88
        $region86: #{tpu_custom_call.1} parent=79 // pred_check_branch
          %545 = sbr.rel (%p543) target = $region88
        $region87: #{tpu_custom_call.1} parent=79 // pred_region
          %p546 = scmp.lt.s32.totalorder %s37, 1
          %s547 = scalar_select %p546, %s37, 1
          %s548 = scalar_lea.vmem %s1, %s547
        $region88: #{tpu_custom_call.1} parent=79 // pred_fallthru
          _
      $region80: #{tpu_custom_call.1} parent=5 // pred_fallthru
        _
      %p549 = scmp.le.s32.totalorder 1, %s30
      %p550 = scmp.lt.s32.totalorder %s30, 3
      %p551 = pnand %p549, %p550
      %p552 = pneg %p551
      // Predicated region
      $region89: #{tpu_custom_call.1} parent=5 // pred_check
        _
      $region90: #{tpu_custom_call.1} parent=5 // pred_check_branch
        %554 = sbr.rel (%p551) target = $region92
      $region91: #{tpu_custom_call.1} parent=5 // pred_region
        %s555 = ssub.s32 %s30, 1
        %s556 = sand.u32 %s55, 1
        %s557 = scalar_lea.sflag [#allocation5], %s556
        %s558 = sand.u32 %s55, 1
        %s559 = smul.addr %s558, 8
        %s560 = scalar_lea.vmem [#allocation4], %s559
        // Predicated region
        $region93: #{tpu_custom_call.1} parent=91 // pred_check
          %p561 = pneg %p68
        $region94: #{tpu_custom_call.1} parent=91 // pred_check_branch
          %563 = sbr.rel (%p561) target = $region96
        $region95: #{tpu_custom_call.1} parent=91 // pred_region
          %564 = dma.done %s557, 128
        $region96: #{tpu_custom_call.1} parent=91 // pred_fallthru
          _
        %s565 = sand.u32 %s55, 1
        %s566 = scalar_lea.sflag [#allocation5], %s565
        %s567 = sand.u32 %s55, 1
        %s568 = smul.addr %s567, 8
        %s569 = scalar_lea.vmem [#allocation4], %s568
        %p570 = pneg %p68
        %p571 = pneg %p65
        %p572 = scmp.lt.s32.totalorder %s39, 1
        %s573 = scalar_select %p572, %s39, 1
        %s574 = scalar_lea.vmem %s1, %s573
        %p575 = pneg %p94
        %p576 = pneg %p91
        %p577 = pneg %p115
        %p578 = pneg %p112
        %p579 = pneg %p136
        %p580 = pneg %p133
        %p581 = pneg %p157
        %p582 = pneg %p154
        %p583 = pneg %p178
        %p584 = pneg %p175
        %p585 = pneg %p199
        %p586 = pneg %p196
        %p587 = pneg %p220
        %p588 = pneg %p217
        %p589 = pneg %p241
        %p590 = pneg %p238
        %p591 = pneg %p262
        %p592 = pneg %p259
        %p593 = pneg %p283
        %p594 = pneg %p280
        %p595 = pneg %p304
        %p596 = pneg %p301
        %p597 = pneg %p325
        %p598 = pneg %p322
        %p599 = pneg %p346
        %p600 = pneg %p343
        %p601 = pneg %p367
        %p602 = pneg %p364
        %p603 = pneg %p388
        %p604 = pneg %p385
        %p605 = pneg %p409
        %p606 = pneg %p406
        %p607 = pneg %p430
        %p608 = pneg %p427
        %p609 = pneg %p458
        %p610 = pneg %p455
        %s611 = sand.u32 %s445, 1
        %s612 = scalar_lea.sflag [#allocation6], %s611
        %s613 = sand.u32 %s445, 1
        %s614 = smul.addr %s613, 8
        %s615 = scalar_lea.vmem [#allocation7], %s614
        %p616 = scmp.lt.s32.totalorder %s39, 1
        %s617 = scalar_select %p616, %s39, 1
        %s618 = scalar_lea.vmem %s1, %s617
        %p619 = scmp.eq.s32.totalorder %s40, 0
        // Predicated region
        $region97: #{tpu_custom_call.1} parent=91 // pred_check
          %p620 = pneg %p619
        $region98: #{tpu_custom_call.1} parent=91 // pred_check_branch
          %622 = sbr.rel (%p620) target = $region100
        $region99: #{tpu_custom_call.1} parent=91 // pred_region
          %v623 = vld [vmem:[%s560] sm:$0xff]
          %v624 = vld [vmem:[%s4] sm:$0xff]
          %v625 = vld [vmem:[%s4 + $0x8] sm:$0xff]
          %v626 = vld [vmem:[%s4 + $0x10] sm:$0xff]
          %v627 = vld [vmem:[%s4 + $0x18] sm:$0xff]
          %v628 = vld [vmem:[%s5] sm:$0x1]
          %v630 = vlaneseq
          %v631 = vshrl.u32 %v630, 7
          %v632 = vsub.s32 0, %v631
          %v633 = vrot.slane %v628, %v632
          %vm635 = vcmask 261120
          %v637 = vsel %vm635, %v623, 0
          %639 = vmatprep.subr.mxu0 0.0
          %640 = vmatpush1.msra.mxu0 %v624
          %641 = vmatprep.subr.mxu0 0.0
          %642 = vmatpush1.msra.mxu0 %v625
          %643 = vmatprep.subr.mxu0 0.0
          %644 = vmatpush1.msra.mxu0 %v626
          %645 = vmatprep.subr.mxu0 0.0
          %646 = vmatpush1.msra.mxu0 %v627
          %647 = vmatprep.subr.mxu0 0.0
          %648 = vmatpush1.msra.mxu0 0.0
          %649 = vmatprep.subr.mxu0 0.0
          %650 = vmatpush1.msra.mxu0 0.0
          %651 = vmatprep.subr.mxu0 0.0
          %652 = vmatpush1.msra.mxu0 0.0
          %653 = vmatprep.subr.mxu0 0.0
          %654 = vmatpush1.msra.mxu0 0.0
          %655 = vmatprep.subr.mxu0 0.0
          %656 = vmatpush1.msra.mxu0 0.0
          %657 = vmatprep.subr.mxu0 0.0
          %658 = vmatpush1.msra.mxu0 0.0
          %659 = vmatprep.subr.mxu0 0.0
          %660 = vmatpush1.msra.mxu0 0.0
          %661 = vmatprep.subr.mxu0 0.0
          %662 = vmatpush1.msra.mxu0 0.0
          %663 = vmatprep.subr.mxu0 0.0
          %664 = vmatpush1.msra.mxu0 0.0
          %665 = vmatprep.subr.mxu0 0.0
          %666 = vmatpush1.msra.mxu0 0.0
          %667 = vmatprep.subr.mxu0 0.0
          %668 = vmatpush1.msra.mxu0 0.0
          %669 = vmatprep.subr.mxu0 0.0
          %670 = vmatpush1.msra.mxu0 0.0
          %671 = vmatprep.subr.mxu0 0.0
          %672 = vmatpush1.msra.mxu0 0.0
          %673 = vmatprep.subr.mxu0 0.0
          %674 = vmatpush1.msra.mxu0 0.0
          %675 = vmatprep.subr.mxu0 0.0
          %676 = vmatpush1.msra.mxu0 0.0
          %677 = vmatprep.subr.mxu0 0.0
          %678 = vmatpush1.msra.mxu0 0.0
          %679 = vmatprep.subr.mxu0 0.0
          %680 = vmatpush1.msra.mxu0 0.0
          %681 = vmatprep.subr.mxu0 0.0
          %682 = vmatpush1.msra.mxu0 0.0
          %683 = vmatprep.subr.mxu0 0.0
          %684 = vmatpush1.msra.mxu0 0.0
          %685 = vmatprep.subr.mxu0 0.0
          %686 = vmatpush1.msra.mxu0 0.0
          %687 = vmatprep.subr.mxu0 0.0
          %688 = vmatpush1.msra.mxu0 0.0
          %689 = vmatprep.subr.mxu0 0.0
          %690 = vmatpush1.msra.mxu0 0.0
          %691 = vmatprep.subr.mxu0 0.0
          %692 = vmatpush1.msra.mxu0 0.0
          %693 = vmatprep.subr.mxu0 0.0
          %694 = vmatpush1.msra.mxu0 0.0
          %695 = vmatprep.subr.mxu0 0.0
          %696 = vmatpush1.msra.mxu0 0.0
          %697 = vmatprep.subr.mxu0 0.0
          %698 = vmatpush1.msra.mxu0 0.0
          %699 = vmatprep.subr.mxu0 0.0
          %700 = vmatpush1.msra.mxu0 0.0
          %701 = vmatprep.subr.mxu0 0.0
          %702 = vmatpush1.msra.mxu0 0.0
          %703 = vmatprep.mubr.f32.mxu0 0.0
          %704 = vmatmul.mubr.f32.gmra.mrb[0].mxu0 %v637
          %v705 = vpop.f32.mrb[0].mxu0
          %v706 = vadd.f32 %v633, %v705
          %v707 = vpop.f32.mrb[0].mxu0
          %708 = vdwg.mxu0
          %v709 = vld [vmem:[%s6] sm:$0xff]
          %v710 = vld [vmem:[%s6 + $0x8] sm:$0xff]
          %v711 = vld [vmem:[%s6 + $0x10] sm:$0xff]
          %v712 = vld [vmem:[%s6 + $0x18] sm:$0xff]
          %v713 = vld [vmem:[%s7] sm:$0x1]
          %v715 = vlaneseq
          %v716 = vshrl.u32 %v715, 7
          %v717 = vsub.s32 0, %v716
          %v718 = vrot.slane %v713, %v717
          %720 = vmatprep.subr.mxu0 0.0
          %721 = vmatpush1.msra.mxu0 %v709
          %722 = vmatprep.subr.mxu0 0.0
          %723 = vmatpush1.msra.mxu0 %v710
          %724 = vmatprep.subr.mxu0 0.0
          %725 = vmatpush1.msra.mxu0 %v711
          %726 = vmatprep.subr.mxu0 0.0
          %727 = vmatpush1.msra.mxu0 %v712
          %728 = vmatprep.subr.mxu0 0.0
          %729 = vmatpush1.msra.mxu0 0.0
          %730 = vmatprep.subr.mxu0 0.0
          %731 = vmatpush1.msra.mxu0 0.0
          %732 = vmatprep.subr.mxu0 0.0
          %733 = vmatpush1.msra.mxu0 0.0
          %734 = vmatprep.subr.mxu0 0.0
          %735 = vmatpush1.msra.mxu0 0.0
          %736 = vmatprep.subr.mxu0 0.0
          %737 = vmatpush1.msra.mxu0 0.0
          %738 = vmatprep.subr.mxu0 0.0
          %739 = vmatpush1.msra.mxu0 0.0
          %740 = vmatprep.subr.mxu0 0.0
          %741 = vmatpush1.msra.mxu0 0.0
          %742 = vmatprep.subr.mxu0 0.0
          %743 = vmatpush1.msra.mxu0 0.0
          %744 = vmatprep.subr.mxu0 0.0
          %745 = vmatpush1.msra.mxu0 0.0
          %746 = vmatprep.subr.mxu0 0.0
          %747 = vmatpush1.msra.mxu0 0.0
          %748 = vmatprep.subr.mxu0 0.0
          %749 = vmatpush1.msra.mxu0 0.0
          %750 = vmatprep.subr.mxu0 0.0
          %751 = vmatpush1.msra.mxu0 0.0
          %752 = vmatprep.subr.mxu0 0.0
          %753 = vmatpush1.msra.mxu0 0.0
          %754 = vmatprep.subr.mxu0 0.0
          %755 = vmatpush1.msra.mxu0 0.0
          %756 = vmatprep.subr.mxu0 0.0
          %757 = vmatpush1.msra.mxu0 0.0
          %758 = vmatprep.subr.mxu0 0.0
          %759 = vmatpush1.msra.mxu0 0.0
          %760 = vmatprep.subr.mxu0 0.0
          %761 = vmatpush1.msra.mxu0 0.0
          %762 = vmatprep.subr.mxu0 0.0
          %763 = vmatpush1.msra.mxu0 0.0
          %764 = vmatprep.subr.mxu0 0.0
          %765 = vmatpush1.msra.mxu0 0.0
          %766 = vmatprep.subr.mxu0 0.0
          %767 = vmatpush1.msra.mxu0 0.0
          %768 = vmatprep.subr.mxu0 0.0
          %769 = vmatpush1.msra.mxu0 0.0
          %770 = vmatprep.subr.mxu0 0.0
          %771 = vmatpush1.msra.mxu0 0.0
          %772 = vmatprep.subr.mxu0 0.0
          %773 = vmatpush1.msra.mxu0 0.0
          %774 = vmatprep.subr.mxu0 0.0
          %775 = vmatpush1.msra.mxu0 0.0
          %776 = vmatprep.subr.mxu0 0.0
          %777 = vmatpush1.msra.mxu0 0.0
          %778 = vmatprep.subr.mxu0 0.0
          %779 = vmatpush1.msra.mxu0 0.0
          %780 = vmatprep.subr.mxu0 0.0
          %781 = vmatpush1.msra.mxu0 0.0
          %782 = vmatprep.subr.mxu0 0.0
          %783 = vmatpush1.msra.mxu0 0.0
          %784 = vmatprep.mubr.f32.mxu0 0.0
          %785 = vmatmul.mubr.f32.gmra.mrb[0].mxu0 %v637
          %v786 = vpop.f32.mrb[0].mxu0
          %v787 = vadd.f32 %v718, %v786
          %v788 = vpop.f32.mrb[0].mxu0
          %789 = vdwg.mxu0
          %791 = vrot.lane.b32.xlu0 %v706, 120
          %v792 = vpop.permute.xlu0 %791
          %794 = vrot.lane.b32.xlu0 %v706, 112
          %v795 = vpop.permute.xlu0 %794
          %797 = vrot.lane.b32.xlu0 %v706, 104
          %v798 = vpop.permute.xlu0 %797
          %vm800 = vcmask 64512
          %801 = vst.msk [vmem:[#allocation2] sm:$0xff] %vm800, %v706
          %802 = vst.msk [vmem:[#allocation2 + $0x8] sm:$0xff] %vm800, %v792
          %803 = vst.msk [vmem:[#allocation2 + $0x10] sm:$0xff] %vm800, %v795
          %804 = vst.msk [vmem:[#allocation2 + $0x18] sm:$0xff] %vm800, %v798
          %806 = vrot.lane.b32.xlu0 %v787, 120
          %v807 = vpop.permute.xlu0 %806
          %809 = vrot.lane.b32.xlu0 %v787, 112
          %v810 = vpop.permute.xlu0 %809
          %812 = vrot.lane.b32.xlu0 %v787, 104
          %v813 = vpop.permute.xlu0 %812
          %815 = vst.msk [vmem:[#allocation3] sm:$0xff] %vm800, %v787
          %816 = vst.msk [vmem:[#allocation3 + $0x8] sm:$0xff] %vm800, %v807
          %817 = vst.msk [vmem:[#allocation3 + $0x10] sm:$0xff] %vm800, %v810
          %818 = vst.msk [vmem:[#allocation3 + $0x18] sm:$0xff] %vm800, %v813
        $region100: #{tpu_custom_call.1} parent=91 // pred_fallthru
          _
        %s819 = smul.u32 %s40, 8
        %s820 = scalar_lea.vmem %s560, %s819 [#allocation4]
        %v821 = vld [vmem:[%s820] sm:$0xff]
        %v822 = vld [vmem:[%s2] sm:$0xff]
        %v823 = vld [vmem:[%s2 + $0x8] sm:$0xff]
        %v824 = vld [vmem:[%s2 + $0x10] sm:$0xff]
        %v825 = vld [vmem:[%s2 + $0x18] sm:$0xff]
        %v826 = vld [vmem:[%s3] sm:$0x1]
        %v828 = vlaneseq
        %v829 = vshrl.u32 %v828, 7
        %v830 = vsub.s32 0, %v829
        %v831 = vrot.slane %v826, %v830
        %vm833 = vcmask 261120
        %v835 = vsel %vm833, %v821, 0
        %837 = vmatprep.subr.mxu0 0.0
        %838 = vmatpush1.msra.mxu0 %v822
        %839 = vmatprep.subr.mxu0 0.0
        %840 = vmatpush1.msra.mxu0 %v823
        %841 = vmatprep.subr.mxu0 0.0
        %842 = vmatpush1.msra.mxu0 %v824
        %843 = vmatprep.subr.mxu0 0.0
        %844 = vmatpush1.msra.mxu0 %v825
        %845 = vmatprep.subr.mxu0 0.0
        %846 = vmatpush1.msra.mxu0 0.0
        %847 = vmatprep.subr.mxu0 0.0
        %848 = vmatpush1.msra.mxu0 0.0
        %849 = vmatprep.subr.mxu0 0.0
        %850 = vmatpush1.msra.mxu0 0.0
        %851 = vmatprep.subr.mxu0 0.0
        %852 = vmatpush1.msra.mxu0 0.0
        %853 = vmatprep.subr.mxu0 0.0
        %854 = vmatpush1.msra.mxu0 0.0
        %855 = vmatprep.subr.mxu0 0.0
        %856 = vmatpush1.msra.mxu0 0.0
        %857 = vmatprep.subr.mxu0 0.0
        %858 = vmatpush1.msra.mxu0 0.0
        %859 = vmatprep.subr.mxu0 0.0
        %860 = vmatpush1.msra.mxu0 0.0
        %861 = vmatprep.subr.mxu0 0.0
        %862 = vmatpush1.msra.mxu0 0.0
        %863 = vmatprep.subr.mxu0 0.0
        %864 = vmatpush1.msra.mxu0 0.0
        %865 = vmatprep.subr.mxu0 0.0
        %866 = vmatpush1.msra.mxu0 0.0
        %867 = vmatprep.subr.mxu0 0.0
        %868 = vmatpush1.msra.mxu0 0.0
        %869 = vmatprep.subr.mxu0 0.0
        %870 = vmatpush1.msra.mxu0 0.0
        %871 = vmatprep.subr.mxu0 0.0
        %872 = vmatpush1.msra.mxu0 0.0
        %873 = vmatprep.subr.mxu0 0.0
        %874 = vmatpush1.msra.mxu0 0.0
        %875 = vmatprep.subr.mxu0 0.0
        %876 = vmatpush1.msra.mxu0 0.0
        %877 = vmatprep.subr.mxu0 0.0
        %878 = vmatpush1.msra.mxu0 0.0
        %879 = vmatprep.subr.mxu0 0.0
        %880 = vmatpush1.msra.mxu0 0.0
        %881 = vmatprep.subr.mxu0 0.0
        %882 = vmatpush1.msra.mxu0 0.0
        %883 = vmatprep.subr.mxu0 0.0
        %884 = vmatpush1.msra.mxu0 0.0
        %885 = vmatprep.subr.mxu0 0.0
        %886 = vmatpush1.msra.mxu0 0.0
        %887 = vmatprep.subr.mxu0 0.0
        %888 = vmatpush1.msra.mxu0 0.0
        %889 = vmatprep.subr.mxu0 0.0
        %890 = vmatpush1.msra.mxu0 0.0
        %891 = vmatprep.subr.mxu0 0.0
        %892 = vmatpush1.msra.mxu0 0.0
        %893 = vmatprep.subr.mxu0 0.0
        %894 = vmatpush1.msra.mxu0 0.0
        %895 = vmatprep.subr.mxu0 0.0
        %896 = vmatpush1.msra.mxu0 0.0
        %897 = vmatprep.subr.mxu0 0.0
        %898 = vmatpush1.msra.mxu0 0.0
        %899 = vmatprep.subr.mxu0 0.0
        %900 = vmatpush1.msra.mxu0 0.0
        %901 = vmatprep.mubr.f32.mxu0 0.0
        %902 = vmatmul.mubr.f32.gmra.mrb[0].mxu0 %v835
        %v903 = vpop.f32.mrb[0].mxu0
        %v904 = vadd.f32 %v831, %v903
        %v905 = vpop.f32.mrb[0].mxu0
        %906 = vdwg.mxu0
        %v907 = vmul.f32 %v904, 0.35355338
        %909 = vrot.lane.b32.xlu0 %v907, 120
        %v910 = vpop.permute.xlu0 %909
        %911 = vrot.lane.b32.xlu0 %v907, 112
        %v912 = vpop.permute.xlu0 %911
        %913 = vrot.lane.b32.xlu0 %v907, 104
        %v914 = vpop.permute.xlu0 %913
        %v915 = vld [vmem:[#allocation2] sm:$0xff]
        %v916 = vld [vmem:[#allocation2 + $0x8] sm:$0xff]
        %v917 = vld [vmem:[#allocation2 + $0x10] sm:$0xff]
        %v918 = vld [vmem:[#allocation2 + $0x18] sm:$0xff]
        %v919 = vld [vmem:[%s618] sm:$0x1]
        %v921 = vlaneseq
        %v922 = vshrl.u32 %v921, 7
        %v923 = vsub.s32 0, %v922
        %v924 = vrot.slane %v919, %v923
        %vm926 = vcmask 64512
        %v927 = vsel %vm926, %v907, 0
        %v930 = vsel %vm926, %v915, 0
        %932 = vmatprep.subr.mxu0 0.0
        %933 = vmatpush1.xpose.msra.mxu0 %v930
        %934 = vmatprep.subr.mxu0 0.0
        %935 = vmatpush1.xpose.msra.mxu0 0.0
        %936 = vmatprep.subr.mxu0 0.0
        %937 = vmatpush1.xpose.msra.mxu0 0.0
        %938 = vmatprep.subr.mxu0 0.0
        %939 = vmatpush1.xpose.msra.mxu0 0.0
        %940 = vmatprep.subr.mxu0 0.0
        %941 = vmatpush1.xpose.msra.mxu0 0.0
        %942 = vmatprep.subr.mxu0 0.0
        %943 = vmatpush1.xpose.msra.mxu0 0.0
        %944 = vmatprep.subr.mxu0 0.0
        %945 = vmatpush1.xpose.msra.mxu0 0.0
        %946 = vmatprep.subr.mxu0 0.0
        %947 = vmatpush1.xpose.msra.mxu0 0.0
        %948 = vmatprep.subr.mxu0 0.0
        %949 = vmatpush1.xpose.msra.mxu0 0.0
        %950 = vmatprep.subr.mxu0 0.0
        %951 = vmatpush1.xpose.msra.mxu0 0.0
        %952 = vmatprep.subr.mxu0 0.0
        %953 = vmatpush1.xpose.msra.mxu0 0.0
        %954 = vmatprep.subr.mxu0 0.0
        %955 = vmatpush1.xpose.msra.mxu0 0.0
        %956 = vmatprep.subr.mxu0 0.0
        %957 = vmatpush1.xpose.msra.mxu0 0.0
        %958 = vmatprep.subr.mxu0 0.0
        %959 = vmatpush1.xpose.msra.mxu0 0.0
        %960 = vmatprep.subr.mxu0 0.0
        %961 = vmatpush1.xpose.msra.mxu0 0.0
        %962 = vmatprep.subr.mxu0 0.0
        %963 = vmatpush1.xpose.msra.mxu0 0.0
        %964 = vmatprep.subr.mxu0 0.0
        %965 = vmatpush1.xpose.msra.mxu0 0.0
        %966 = vmatprep.subr.mxu0 0.0
        %967 = vmatpush1.xpose.msra.mxu0 0.0
        %968 = vmatprep.subr.mxu0 0.0
        %969 = vmatpush1.xpose.msra.mxu0 0.0
        %970 = vmatprep.subr.mxu0 0.0
        %971 = vmatpush1.xpose.msra.mxu0 0.0
        %972 = vmatprep.subr.mxu0 0.0
        %973 = vmatpush1.xpose.msra.mxu0 0.0
        %974 = vmatprep.subr.mxu0 0.0
        %975 = vmatpush1.xpose.msra.mxu0 0.0
        %976 = vmatprep.subr.mxu0 0.0
        %977 = vmatpush1.xpose.msra.mxu0 0.0
        %978 = vmatprep.subr.mxu0 0.0
        %979 = vmatpush1.xpose.msra.mxu0 0.0
        %980 = vmatprep.subr.mxu0 0.0
        %981 = vmatpush1.xpose.msra.mxu0 0.0
        %982 = vmatprep.subr.mxu0 0.0
        %983 = vmatpush1.xpose.msra.mxu0 0.0
        %984 = vmatprep.subr.mxu0 0.0
        %985 = vmatpush1.xpose.msra.mxu0 0.0
        %986 = vmatprep.subr.mxu0 0.0
        %987 = vmatpush1.xpose.msra.mxu0 0.0
        %988 = vmatprep.subr.mxu0 0.0
        %989 = vmatpush1.xpose.msra.mxu0 0.0
        %990 = vmatprep.subr.mxu0 0.0
        %991 = vmatpush1.xpose.msra.mxu0 0.0
        %992 = vmatprep.subr.mxu0 0.0
        %993 = vmatpush1.xpose.msra.mxu0 0.0
        %994 = vmatprep.subr.mxu0 0.0
        %995 = vmatpush1.xpose.msra.mxu0 0.0
        %996 = vmatprep.mubr.f32.mxu0 0.0
        %997 = vmatmul.mubr.f32.gmra.mrb[0].mxu0 %v927
        %v998 = vpop.f32.mrb[0].mxu0
        %v999 = vadd.f32 %v924, %v998
        %v1000 = vpop.f32.mrb[0].mxu0
        %1001 = vdwg.mxu0
        %v1002 = vsel %vm926, %v910, 0
        %v1005 = vsel %vm926, %v916, 0
        %1007 = vmatprep.subr.mxu0 0.0
        %1008 = vmatpush1.xpose.msra.mxu0 %v1005
        %1009 = vmatprep.subr.mxu0 0.0
        %1010 = vmatpush1.xpose.msra.mxu0 0.0
        %1011 = vmatprep.subr.mxu0 0.0
        %1012 = vmatpush1.xpose.msra.mxu0 0.0
        %1013 = vmatprep.subr.mxu0 0.0
        %1014 = vmatpush1.xpose.msra.mxu0 0.0
        %1015 = vmatprep.subr.mxu0 0.0
        %1016 = vmatpush1.xpose.msra.mxu0 0.0
        %1017 = vmatprep.subr.mxu0 0.0
        %1018 = vmatpush1.xpose.msra.mxu0 0.0
        %1019 = vmatprep.subr.mxu0 0.0
        %1020 = vmatpush1.xpose.msra.mxu0 0.0
        %1021 = vmatprep.subr.mxu0 0.0
        %1022 = vmatpush1.xpose.msra.mxu0 0.0
        %1023 = vmatprep.subr.mxu0 0.0
        %1024 = vmatpush1.xpose.msra.mxu0 0.0
        %1025 = vmatprep.subr.mxu0 0.0
        %1026 = vmatpush1.xpose.msra.mxu0 0.0
        %1027 = vmatprep.subr.mxu0 0.0
        %1028 = vmatpush1.xpose.msra.mxu0 0.0
        %1029 = vmatprep.subr.mxu0 0.0
        %1030 = vmatpush1.xpose.msra.mxu0 0.0
        %1031 = vmatprep.subr.mxu0 0.0
        %1032 = vmatpush1.xpose.msra.mxu0 0.0
        %1033 = vmatprep.subr.mxu0 0.0
        %1034 = vmatpush1.xpose.msra.mxu0 0.0
        %1035 = vmatprep.subr.mxu0 0.0
        %1036 = vmatpush1.xpose.msra.mxu0 0.0
        %1037 = vmatprep.subr.mxu0 0.0
        %1038 = vmatpush1.xpose.msra.mxu0 0.0
        %1039 = vmatprep.subr.mxu0 0.0
        %1040 = vmatpush1.xpose.msra.mxu0 0.0
        %1041 = vmatprep.subr.mxu0 0.0
        %1042 = vmatpush1.xpose.msra.mxu0 0.0
        %1043 = vmatprep.subr.mxu0 0.0
        %1044 = vmatpush1.xpose.msra.mxu0 0.0
        %1045 = vmatprep.subr.mxu0 0.0
        %1046 = vmatpush1.xpose.msra.mxu0 0.0
        %1047 = vmatprep.subr.mxu0 0.0
        %1048 = vmatpush1.xpose.msra.mxu0 0.0
        %1049 = vmatprep.subr.mxu0 0.0
        %1050 = vmatpush1.xpose.msra.mxu0 0.0
        %1051 = vmatprep.subr.mxu0 0.0
        %1052 = vmatpush1.xpose.msra.mxu0 0.0
        %1053 = vmatprep.subr.mxu0 0.0
        %1054 = vmatpush1.xpose.msra.mxu0 0.0
        %1055 = vmatprep.subr.mxu0 0.0
        %1056 = vmatpush1.xpose.msra.mxu0 0.0
        %1057 = vmatprep.subr.mxu0 0.0
        %1058 = vmatpush1.xpose.msra.mxu0 0.0
        %1059 = vmatprep.subr.mxu0 0.0
        %1060 = vmatpush1.xpose.msra.mxu0 0.0
        %1061 = vmatprep.subr.mxu0 0.0
        %1062 = vmatpush1.xpose.msra.mxu0 0.0
        %1063 = vmatprep.subr.mxu0 0.0
        %1064 = vmatpush1.xpose.msra.mxu0 0.0
        %1065 = vmatprep.subr.mxu0 0.0
        %1066 = vmatpush1.xpose.msra.mxu0 0.0
        %1067 = vmatprep.subr.mxu0 0.0
        %1068 = vmatpush1.xpose.msra.mxu0 0.0
        %1069 = vmatprep.subr.mxu0 0.0
        %1070 = vmatpush1.xpose.msra.mxu0 0.0
        %1071 = vmatprep.mubr.f32.mxu0 0.0
        %1072 = vmatmul.mubr.f32.gmra.mrb[0].mxu0 %v1002
        %v1073 = vpop.f32.mrb[0].mxu0
        %v1074 = vadd.f32 %v924, %v1073
        %v1075 = vpop.f32.mrb[0].mxu0
        %1076 = vdwg.mxu0
        %v1077 = vsel %vm926, %v912, 0
        %v1080 = vsel %vm926, %v917, 0
        %1082 = vmatprep.subr.mxu0 0.0
        %1083 = vmatpush1.xpose.msra.mxu0 %v1080
        %1084 = vmatprep.subr.mxu0 0.0
        %1085 = vmatpush1.xpose.msra.mxu0 0.0
        %1086 = vmatprep.subr.mxu0 0.0
        %1087 = vmatpush1.xpose.msra.mxu0 0.0
        %1088 = vmatprep.subr.mxu0 0.0
        %1089 = vmatpush1.xpose.msra.mxu0 0.0
        %1090 = vmatprep.subr.mxu0 0.0
        %1091 = vmatpush1.xpose.msra.mxu0 0.0
        %1092 = vmatprep.subr.mxu0 0.0
        %1093 = vmatpush1.xpose.msra.mxu0 0.0
        %1094 = vmatprep.subr.mxu0 0.0
        %1095 = vmatpush1.xpose.msra.mxu0 0.0
        %1096 = vmatprep.subr.mxu0 0.0
        %1097 = vmatpush1.xpose.msra.mxu0 0.0
        %1098 = vmatprep.subr.mxu0 0.0
        %1099 = vmatpush1.xpose.msra.mxu0 0.0
        %1100 = vmatprep.subr.mxu0 0.0
        %1101 = vmatpush1.xpose.msra.mxu0 0.0
        %1102 = vmatprep.subr.mxu0 0.0
        %1103 = vmatpush1.xpose.msra.mxu0 0.0
        %1104 = vmatprep.subr.mxu0 0.0
        %1105 = vmatpush1.xpose.msra.mxu0 0.0
        %1106 = vmatprep.subr.mxu0 0.0
        %1107 = vmatpush1.xpose.msra.mxu0 0.0
        %1108 = vmatprep.subr.mxu0 0.0
        %1109 = vmatpush1.xpose.msra.mxu0 0.0
        %1110 = vmatprep.subr.mxu0 0.0
        %1111 = vmatpush1.xpose.msra.mxu0 0.0
        %1112 = vmatprep.subr.mxu0 0.0
        %1113 = vmatpush1.xpose.msra.mxu0 0.0
        %1114 = vmatprep.subr.mxu0 0.0
        %1115 = vmatpush1.xpose.msra.mxu0 0.0
        %1116 = vmatprep.subr.mxu0 0.0
        %1117 = vmatpush1.xpose.msra.mxu0 0.0
        %1118 = vmatprep.subr.mxu0 0.0
        %1119 = vmatpush1.xpose.msra.mxu0 0.0
        %1120 = vmatprep.subr.mxu0 0.0
        %1121 = vmatpush1.xpose.msra.mxu0 0.0
        %1122 = vmatprep.subr.mxu0 0.0
        %1123 = vmatpush1.xpose.msra.mxu0 0.0
        %1124 = vmatprep.subr.mxu0 0.0
        %1125 = vmatpush1.xpose.msra.mxu0 0.0
        %1126 = vmatprep.subr.mxu0 0.0
        %1127 = vmatpush1.xpose.msra.mxu0 0.0
        %1128 = vmatprep.subr.mxu0 0.0
        %1129 = vmatpush1.xpose.msra.mxu0 0.0
        %1130 = vmatprep.subr.mxu0 0.0
        %1131 = vmatpush1.xpose.msra.mxu0 0.0
        %1132 = vmatprep.subr.mxu0 0.0
        %1133 = vmatpush1.xpose.msra.mxu0 0.0
        %1134 = vmatprep.subr.mxu0 0.0
        %1135 = vmatpush1.xpose.msra.mxu0 0.0
        %1136 = vmatprep.subr.mxu0 0.0
        %1137 = vmatpush1.xpose.msra.mxu0 0.0
        %1138 = vmatprep.subr.mxu0 0.0
        %1139 = vmatpush1.xpose.msra.mxu0 0.0
        %1140 = vmatprep.subr.mxu0 0.0
        %1141 = vmatpush1.xpose.msra.mxu0 0.0
        %1142 = vmatprep.subr.mxu0 0.0
        %1143 = vmatpush1.xpose.msra.mxu0 0.0
        %1144 = vmatprep.subr.mxu0 0.0
        %1145 = vmatpush1.xpose.msra.mxu0 0.0
        %1146 = vmatprep.mubr.f32.mxu0 0.0
        %1147 = vmatmul.mubr.f32.gmra.mrb[0].mxu0 %v1077
        %v1148 = vpop.f32.mrb[0].mxu0
        %v1149 = vadd.f32 %v924, %v1148
        %v1150 = vpop.f32.mrb[0].mxu0
        %1151 = vdwg.mxu0
        %v1152 = vsel %vm926, %v914, 0
        %v1155 = vsel %vm926, %v918, 0
        %1157 = vmatprep.subr.mxu0 0.0
        %1158 = vmatpush1.xpose.msra.mxu0 %v1155
        %1159 = vmatprep.subr.mxu0 0.0
        %1160 = vmatpush1.xpose.msra.mxu0 0.0
        %1161 = vmatprep.subr.mxu0 0.0
        %1162 = vmatpush1.xpose.msra.mxu0 0.0
        %1163 = vmatprep.subr.mxu0 0.0
        %1164 = vmatpush1.xpose.msra.mxu0 0.0
        %1165 = vmatprep.subr.mxu0 0.0
        %1166 = vmatpush1.xpose.msra.mxu0 0.0
        %1167 = vmatprep.subr.mxu0 0.0
        %1168 = vmatpush1.xpose.msra.mxu0 0.0
        %1169 = vmatprep.subr.mxu0 0.0
        %1170 = vmatpush1.xpose.msra.mxu0 0.0
        %1171 = vmatprep.subr.mxu0 0.0
        %1172 = vmatpush1.xpose.msra.mxu0 0.0
        %1173 = vmatprep.subr.mxu0 0.0
        %1174 = vmatpush1.xpose.msra.mxu0 0.0
        %1175 = vmatprep.subr.mxu0 0.0
        %1176 = vmatpush1.xpose.msra.mxu0 0.0
        %1177 = vmatprep.subr.mxu0 0.0
        %1178 = vmatpush1.xpose.msra.mxu0 0.0
        %1179 = vmatprep.subr.mxu0 0.0
        %1180 = vmatpush1.xpose.msra.mxu0 0.0
        %1181 = vmatprep.subr.mxu0 0.0
        %1182 = vmatpush1.xpose.msra.mxu0 0.0
        %1183 = vmatprep.subr.mxu0 0.0
        %1184 = vmatpush1.xpose.msra.mxu0 0.0
        %1185 = vmatprep.subr.mxu0 0.0
        %1186 = vmatpush1.xpose.msra.mxu0 0.0
        %1187 = vmatprep.subr.mxu0 0.0
        %1188 = vmatpush1.xpose.msra.mxu0 0.0
        %1189 = vmatprep.subr.mxu0 0.0
        %1190 = vmatpush1.xpose.msra.mxu0 0.0
        %1191 = vmatprep.subr.mxu0 0.0
        %1192 = vmatpush1.xpose.msra.mxu0 0.0
        %1193 = vmatprep.subr.mxu0 0.0
        %1194 = vmatpush1.xpose.msra.mxu0 0.0
        %1195 = vmatprep.subr.mxu0 0.0
        %1196 = vmatpush1.xpose.msra.mxu0 0.0
        %1197 = vmatprep.subr.mxu0 0.0
        %1198 = vmatpush1.xpose.msra.mxu0 0.0
        %1199 = vmatprep.subr.mxu0 0.0
        %1200 = vmatpush1.xpose.msra.mxu0 0.0
        %1201 = vmatprep.subr.mxu0 0.0
        %1202 = vmatpush1.xpose.msra.mxu0 0.0
        %1203 = vmatprep.subr.mxu0 0.0
        %1204 = vmatpush1.xpose.msra.mxu0 0.0
        %1205 = vmatprep.subr.mxu0 0.0
        %1206 = vmatpush1.xpose.msra.mxu0 0.0
        %1207 = vmatprep.subr.mxu0 0.0
        %1208 = vmatpush1.xpose.msra.mxu0 0.0
        %1209 = vmatprep.subr.mxu0 0.0
        %1210 = vmatpush1.xpose.msra.mxu0 0.0
        %1211 = vmatprep.subr.mxu0 0.0
        %1212 = vmatpush1.xpose.msra.mxu0 0.0
        %1213 = vmatprep.subr.mxu0 0.0
        %1214 = vmatpush1.xpose.msra.mxu0 0.0
        %1215 = vmatprep.subr.mxu0 0.0
        %1216 = vmatpush1.xpose.msra.mxu0 0.0
        %1217 = vmatprep.subr.mxu0 0.0
        %1218 = vmatpush1.xpose.msra.mxu0 0.0
        %1219 = vmatprep.subr.mxu0 0.0
        %1220 = vmatpush1.xpose.msra.mxu0 0.0
        %1221 = vmatprep.mubr.f32.mxu0 0.0
        %1222 = vmatmul.mubr.f32.gmra.mrb[0].mxu0 %v1152
        %v1223 = vpop.f32.mrb[0].mxu0
        %v1224 = vadd.f32 %v924, %v1223
        %v1225 = vpop.f32.mrb[0].mxu0
        %1226 = vdwg.mxu0
        %v1227 = vsel %vm926, %v999, -inf
        %1228 = vmax.xlane.f32.xlu0 %v1227
        %v1229 = vpop.xlane.xlu0 %1228
        %v1230 = vsel %vm926, %v1074, -inf
        %1231 = vmax.xlane.f32.xlu0 %v1230
        %v1232 = vpop.xlane.xlu0 %1231
        %v1233 = vsel %vm926, %v1149, -inf
        %1234 = vmax.xlane.f32.xlu0 %v1233
        %v1235 = vpop.xlane.xlu0 %1234
        %v1236 = vsel %vm926, %v1224, -inf
        %1237 = vmax.xlane.f32.xlu0 %v1236
        %v1238 = vpop.xlane.xlu0 %1237
        %v1239 = vsub.f32 %v999, %v1229
        %v1240 = vsub.f32 %v1074, %v1232
        %v1241 = vsub.f32 %v1149, %v1235
        %v1242 = vsub.f32 %v1224, %v1238
        %v1243 = vmul.f32 %v1239, 1.442695
        %v1244 = vpow.pop %v1243
        %v1245 = vmul.f32 %v1240, 1.442695
        %v1246 = vpow.pop %v1245
        %v1247 = vmul.f32 %v1241, 1.442695
        %v1248 = vpow.pop %v1247
        %v1249 = vmul.f32 %v1242, 1.442695
        %v1250 = vpow.pop %v1249
        %v1251 = vsel %vm926, %v1244, 0.0
        %1252 = vadd.xlane.f32.xlu0 %v1251
        %v1253 = vpop.xlane.xlu0 %1252
        %v1254 = vsel %vm926, %v1246, 0.0
        %1255 = vadd.xlane.f32.xlu0 %v1254
        %v1256 = vpop.xlane.xlu0 %1255
        %v1257 = vsel %vm926, %v1248, 0.0
        %1258 = vadd.xlane.f32.xlu0 %v1257
        %v1259 = vpop.xlane.xlu0 %1258
        %v1260 = vsel %vm926, %v1250, 0.0
        %1261 = vadd.xlane.f32.xlu0 %v1260
        %v1262 = vpop.xlane.xlu0 %1261
        %v1263 = vrcp.pop %v1253
        %v1264 = vrcp.pop %v1256
        %v1265 = vrcp.pop %v1259
        %v1266 = vrcp.pop %v1262
        %v1267 = vmul.f32 %v1244, %v1263
        %v1268 = vmul.f32 %v1246, %v1264
        %v1269 = vmul.f32 %v1248, %v1265
        %v1270 = vmul.f32 %v1250, %v1266
        %v1271 = vld [vmem:[#allocation3] sm:$0xff]
        %v1272 = vld [vmem:[#allocation3 + $0x8] sm:$0xff]
        %v1273 = vld [vmem:[#allocation3 + $0x10] sm:$0xff]
        %v1274 = vld [vmem:[#allocation3 + $0x18] sm:$0xff]
        %v1276 = vsel %vm926, %v1267, 0
        %1278 = vmatprep.subr.mxu0 0.0
        %1279 = vmatpush1.msra.mxu0 %v1271
        %1280 = vmatprep.subr.mxu0 0.0
        %1281 = vmatpush1.msra.mxu0 0.0
        %1282 = vmatprep.subr.mxu0 0.0
        %1283 = vmatpush1.msra.mxu0 0.0
        %1284 = vmatprep.subr.mxu0 0.0
        %1285 = vmatpush1.msra.mxu0 0.0
        %1286 = vmatprep.subr.mxu0 0.0
        %1287 = vmatpush1.msra.mxu0 0.0
        %1288 = vmatprep.subr.mxu0 0.0
        %1289 = vmatpush1.msra.mxu0 0.0
        %1290 = vmatprep.subr.mxu0 0.0
        %1291 = vmatpush1.msra.mxu0 0.0
        %1292 = vmatprep.subr.mxu0 0.0
        %1293 = vmatpush1.msra.mxu0 0.0
        %1294 = vmatprep.subr.mxu0 0.0
        %1295 = vmatpush1.msra.mxu0 0.0
        %1296 = vmatprep.subr.mxu0 0.0
        %1297 = vmatpush1.msra.mxu0 0.0
        %1298 = vmatprep.subr.mxu0 0.0
        %1299 = vmatpush1.msra.mxu0 0.0
        %1300 = vmatprep.subr.mxu0 0.0
        %1301 = vmatpush1.msra.mxu0 0.0
        %1302 = vmatprep.subr.mxu0 0.0
        %1303 = vmatpush1.msra.mxu0 0.0
        %1304 = vmatprep.subr.mxu0 0.0
        %1305 = vmatpush1.msra.mxu0 0.0
        %1306 = vmatprep.subr.mxu0 0.0
        %1307 = vmatpush1.msra.mxu0 0.0
        %1308 = vmatprep.subr.mxu0 0.0
        %1309 = vmatpush1.msra.mxu0 0.0
        %1310 = vmatprep.subr.mxu0 0.0
        %1311 = vmatpush1.msra.mxu0 0.0
        %1312 = vmatprep.subr.mxu0 0.0
        %1313 = vmatpush1.msra.mxu0 0.0
        %1314 = vmatprep.subr.mxu0 0.0
        %1315 = vmatpush1.msra.mxu0 0.0
        %1316 = vmatprep.subr.mxu0 0.0
        %1317 = vmatpush1.msra.mxu0 0.0
        %1318 = vmatprep.subr.mxu0 0.0
        %1319 = vmatpush1.msra.mxu0 0.0
        %1320 = vmatprep.subr.mxu0 0.0
        %1321 = vmatpush1.msra.mxu0 0.0
        %1322 = vmatprep.subr.mxu0 0.0
        %1323 = vmatpush1.msra.mxu0 0.0
        %1324 = vmatprep.subr.mxu0 0.0
        %1325 = vmatpush1.msra.mxu0 0.0
        %1326 = vmatprep.subr.mxu0 0.0
        %1327 = vmatpush1.msra.mxu0 0.0
        %1328 = vmatprep.subr.mxu0 0.0
        %1329 = vmatpush1.msra.mxu0 0.0
        %1330 = vmatprep.subr.mxu0 0.0
        %1331 = vmatpush1.msra.mxu0 0.0
        %1332 = vmatprep.subr.mxu0 0.0
        %1333 = vmatpush1.msra.mxu0 0.0
        %1334 = vmatprep.subr.mxu0 0.0
        %1335 = vmatpush1.msra.mxu0 0.0
        %1336 = vmatprep.subr.mxu0 0.0
        %1337 = vmatpush1.msra.mxu0 0.0
        %1338 = vmatprep.subr.mxu0 0.0
        %1339 = vmatpush1.msra.mxu0 0.0
        %1340 = vmatprep.subr.mxu0 0.0
        %1341 = vmatpush1.msra.mxu0 0.0
        %1342 = vmatprep.mubr.f32.mxu0 0.0
        %1343 = vmatmul.mubr.f32.gmra.mrb[0].mxu0 %v1276
        %v1344 = vpop.f32.mrb[0].mxu0
        %v1345 = vadd.f32 0.0, %v1344
        %v1346 = vpop.f32.mrb[0].mxu0
        %1347 = vdwg.mxu0
        %v1349 = vsel %vm926, %v1268, 0
        %1351 = vmatprep.subr.mxu0 0.0
        %1352 = vmatpush1.msra.mxu0 %v1272
        %1353 = vmatprep.subr.mxu0 0.0
        %1354 = vmatpush1.msra.mxu0 0.0
        %1355 = vmatprep.subr.mxu0 0.0
        %1356 = vmatpush1.msra.mxu0 0.0
        %1357 = vmatprep.subr.mxu0 0.0
        %1358 = vmatpush1.msra.mxu0 0.0
        %1359 = vmatprep.subr.mxu0 0.0
        %1360 = vmatpush1.msra.mxu0 0.0
        %1361 = vmatprep.subr.mxu0 0.0
        %1362 = vmatpush1.msra.mxu0 0.0
        %1363 = vmatprep.subr.mxu0 0.0
        %1364 = vmatpush1.msra.mxu0 0.0
        %1365 = vmatprep.subr.mxu0 0.0
        %1366 = vmatpush1.msra.mxu0 0.0
        %1367 = vmatprep.subr.mxu0 0.0
        %1368 = vmatpush1.msra.mxu0 0.0
        %1369 = vmatprep.subr.mxu0 0.0
        %1370 = vmatpush1.msra.mxu0 0.0
        %1371 = vmatprep.subr.mxu0 0.0
        %1372 = vmatpush1.msra.mxu0 0.0
        %1373 = vmatprep.subr.mxu0 0.0
        %1374 = vmatpush1.msra.mxu0 0.0
        %1375 = vmatprep.subr.mxu0 0.0
        %1376 = vmatpush1.msra.mxu0 0.0
        %1377 = vmatprep.subr.mxu0 0.0
        %1378 = vmatpush1.msra.mxu0 0.0
        %1379 = vmatprep.subr.mxu0 0.0
        %1380 = vmatpush1.msra.mxu0 0.0
        %1381 = vmatprep.subr.mxu0 0.0
        %1382 = vmatpush1.msra.mxu0 0.0
        %1383 = vmatprep.subr.mxu0 0.0
        %1384 = vmatpush1.msra.mxu0 0.0
        %1385 = vmatprep.subr.mxu0 0.0
        %1386 = vmatpush1.msra.mxu0 0.0
        %1387 = vmatprep.subr.mxu0 0.0
        %1388 = vmatpush1.msra.mxu0 0.0
        %1389 = vmatprep.subr.mxu0 0.0
        %1390 = vmatpush1.msra.mxu0 0.0
        %1391 = vmatprep.subr.mxu0 0.0
        %1392 = vmatpush1.msra.mxu0 0.0
        %1393 = vmatprep.subr.mxu0 0.0
        %1394 = vmatpush1.msra.mxu0 0.0
        %1395 = vmatprep.subr.mxu0 0.0
        %1396 = vmatpush1.msra.mxu0 0.0
        %1397 = vmatprep.subr.mxu0 0.0
        %1398 = vmatpush1.msra.mxu0 0.0
        %1399 = vmatprep.subr.mxu0 0.0
        %1400 = vmatpush1.msra.mxu0 0.0
        %1401 = vmatprep.subr.mxu0 0.0
        %1402 = vmatpush1.msra.mxu0 0.0
        %1403 = vmatprep.subr.mxu0 0.0
        %1404 = vmatpush1.msra.mxu0 0.0
        %1405 = vmatprep.subr.mxu0 0.0
        %1406 = vmatpush1.msra.mxu0 0.0
        %1407 = vmatprep.subr.mxu0 0.0
        %1408 = vmatpush1.msra.mxu0 0.0
        %1409 = vmatprep.subr.mxu0 0.0
        %1410 = vmatpush1.msra.mxu0 0.0
        %1411 = vmatprep.subr.mxu0 0.0
        %1412 = vmatpush1.msra.mxu0 0.0
        %1413 = vmatprep.subr.mxu0 0.0
        %1414 = vmatpush1.msra.mxu0 0.0
        %1415 = vmatprep.mubr.f32.mxu0 0.0
        %1416 = vmatmul.mubr.f32.gmra.mrb[0].mxu0 %v1349
        %v1417 = vpop.f32.mrb[0].mxu0
        %v1418 = vadd.f32 0.0, %v1417
        %v1419 = vpop.f32.mrb[0].mxu0
        %1420 = vdwg.mxu0
        %v1422 = vsel %vm926, %v1269, 0
        %1424 = vmatprep.subr.mxu0 0.0
        %1425 = vmatpush1.msra.mxu0 %v1273
        %1426 = vmatprep.subr.mxu0 0.0
        %1427 = vmatpush1.msra.mxu0 0.0
        %1428 = vmatprep.subr.mxu0 0.0
        %1429 = vmatpush1.msra.mxu0 0.0
        %1430 = vmatprep.subr.mxu0 0.0
        %1431 = vmatpush1.msra.mxu0 0.0
        %1432 = vmatprep.subr.mxu0 0.0
        %1433 = vmatpush1.msra.mxu0 0.0
        %1434 = vmatprep.subr.mxu0 0.0
        %1435 = vmatpush1.msra.mxu0 0.0
        %1436 = vmatprep.subr.mxu0 0.0
        %1437 = vmatpush1.msra.mxu0 0.0
        %1438 = vmatprep.subr.mxu0 0.0
        %1439 = vmatpush1.msra.mxu0 0.0
        %1440 = vmatprep.subr.mxu0 0.0
        %1441 = vmatpush1.msra.mxu0 0.0
        %1442 = vmatprep.subr.mxu0 0.0
        %1443 = vmatpush1.msra.mxu0 0.0
        %1444 = vmatprep.subr.mxu0 0.0
        %1445 = vmatpush1.msra.mxu0 0.0
        %1446 = vmatprep.subr.mxu0 0.0
        %1447 = vmatpush1.msra.mxu0 0.0
        %1448 = vmatprep.subr.mxu0 0.0
        %1449 = vmatpush1.msra.mxu0 0.0
        %1450 = vmatprep.subr.mxu0 0.0
        %1451 = vmatpush1.msra.mxu0 0.0
        %1452 = vmatprep.subr.mxu0 0.0
        %1453 = vmatpush1.msra.mxu0 0.0
        %1454 = vmatprep.subr.mxu0 0.0
        %1455 = vmatpush1.msra.mxu0 0.0
        %1456 = vmatprep.subr.mxu0 0.0
        %1457 = vmatpush1.msra.mxu0 0.0
        %1458 = vmatprep.subr.mxu0 0.0
        %1459 = vmatpush1.msra.mxu0 0.0
        %1460 = vmatprep.subr.mxu0 0.0
        %1461 = vmatpush1.msra.mxu0 0.0
        %1462 = vmatprep.subr.mxu0 0.0
        %1463 = vmatpush1.msra.mxu0 0.0
        %1464 = vmatprep.subr.mxu0 0.0
        %1465 = vmatpush1.msra.mxu0 0.0
        %1466 = vmatprep.subr.mxu0 0.0
        %1467 = vmatpush1.msra.mxu0 0.0
        %1468 = vmatprep.subr.mxu0 0.0
        %1469 = vmatpush1.msra.mxu0 0.0
        %1470 = vmatprep.subr.mxu0 0.0
        %1471 = vmatpush1.msra.mxu0 0.0
        %1472 = vmatprep.subr.mxu0 0.0
        %1473 = vmatpush1.msra.mxu0 0.0
        %1474 = vmatprep.subr.mxu0 0.0
        %1475 = vmatpush1.msra.mxu0 0.0
        %1476 = vmatprep.subr.mxu0 0.0
        %1477 = vmatpush1.msra.mxu0 0.0
        %1478 = vmatprep.subr.mxu0 0.0
        %1479 = vmatpush1.msra.mxu0 0.0
        %1480 = vmatprep.subr.mxu0 0.0
        %1481 = vmatpush1.msra.mxu0 0.0
        %1482 = vmatprep.subr.mxu0 0.0
        %1483 = vmatpush1.msra.mxu0 0.0
        %1484 = vmatprep.subr.mxu0 0.0
        %1485 = vmatpush1.msra.mxu0 0.0
        %1486 = vmatprep.subr.mxu0 0.0
        %1487 = vmatpush1.msra.mxu0 0.0
        %1488 = vmatprep.mubr.f32.mxu0 0.0
        %1489 = vmatmul.mubr.f32.gmra.mrb[0].mxu0 %v1422
        %v1490 = vpop.f32.mrb[0].mxu0
        %v1491 = vadd.f32 0.0, %v1490
        %v1492 = vpop.f32.mrb[0].mxu0
        %1493 = vdwg.mxu0
        %v1495 = vsel %vm926, %v1270, 0
        %1497 = vmatprep.subr.mxu0 0.0
        %1498 = vmatpush1.msra.mxu0 %v1274
        %1499 = vmatprep.subr.mxu0 0.0
        %1500 = vmatpush1.msra.mxu0 0.0
        %1501 = vmatprep.subr.mxu0 0.0
        %1502 = vmatpush1.msra.mxu0 0.0
        %1503 = vmatprep.subr.mxu0 0.0
        %1504 = vmatpush1.msra.mxu0 0.0
        %1505 = vmatprep.subr.mxu0 0.0
        %1506 = vmatpush1.msra.mxu0 0.0
        %1507 = vmatprep.subr.mxu0 0.0
        %1508 = vmatpush1.msra.mxu0 0.0
        %1509 = vmatprep.subr.mxu0 0.0
        %1510 = vmatpush1.msra.mxu0 0.0
        %1511 = vmatprep.subr.mxu0 0.0
        %1512 = vmatpush1.msra.mxu0 0.0
        %1513 = vmatprep.subr.mxu0 0.0
        %1514 = vmatpush1.msra.mxu0 0.0
        %1515 = vmatprep.subr.mxu0 0.0
        %1516 = vmatpush1.msra.mxu0 0.0
        %1517 = vmatprep.subr.mxu0 0.0
        %1518 = vmatpush1.msra.mxu0 0.0
        %1519 = vmatprep.subr.mxu0 0.0
        %1520 = vmatpush1.msra.mxu0 0.0
        %1521 = vmatprep.subr.mxu0 0.0
        %1522 = vmatpush1.msra.mxu0 0.0
        %1523 = vmatprep.subr.mxu0 0.0
        %1524 = vmatpush1.msra.mxu0 0.0
        %1525 = vmatprep.subr.mxu0 0.0
        %1526 = vmatpush1.msra.mxu0 0.0
        %1527 = vmatprep.subr.mxu0 0.0
        %1528 = vmatpush1.msra.mxu0 0.0
        %1529 = vmatprep.subr.mxu0 0.0
        %1530 = vmatpush1.msra.mxu0 0.0
        %1531 = vmatprep.subr.mxu0 0.0
        %1532 = vmatpush1.msra.mxu0 0.0
        %1533 = vmatprep.subr.mxu0 0.0
        %1534 = vmatpush1.msra.mxu0 0.0
        %1535 = vmatprep.subr.mxu0 0.0
        %1536 = vmatpush1.msra.mxu0 0.0
        %1537 = vmatprep.subr.mxu0 0.0
        %1538 = vmatpush1.msra.mxu0 0.0
        %1539 = vmatprep.subr.mxu0 0.0
        %1540 = vmatpush1.msra.mxu0 0.0
        %1541 = vmatprep.subr.mxu0 0.0
        %1542 = vmatpush1.msra.mxu0 0.0
        %1543 = vmatprep.subr.mxu0 0.0
        %1544 = vmatpush1.msra.mxu0 0.0
        %1545 = vmatprep.subr.mxu0 0.0
        %1546 = vmatpush1.msra.mxu0 0.0
        %1547 = vmatprep.subr.mxu0 0.0
        %1548 = vmatpush1.msra.mxu0 0.0
        %1549 = vmatprep.subr.mxu0 0.0
        %1550 = vmatpush1.msra.mxu0 0.0
        %1551 = vmatprep.subr.mxu0 0.0
        %1552 = vmatpush1.msra.mxu0 0.0
        %1553 = vmatprep.subr.mxu0 0.0
        %1554 = vmatpush1.msra.mxu0 0.0
        %1555 = vmatprep.subr.mxu0 0.0
        %1556 = vmatpush1.msra.mxu0 0.0
        %1557 = vmatprep.subr.mxu0 0.0
        %1558 = vmatpush1.msra.mxu0 0.0
        %1559 = vmatprep.subr.mxu0 0.0
        %1560 = vmatpush1.msra.mxu0 0.0
        %1561 = vmatprep.mubr.f32.mxu0 0.0
        %1562 = vmatmul.mubr.f32.gmra.mrb[0].mxu0 %v1495
        %v1563 = vpop.f32.mrb[0].mxu0
        %v1564 = vadd.f32 0.0, %v1563
        %v1565 = vpop.f32.mrb[0].mxu0
        %1566 = vdwg.mxu0
        %v1567 = vld [vmem:[%s8] sm:$0xff]
        %v1568 = vld [vmem:[%s8 + $0x8] sm:$0xff]
        %v1569 = vld [vmem:[%s8 + $0x10] sm:$0xff]
        %v1570 = vld [vmem:[%s8 + $0x18] sm:$0xff]
        %v1572 = vsel %vm926, %v1345, 0
        %1574 = vmatprep.subr.mxu0 0.0
        %1575 = vmatpush1.msra.mxu0 %v1567
        %1576 = vmatprep.subr.mxu0 0.0
        %1577 = vmatpush1.msra.mxu0 0.0
        %1578 = vmatprep.subr.mxu0 0.0
        %1579 = vmatpush1.msra.mxu0 0.0
        %1580 = vmatprep.subr.mxu0 0.0
        %1581 = vmatpush1.msra.mxu0 0.0
        %1582 = vmatprep.subr.mxu0 0.0
        %1583 = vmatpush1.msra.mxu0 0.0
        %1584 = vmatprep.subr.mxu0 0.0
        %1585 = vmatpush1.msra.mxu0 0.0
        %1586 = vmatprep.subr.mxu0 0.0
        %1587 = vmatpush1.msra.mxu0 0.0
        %1588 = vmatprep.subr.mxu0 0.0
        %1589 = vmatpush1.msra.mxu0 0.0
        %1590 = vmatprep.subr.mxu0 0.0
        %1591 = vmatpush1.msra.mxu0 0.0
        %1592 = vmatprep.subr.mxu0 0.0
        %1593 = vmatpush1.msra.mxu0 0.0
        %1594 = vmatprep.subr.mxu0 0.0
        %1595 = vmatpush1.msra.mxu0 0.0
        %1596 = vmatprep.subr.mxu0 0.0
        %1597 = vmatpush1.msra.mxu0 0.0
        %1598 = vmatprep.subr.mxu0 0.0
        %1599 = vmatpush1.msra.mxu0 0.0
        %1600 = vmatprep.subr.mxu0 0.0
        %1601 = vmatpush1.msra.mxu0 0.0
        %1602 = vmatprep.subr.mxu0 0.0
        %1603 = vmatpush1.msra.mxu0 0.0
        %1604 = vmatprep.subr.mxu0 0.0
        %1605 = vmatpush1.msra.mxu0 0.0
        %1606 = vmatprep.subr.mxu0 0.0
        %1607 = vmatpush1.msra.mxu0 0.0
        %1608 = vmatprep.subr.mxu0 0.0
        %1609 = vmatpush1.msra.mxu0 0.0
        %1610 = vmatprep.subr.mxu0 0.0
        %1611 = vmatpush1.msra.mxu0 0.0
        %1612 = vmatprep.subr.mxu0 0.0
        %1613 = vmatpush1.msra.mxu0 0.0
        %1614 = vmatprep.subr.mxu0 0.0
        %1615 = vmatpush1.msra.mxu0 0.0
        %1616 = vmatprep.subr.mxu0 0.0
        %1617 = vmatpush1.msra.mxu0 0.0
        %1618 = vmatprep.subr.mxu0 0.0
        %1619 = vmatpush1.msra.mxu0 0.0
        %1620 = vmatprep.subr.mxu0 0.0
        %1621 = vmatpush1.msra.mxu0 0.0
        %1622 = vmatprep.subr.mxu0 0.0
        %1623 = vmatpush1.msra.mxu0 0.0
        %1624 = vmatprep.subr.mxu0 0.0
        %1625 = vmatpush1.msra.mxu0 0.0
        %1626 = vmatprep.subr.mxu0 0.0
        %1627 = vmatpush1.msra.mxu0 0.0
        %1628 = vmatprep.subr.mxu0 0.0
        %1629 = vmatpush1.msra.mxu0 0.0
        %1630 = vmatprep.subr.mxu0 0.0
        %1631 = vmatpush1.msra.mxu0 0.0
        %1632 = vmatprep.subr.mxu0 0.0
        %1633 = vmatpush1.msra.mxu0 0.0
        %1634 = vmatprep.subr.mxu0 0.0
        %1635 = vmatpush1.msra.mxu0 0.0
        %1636 = vmatprep.subr.mxu0 0.0
        %1637 = vmatpush1.msra.mxu0 0.0
        %1638 = vmatprep.mubr.f32.mxu0 0.0
        %1639 = vmatmul.mubr.f32.gmra.mrb[0].mxu0 %v1572
        %v1640 = vpop.f32.mrb[0].mxu0
        %v1641 = vadd.f32 0.0, %v1640
        %v1642 = vpop.f32.mrb[0].mxu0
        %1643 = vdwg.mxu0
        %v1645 = vsel %vm926, %v1418, 0
        %1647 = vmatprep.subr.mxu0 0.0
        %1648 = vmatpush1.msra.mxu0 %v1568
        %1649 = vmatprep.subr.mxu0 0.0
        %1650 = vmatpush1.msra.mxu0 0.0
        %1651 = vmatprep.subr.mxu0 0.0
        %1652 = vmatpush1.msra.mxu0 0.0
        %1653 = vmatprep.subr.mxu0 0.0
        %1654 = vmatpush1.msra.mxu0 0.0
        %1655 = vmatprep.subr.mxu0 0.0
        %1656 = vmatpush1.msra.mxu0 0.0
        %1657 = vmatprep.subr.mxu0 0.0
        %1658 = vmatpush1.msra.mxu0 0.0
        %1659 = vmatprep.subr.mxu0 0.0
        %1660 = vmatpush1.msra.mxu0 0.0
        %1661 = vmatprep.subr.mxu0 0.0
        %1662 = vmatpush1.msra.mxu0 0.0
        %1663 = vmatprep.subr.mxu0 0.0
        %1664 = vmatpush1.msra.mxu0 0.0
        %1665 = vmatprep.subr.mxu0 0.0
        %1666 = vmatpush1.msra.mxu0 0.0
        %1667 = vmatprep.subr.mxu0 0.0
        %1668 = vmatpush1.msra.mxu0 0.0
        %1669 = vmatprep.subr.mxu0 0.0
        %1670 = vmatpush1.msra.mxu0 0.0
        %1671 = vmatprep.subr.mxu0 0.0
        %1672 = vmatpush1.msra.mxu0 0.0
        %1673 = vmatprep.subr.mxu0 0.0
        %1674 = vmatpush1.msra.mxu0 0.0
        %1675 = vmatprep.subr.mxu0 0.0
        %1676 = vmatpush1.msra.mxu0 0.0
        %1677 = vmatprep.subr.mxu0 0.0
        %1678 = vmatpush1.msra.mxu0 0.0
        %1679 = vmatprep.subr.mxu0 0.0
        %1680 = vmatpush1.msra.mxu0 0.0
        %1681 = vmatprep.subr.mxu0 0.0
        %1682 = vmatpush1.msra.mxu0 0.0
        %1683 = vmatprep.subr.mxu0 0.0
        %1684 = vmatpush1.msra.mxu0 0.0
        %1685 = vmatprep.subr.mxu0 0.0
        %1686 = vmatpush1.msra.mxu0 0.0
        %1687 = vmatprep.subr.mxu0 0.0
        %1688 = vmatpush1.msra.mxu0 0.0
        %1689 = vmatprep.subr.mxu0 0.0
        %1690 = vmatpush1.msra.mxu0 0.0
        %1691 = vmatprep.subr.mxu0 0.0
        %1692 = vmatpush1.msra.mxu0 0.0
        %1693 = vmatprep.subr.mxu0 0.0
        %1694 = vmatpush1.msra.mxu0 0.0
        %1695 = vmatprep.subr.mxu0 0.0
        %1696 = vmatpush1.msra.mxu0 0.0
        %1697 = vmatprep.subr.mxu0 0.0
        %1698 = vmatpush1.msra.mxu0 0.0
        %1699 = vmatprep.subr.mxu0 0.0
        %1700 = vmatpush1.msra.mxu0 0.0
        %1701 = vmatprep.subr.mxu0 0.0
        %1702 = vmatpush1.msra.mxu0 0.0
        %1703 = vmatprep.subr.mxu0 0.0
        %1704 = vmatpush1.msra.mxu0 0.0
        %1705 = vmatprep.subr.mxu0 0.0
        %1706 = vmatpush1.msra.mxu0 0.0
        %1707 = vmatprep.subr.mxu0 0.0
        %1708 = vmatpush1.msra.mxu0 0.0
        %1709 = vmatprep.subr.mxu0 0.0
        %1710 = vmatpush1.msra.mxu0 0.0
        %1711 = vmatprep.mubr.f32.mxu0 0.0
        %1712 = vmatmul.mubr.f32.gmra.mrb[0].mxu0 %v1645
        %v1713 = vpop.f32.mrb[0].mxu0
        %v1714 = vadd.f32 0.0, %v1713
        %v1715 = vpop.f32.mrb[0].mxu0
        %1716 = vdwg.mxu0
        %v1718 = vsel %vm926, %v1491, 0
        %1720 = vmatprep.subr.mxu0 0.0
        %1721 = vmatpush1.msra.mxu0 %v1569
        %1722 = vmatprep.subr.mxu0 0.0
        %1723 = vmatpush1.msra.mxu0 0.0
        %1724 = vmatprep.subr.mxu0 0.0
        %1725 = vmatpush1.msra.mxu0 0.0
        %1726 = vmatprep.subr.mxu0 0.0
        %1727 = vmatpush1.msra.mxu0 0.0
        %1728 = vmatprep.subr.mxu0 0.0
        %1729 = vmatpush1.msra.mxu0 0.0
        %1730 = vmatprep.subr.mxu0 0.0
        %1731 = vmatpush1.msra.mxu0 0.0
        %1732 = vmatprep.subr.mxu0 0.0
        %1733 = vmatpush1.msra.mxu0 0.0
        %1734 = vmatprep.subr.mxu0 0.0
        %1735 = vmatpush1.msra.mxu0 0.0
        %1736 = vmatprep.subr.mxu0 0.0
        %1737 = vmatpush1.msra.mxu0 0.0
        %1738 = vmatprep.subr.mxu0 0.0
        %1739 = vmatpush1.msra.mxu0 0.0
        %1740 = vmatprep.subr.mxu0 0.0
        %1741 = vmatpush1.msra.mxu0 0.0
        %1742 = vmatprep.subr.mxu0 0.0
        %1743 = vmatpush1.msra.mxu0 0.0
        %1744 = vmatprep.subr.mxu0 0.0
        %1745 = vmatpush1.msra.mxu0 0.0
        %1746 = vmatprep.subr.mxu0 0.0
        %1747 = vmatpush1.msra.mxu0 0.0
        %1748 = vmatprep.subr.mxu0 0.0
        %1749 = vmatpush1.msra.mxu0 0.0
        %1750 = vmatprep.subr.mxu0 0.0
        %1751 = vmatpush1.msra.mxu0 0.0
        %1752 = vmatprep.subr.mxu0 0.0
        %1753 = vmatpush1.msra.mxu0 0.0
        %1754 = vmatprep.subr.mxu0 0.0
        %1755 = vmatpush1.msra.mxu0 0.0
        %1756 = vmatprep.subr.mxu0 0.0
        %1757 = vmatpush1.msra.mxu0 0.0
        %1758 = vmatprep.subr.mxu0 0.0
        %1759 = vmatpush1.msra.mxu0 0.0
        %1760 = vmatprep.subr.mxu0 0.0
        %1761 = vmatpush1.msra.mxu0 0.0
        %1762 = vmatprep.subr.mxu0 0.0
        %1763 = vmatpush1.msra.mxu0 0.0
        %1764 = vmatprep.subr.mxu0 0.0
        %1765 = vmatpush1.msra.mxu0 0.0
        %1766 = vmatprep.subr.mxu0 0.0
        %1767 = vmatpush1.msra.mxu0 0.0
        %1768 = vmatprep.subr.mxu0 0.0
        %1769 = vmatpush1.msra.mxu0 0.0
        %1770 = vmatprep.subr.mxu0 0.0
        %1771 = vmatpush1.msra.mxu0 0.0
        %1772 = vmatprep.subr.mxu0 0.0
        %1773 = vmatpush1.msra.mxu0 0.0
        %1774 = vmatprep.subr.mxu0 0.0
        %1775 = vmatpush1.msra.mxu0 0.0
        %1776 = vmatprep.subr.mxu0 0.0
        %1777 = vmatpush1.msra.mxu0 0.0
        %1778 = vmatprep.subr.mxu0 0.0
        %1779 = vmatpush1.msra.mxu0 0.0
        %1780 = vmatprep.subr.mxu0 0.0
        %1781 = vmatpush1.msra.mxu0 0.0
        %1782 = vmatprep.subr.mxu0 0.0
        %1783 = vmatpush1.msra.mxu0 0.0
        %1784 = vmatprep.mubr.f32.mxu0 0.0
        %1785 = vmatmul.mubr.f32.gmra.mrb[0].mxu0 %v1718
        %v1786 = vpop.f32.mrb[0].mxu0
        %v1787 = vadd.f32 0.0, %v1786
        %v1788 = vpop.f32.mrb[0].mxu0
        %1789 = vdwg.mxu0
        %v1791 = vsel %vm926, %v1564, 0
        %1793 = vmatprep.subr.mxu0 0.0
        %1794 = vmatpush1.msra.mxu0 %v1570
        %1795 = vmatprep.subr.mxu0 0.0
        %1796 = vmatpush1.msra.mxu0 0.0
        %1797 = vmatprep.subr.mxu0 0.0
        %1798 = vmatpush1.msra.mxu0 0.0
        %1799 = vmatprep.subr.mxu0 0.0
        %1800 = vmatpush1.msra.mxu0 0.0
        %1801 = vmatprep.subr.mxu0 0.0
        %1802 = vmatpush1.msra.mxu0 0.0
        %1803 = vmatprep.subr.mxu0 0.0
        %1804 = vmatpush1.msra.mxu0 0.0
        %1805 = vmatprep.subr.mxu0 0.0
        %1806 = vmatpush1.msra.mxu0 0.0
        %1807 = vmatprep.subr.mxu0 0.0
        %1808 = vmatpush1.msra.mxu0 0.0
        %1809 = vmatprep.subr.mxu0 0.0
        %1810 = vmatpush1.msra.mxu0 0.0
        %1811 = vmatprep.subr.mxu0 0.0
        %1812 = vmatpush1.msra.mxu0 0.0
        %1813 = vmatprep.subr.mxu0 0.0
        %1814 = vmatpush1.msra.mxu0 0.0
        %1815 = vmatprep.subr.mxu0 0.0
        %1816 = vmatpush1.msra.mxu0 0.0
        %1817 = vmatprep.subr.mxu0 0.0
        %1818 = vmatpush1.msra.mxu0 0.0
        %1819 = vmatprep.subr.mxu0 0.0
        %1820 = vmatpush1.msra.mxu0 0.0
        %1821 = vmatprep.subr.mxu0 0.0
        %1822 = vmatpush1.msra.mxu0 0.0
        %1823 = vmatprep.subr.mxu0 0.0
        %1824 = vmatpush1.msra.mxu0 0.0
        %1825 = vmatprep.subr.mxu0 0.0
        %1826 = vmatpush1.msra.mxu0 0.0
        %1827 = vmatprep.subr.mxu0 0.0
        %1828 = vmatpush1.msra.mxu0 0.0
        %1829 = vmatprep.subr.mxu0 0.0
        %1830 = vmatpush1.msra.mxu0 0.0
        %1831 = vmatprep.subr.mxu0 0.0
        %1832 = vmatpush1.msra.mxu0 0.0
        %1833 = vmatprep.subr.mxu0 0.0
        %1834 = vmatpush1.msra.mxu0 0.0
        %1835 = vmatprep.subr.mxu0 0.0
        %1836 = vmatpush1.msra.mxu0 0.0
        %1837 = vmatprep.subr.mxu0 0.0
        %1838 = vmatpush1.msra.mxu0 0.0
        %1839 = vmatprep.subr.mxu0 0.0
        %1840 = vmatpush1.msra.mxu0 0.0
        %1841 = vmatprep.subr.mxu0 0.0
        %1842 = vmatpush1.msra.mxu0 0.0
        %1843 = vmatprep.subr.mxu0 0.0
        %1844 = vmatpush1.msra.mxu0 0.0
        %1845 = vmatprep.subr.mxu0 0.0
        %1846 = vmatpush1.msra.mxu0 0.0
        %1847 = vmatprep.subr.mxu0 0.0
        %1848 = vmatpush1.msra.mxu0 0.0
        %1849 = vmatprep.subr.mxu0 0.0
        %1850 = vmatpush1.msra.mxu0 0.0
        %1851 = vmatprep.subr.mxu0 0.0
        %1852 = vmatpush1.msra.mxu0 0.0
        %1853 = vmatprep.subr.mxu0 0.0
        %1854 = vmatpush1.msra.mxu0 0.0
        %1855 = vmatprep.subr.mxu0 0.0
        %1856 = vmatpush1.msra.mxu0 0.0
        %1857 = vmatprep.mubr.f32.mxu0 0.0
        %1858 = vmatmul.mubr.f32.gmra.mrb[0].mxu0 %v1791
        %v1859 = vpop.f32.mrb[0].mxu0
        %v1860 = vadd.f32 0.0, %v1859
        %v1861 = vpop.f32.mrb[0].mxu0
        %1862 = vdwg.mxu0
        %v1863 = vsel %vm833, %v1641, 0.0
        %v1864 = vsel %vm833, %v1714, 0.0
        %v1865 = vadd.f32 %v1863, %v1864
        %v1866 = vsel %vm833, %v1787, 0.0
        %v1867 = vadd.f32 %v1865, %v1866
        %v1868 = vsel %vm833, %v1860, 0.0
        %v1869 = vadd.f32 %v1867, %v1868
        %v1870 = vld [vmem:[%s9] sm:$0x1]
        %v1872 = vlaneseq
        %v1873 = vshrl.u32 %v1872, 7
        %v1874 = vsub.s32 0, %v1873
        %v1875 = vrot.slane %v1870, %v1874
        %v1877 = vadd.f32 %v1869, %v1875
        %v1878 = vadd.f32 %v1877, %v821
        %v1879 = vsel %vm833, %v1878, 0.0
        %1880 = vadd.xlane.f32.xlu0 %v1879
        %v1881 = vpop.xlane.xlu0 %1880
        %v1882 = vrcp.pop 32.0
        %v1883 = vmul.f32 %v1881, %v1882
        %v1884 = vsub.f32 %v1878, %v1883
        %v1885 = vmul.f32 %v1884, %v1884
        %v1886 = vsel %vm833, %v1885, 0.0
        %1887 = vadd.xlane.f32.xlu0 %v1886
        %v1888 = vpop.xlane.xlu0 %1887
        %v1889 = vmul.f32 %v1888, %v1882
        %v1890 = vadd.f32 %v1889, 1e-12
        %v1891 = vrsqrt.pop %v1890
        %v1892 = vmul.f32 %v1884, %v1891
        %v1893 = vld [vmem:[%s10] sm:$0x1]
        %v1895 = vlaneseq
        %v1896 = vshrl.u32 %v1895, 7
        %v1897 = vsub.s32 0, %v1896
        %v1898 = vrot.slane %v1893, %v1897
        %v1900 = vmul.f32 %v1892, %v1898
        %v1901 = vld [vmem:[%s11] sm:$0x1]
        %v1903 = vlaneseq
        %v1904 = vshrl.u32 %v1903, 7
        %v1905 = vsub.s32 0, %v1904
        %v1906 = vrot.slane %v1901, %v1905
        %v1908 = vadd.f32 %v1900, %v1906
        %v1909 = vld [vmem:[%s12] sm:$0xff]
        %v1910 = vld [vmem:[%s12 + $0x8] sm:$0xff]
        %v1911 = vld [vmem:[%s12 + $0x10] sm:$0xff]
        %v1912 = vld [vmem:[%s12 + $0x18] sm:$0xff]
        %v1913 = vld [vmem:[%s13] sm:$0x1]
        %v1915 = vlaneseq
        %v1916 = vshrl.u32 %v1915, 7
        %v1917 = vsub.s32 0, %v1916
        %v1918 = vrot.slane %v1913, %v1917
        %v1921 = vsel %vm833, %v1908, 0
        %1923 = vmatprep.subr.mxu0 0.0
        %1924 = vmatpush1.msra.mxu0 %v1909
        %1925 = vmatprep.subr.mxu0 0.0
        %1926 = vmatpush1.msra.mxu0 %v1910
        %1927 = vmatprep.subr.mxu0 0.0
        %1928 = vmatpush1.msra.mxu0 %v1911
        %1929 = vmatprep.subr.mxu0 0.0
        %1930 = vmatpush1.msra.mxu0 %v1912
        %1931 = vmatprep.subr.mxu0 0.0
        %1932 = vmatpush1.msra.mxu0 0.0
        %1933 = vmatprep.subr.mxu0 0.0
        %1934 = vmatpush1.msra.mxu0 0.0
        %1935 = vmatprep.subr.mxu0 0.0
        %1936 = vmatpush1.msra.mxu0 0.0
        %1937 = vmatprep.subr.mxu0 0.0
        %1938 = vmatpush1.msra.mxu0 0.0
        %1939 = vmatprep.subr.mxu0 0.0
        %1940 = vmatpush1.msra.mxu0 0.0
        %1941 = vmatprep.subr.mxu0 0.0
        %1942 = vmatpush1.msra.mxu0 0.0
        %1943 = vmatprep.subr.mxu0 0.0
        %1944 = vmatpush1.msra.mxu0 0.0
        %1945 = vmatprep.subr.mxu0 0.0
        %1946 = vmatpush1.msra.mxu0 0.0
        %1947 = vmatprep.subr.mxu0 0.0
        %1948 = vmatpush1.msra.mxu0 0.0
        %1949 = vmatprep.subr.mxu0 0.0
        %1950 = vmatpush1.msra.mxu0 0.0
        %1951 = vmatprep.subr.mxu0 0.0
        %1952 = vmatpush1.msra.mxu0 0.0
        %1953 = vmatprep.subr.mxu0 0.0
        %1954 = vmatpush1.msra.mxu0 0.0
        %1955 = vmatprep.subr.mxu0 0.0
        %1956 = vmatpush1.msra.mxu0 0.0
        %1957 = vmatprep.subr.mxu0 0.0
        %1958 = vmatpush1.msra.mxu0 0.0
        %1959 = vmatprep.subr.mxu0 0.0
        %1960 = vmatpush1.msra.mxu0 0.0
        %1961 = vmatprep.subr.mxu0 0.0
        %1962 = vmatpush1.msra.mxu0 0.0
        %1963 = vmatprep.subr.mxu0 0.0
        %1964 = vmatpush1.msra.mxu0 0.0
        %1965 = vmatprep.subr.mxu0 0.0
        %1966 = vmatpush1.msra.mxu0 0.0
        %1967 = vmatprep.subr.mxu0 0.0
        %1968 = vmatpush1.msra.mxu0 0.0
        %1969 = vmatprep.subr.mxu0 0.0
        %1970 = vmatpush1.msra.mxu0 0.0
        %1971 = vmatprep.subr.mxu0 0.0
        %1972 = vmatpush1.msra.mxu0 0.0
        %1973 = vmatprep.subr.mxu0 0.0
        %1974 = vmatpush1.msra.mxu0 0.0
        %1975 = vmatprep.subr.mxu0 0.0
        %1976 = vmatpush1.msra.mxu0 0.0
        %1977 = vmatprep.subr.mxu0 0.0
        %1978 = vmatpush1.msra.mxu0 0.0
        %1979 = vmatprep.subr.mxu0 0.0
        %1980 = vmatpush1.msra.mxu0 0.0
        %1981 = vmatprep.subr.mxu0 0.0
        %1982 = vmatpush1.msra.mxu0 0.0
        %1983 = vmatprep.subr.mxu0 0.0
        %1984 = vmatpush1.msra.mxu0 0.0
        %1985 = vmatprep.subr.mxu0 0.0
        %1986 = vmatpush1.msra.mxu0 0.0
        %1987 = vmatprep.mubr.f32.mxu0 0.0
        %1988 = vmatmul.mubr.f32.gmra.mrb[0].mxu0 %v1921
        %v1989 = vpop.f32.mrb[0].mxu0
        %v1990 = vadd.f32 %v1918, %v1989
        %v1991 = vpop.f32.mrb[0].mxu0
        %1992 = vdwg.mxu0
        %v1993 = vmul.f32 %v1990, 0.5
        %v1994 = vmul.f32 %v1990, 0.044715
        %v1995 = vmul.f32 %v1994, %v1990
        %v1996 = vmul.f32 %v1995, %v1990
        %v1997 = vadd.f32 %v1990, %v1996
        %v1998 = vmul.f32 %v1997, 0.7978846
        %v1999 = vtanh.pop %v1998
        %v2000 = vadd.f32 %v1999, 1.0
        %v2001 = vmul.f32 %v1993, %v2000
        %v2002 = vld [vmem:[%s14] sm:$0xff]
        %v2003 = vld [vmem:[%s14 + $0x8] sm:$0xff]
        %v2004 = vld [vmem:[%s14 + $0x10] sm:$0xff]
        %v2005 = vld [vmem:[%s14 + $0x18] sm:$0xff]
        %v2006 = vld [vmem:[%s14 + $0x20] sm:$0xff]
        %v2007 = vld [vmem:[%s14 + $0x28] sm:$0xff]
        %v2008 = vld [vmem:[%s14 + $0x30] sm:$0xff]
        %v2009 = vld [vmem:[%s14 + $0x38] sm:$0xff]
        %v2010 = vld [vmem:[%s14 + $0x40] sm:$0xff]
        %v2011 = vld [vmem:[%s14 + $0x48] sm:$0xff]
        %v2012 = vld [vmem:[%s14 + $0x50] sm:$0xff]
        %v2013 = vld [vmem:[%s14 + $0x58] sm:$0xff]
        %v2014 = vld [vmem:[%s14 + $0x60] sm:$0xff]
        %v2015 = vld [vmem:[%s14 + $0x68] sm:$0xff]
        %v2016 = vld [vmem:[%s14 + $0x70] sm:$0xff]
        %v2017 = vld [vmem:[%s14 + $0x78] sm:$0xff]
        %v2018 = vld [vmem:[%s15] sm:$0x1]
        %v2020 = vlaneseq
        %v2021 = vshrl.u32 %v2020, 7
        %v2022 = vsub.s32 0, %v2021
        %v2023 = vrot.slane %v2018, %v2022
        %2025 = vmatprep.subr.mxu0 0.0
        %2026 = vmatpush1.msra.mxu0 %v2002
        %2027 = vmatprep.subr.mxu0 0.0
        %2028 = vmatpush1.msra.mxu0 %v2003
        %2029 = vmatprep.subr.mxu0 0.0
        %2030 = vmatpush1.msra.mxu0 %v2004
        %2031 = vmatprep.subr.mxu0 0.0
        %2032 = vmatpush1.msra.mxu0 %v2005
        %2033 = vmatprep.subr.mxu0 0.0
        %2034 = vmatpush1.msra.mxu0 %v2006
        %2035 = vmatprep.subr.mxu0 0.0
        %2036 = vmatpush1.msra.mxu0 %v2007
        %2037 = vmatprep.subr.mxu0 0.0
        %2038 = vmatpush1.msra.mxu0 %v2008
        %2039 = vmatprep.subr.mxu0 0.0
        %2040 = vmatpush1.msra.mxu0 %v2009
        %2041 = vmatprep.subr.mxu0 0.0
        %2042 = vmatpush1.msra.mxu0 %v2010
        %2043 = vmatprep.subr.mxu0 0.0
        %2044 = vmatpush1.msra.mxu0 %v2011
        %2045 = vmatprep.subr.mxu0 0.0
        %2046 = vmatpush1.msra.mxu0 %v2012
        %2047 = vmatprep.subr.mxu0 0.0
        %2048 = vmatpush1.msra.mxu0 %v2013
        %2049 = vmatprep.subr.mxu0 0.0
        %2050 = vmatpush1.msra.mxu0 %v2014
        %2051 = vmatprep.subr.mxu0 0.0
        %2052 = vmatpush1.msra.mxu0 %v2015
        %2053 = vmatprep.subr.mxu0 0.0
        %2054 = vmatpush1.msra.mxu0 %v2016
        %2055 = vmatprep.subr.mxu0 0.0
        %2056 = vmatpush1.msra.mxu0 %v2017
        %2057 = vmatprep.subr.mxu0 0.0
        %2058 = vmatpush1.msra.mxu0 0.0
        %2059 = vmatprep.subr.mxu0 0.0
        %2060 = vmatpush1.msra.mxu0 0.0
        %2061 = vmatprep.subr.mxu0 0.0
        %2062 = vmatpush1.msra.mxu0 0.0
        %2063 = vmatprep.subr.mxu0 0.0
        %2064 = vmatpush1.msra.mxu0 0.0
        %2065 = vmatprep.subr.mxu0 0.0
        %2066 = vmatpush1.msra.mxu0 0.0
        %2067 = vmatprep.subr.mxu0 0.0
        %2068 = vmatpush1.msra.mxu0 0.0
        %2069 = vmatprep.subr.mxu0 0.0
        %2070 = vmatpush1.msra.mxu0 0.0
        %2071 = vmatprep.subr.mxu0 0.0
        %2072 = vmatpush1.msra.mxu0 0.0
        %2073 = vmatprep.subr.mxu0 0.0
        %2074 = vmatpush1.msra.mxu0 0.0
        %2075 = vmatprep.subr.mxu0 0.0
        %2076 = vmatpush1.msra.mxu0 0.0
        %2077 = vmatprep.subr.mxu0 0.0
        %2078 = vmatpush1.msra.mxu0 0.0
        %2079 = vmatprep.subr.mxu0 0.0
        %2080 = vmatpush1.msra.mxu0 0.0
        %2081 = vmatprep.subr.mxu0 0.0
        %2082 = vmatpush1.msra.mxu0 0.0
        %2083 = vmatprep.subr.mxu0 0.0
        %2084 = vmatpush1.msra.mxu0 0.0
        %2085 = vmatprep.subr.mxu0 0.0
        %2086 = vmatpush1.msra.mxu0 0.0
        %2087 = vmatprep.subr.mxu0 0.0
        %2088 = vmatpush1.msra.mxu0 0.0
        %2089 = vmatprep.mubr.f32.mxu0 0.0
        %2090 = vmatmul.mubr.f32.gmra.mrb[0].mxu0 %v2001
        %v2091 = vpop.f32.mrb[0].mxu0
        %v2092 = vadd.f32 %v2023, %v2091
        %v2093 = vpop.f32.mrb[0].mxu0
        %2094 = vdwg.mxu0
        %v2095 = vadd.f32 %v2092, %v1908
        %v2096 = vsel %vm833, %v2095, 0.0
        %2097 = vadd.xlane.f32.xlu0 %v2096
        %v2098 = vpop.xlane.xlu0 %2097
        %v2099 = vmul.f32 %v2098, %v1882
        %v2100 = vsub.f32 %v2095, %v2099
        %v2101 = vmul.f32 %v2100, %v2100
        %v2102 = vsel %vm833, %v2101, 0.0
        %2103 = vadd.xlane.f32.xlu0 %v2102
        %v2104 = vpop.xlane.xlu0 %2103
        %v2105 = vmul.f32 %v2104, %v1882
        %v2106 = vadd.f32 %v2105, 1e-12
        %v2107 = vrsqrt.pop %v2106
        %v2108 = vmul.f32 %v2100, %v2107
        %v2109 = vld [vmem:[%s16] sm:$0x1]
        %v2111 = vlaneseq
        %v2112 = vshrl.u32 %v2111, 7
        %v2113 = vsub.s32 0, %v2112
        %v2114 = vrot.slane %v2109, %v2113
        %v2116 = vmul.f32 %v2108, %v2114
        %v2117 = vld [vmem:[%s17] sm:$0x1]
        %v2119 = vlaneseq
        %v2120 = vshrl.u32 %v2119, 7
        %v2121 = vsub.s32 0, %v2120
        %v2122 = vrot.slane %v2117, %v2121
        %v2124 = vadd.f32 %v2116, %v2122
        %2125 = vst.msk [vmem:[%s615] sm:$0xff] %vm833, %v2124
        %s2126 = sand.u32 %s445, 1
        %s2127 = scalar_lea.sflag [#allocation6], %s2126
        %s2128 = sand.u32 %s445, 1
        %s2129 = smul.addr %s2128, 8
        %s2130 = scalar_lea.vmem [#allocation7], %s2129
        // Predicated region
        $region101: #{tpu_custom_call.1} parent=91 // pred_check
          %p2131 = pneg %p455
        $region102: #{tpu_custom_call.1} parent=91 // pred_check_branch
          %2133 = sbr.rel (%p2131) target = $region104
        $region103: #{tpu_custom_call.1} parent=91 // pred_region
          %s2135 = ssub.s32 128, 128
          %2136 = vsyncadd %s2127, %s2135
          %s2137 = sadd.s32 %s40, %s39
          %s2138 = smul.addr %s2137, 128
          %s2139 = scalar_lea.hbm %s18, %s2138
          %s2141 = sshll.u32 %s2130, 4
          %s2142 = int_to_ptr.vmem [resolvable:$true] %s2141
          %2144 = dma.vmem_to_hbm [thread:$0]  %s2142, 128, %s2139, %s2127
        $region104: #{tpu_custom_call.1} parent=91 // pred_fallthru
          _
      $region92: #{tpu_custom_call.1} parent=5 // pred_fallthru
        _
      %p2145 = scmp.le.s32.totalorder 2, %s30
      // Predicated region
      $region105: #{tpu_custom_call.1} parent=5 // pred_check
        %p2146 = pneg %p2145
      $region106: #{tpu_custom_call.1} parent=5 // pred_check_branch
        %2148 = sbr.rel (%p2146) target = $region108
      $region107: #{tpu_custom_call.1} parent=5 // pred_region
        %s2149 = ssub.s32 %s30, 2
        // Predicated region
        $region109: #{tpu_custom_call.1} parent=107 // pred_check
          %p2150 = pneg %p461
        $region110: #{tpu_custom_call.1} parent=107 // pred_check_branch
          %2152 = sbr.rel (%p2150) target = $region112
        $region111: #{tpu_custom_call.1} parent=107 // pred_region
          %s2153 = sand.u32 %s446, 1
          %s2154 = scalar_lea.sflag [#allocation6], %s2153
          %s2155 = sand.u32 %s446, 1
          %s2156 = smul.addr %s2155, 8
          %s2157 = scalar_lea.vmem [#allocation7], %s2156
          %2158 = dma.done %s2154, 128
        $region112: #{tpu_custom_call.1} parent=107 // pred_fallthru
          _
      $region108: #{tpu_custom_call.1} parent=5 // pred_fallthru
        _
    $region6: #{tpu_custom_call.1} parent=1 // loop_footer
      %s34 = sadd.s32 1, %s30
    $region7: #{tpu_custom_call.1} parent=1 // loop_footer_branch
      %29 = sbr.rel target = $region3
    $region8: #{tpu_custom_call.1} parent=1 // loop_exit
      _
    %2159 = vsyncpa [#allocation5], 1
    %s2160 = scalar_lea.sflag [#allocation5], 1
    %2161 = vsyncpa %s2160, 1
    %2162 = vsyncpa [#allocation6], 1
    %s2163 = scalar_lea.sflag [#allocation6], 1
    %2164 = vsyncpa %s2163, 1

</llo_original>
